<compile_context>
chip_gen: v5e
topology: v5e:2x2
jax: 0.10.0
libtpu: 0.0.40
codegen_flags: <defaults>
</compile_context>

<pallas_src>
import numpy as np
import jax
import jax.numpy as jnp
from jax.experimental import pallas as pl
from jax.experimental.pallas import tpu as pltpu


# -----------------------------------------------------------------------------
# Wrapper-side packing helpers (plain JAX / numpy, traced once under jit).
# -----------------------------------------------------------------------------

def _upsample_matrix(n_in):
    """(2*n_in, n_in) bilinear interpolation matrix with align_corners=True."""
    n_out = 2 * n_in
    a = np.zeros((n_out, n_in), np.float32)
    if n_in == 1:
        a[:, 0] = 1.0
        return jnp.asarray(a)
    for p in range(n_out):
        src = p * (n_in - 1) / (n_out - 1)
        lo = min(int(np.floor(src)), n_in - 2)
        frac = src - lo
        a[p, lo] += 1.0 - frac
        a[p, lo + 1] += frac
    return jnp.asarray(a)


def _banded_conv_weight(w_hwio, w_len):
    """(3, W*Cin, W*Cout) block-banded matrices, one per kernel row dy.

    M[dy][w'*Cin+ci, w*Cout+co] = w[dy, w'-w+1, ci, co]  (0 outside the band), so
    packed_out[h] = sum_dy packed_in[h+dy-1] @ M[dy] is the 3x3 conv including the
    zero padding along W.
    """
    kh, kw, cin, cout = w_hwio.shape
    mats = []
    for dy in range(kh):
        m = jnp.zeros((w_len * cin, w_len * cout), jnp.float32)
        for dx in range(kw):
            shift = jnp.eye(w_len, k=1 - dx, dtype=jnp.float32)  # S[w',w]=1 iff w'=w+dx-1
            m = m + jnp.kron(shift, w_hwio[dy, dx])
        mats.append(m)
    return jnp.stack(mats, axis=0)


def _pack(x_nchw):
    """NCHW -> lane-packed (N, H, W*C)."""
    n, c, h, w = x_nchw.shape
    return jnp.transpose(x_nchw, (0, 2, 3, 1)).reshape(n, h, w * c)


# -----------------------------------------------------------------------------
# Kernel 1: bilinear 2x upsample + skip add + conv1 + ReLU + BN partial stats.
# One grid step per image ("parallel" -> both v7x TensorCores).
# -----------------------------------------------------------------------------

def _upsample_conv1_kernel(x_ref, enc_ref, ah_ref, bw_ref, w1_ref, b1_ref,
                           y_ref, ssum_ref, ssq_ref, pad_ref):
    h_out = y_ref.shape[1]
    # bilinear upsample as two matmuls, then the skip-connection add
    tmp = jnp.dot(ah_ref[...], x_ref[0], preferred_element_type=jnp.float32)
    up = jnp.dot(tmp, bw_ref[...], preferred_element_type=jnp.float32) + enc_ref[0]
    # stage with a 1-row zero halo; only the two halo rows are cleared
    zrow = jnp.zeros((1, up.shape[1]), jnp.float32)
    pad_ref[0:1, :] = zrow
    pad_ref[h_out + 1:h_out + 2, :] = zrow
    pad_ref[1:h_out + 1, :] = up
    # 3x3 conv as 3 banded matmuls (K = W*Cin), f32 accumulation on the MXU
    acc = jnp.dot(up, w1_ref[1], preferred_element_type=jnp.float32)            # dy=1
    acc = acc + jnp.dot(pad_ref[0:h_out, :], w1_ref[0],
                        preferred_element_type=jnp.float32)                      # dy=0
    acc = acc + jnp.dot(pad_ref[2:h_out + 2, :], w1_ref[2],
                        preferred_element_type=jnp.float32)                      # dy=2
    y = jnp.maximum(acc + b1_ref[...], 0.0)                                      # relu(conv1)
    y_ref[0] = y
    # single-pass BatchNorm partials for this image (per packed (w, c) lane)
    ssum_ref[0] = jnp.sum(y, axis=0, keepdims=True)
    ssq_ref[0] = jnp.sum(y * y, axis=0, keepdims=True)


# -----------------------------------------------------------------------------
# Kernel 2: BatchNorm affine (y*s + t) + conv2 + ReLU.
# -----------------------------------------------------------------------------

def _bn_conv2_kernel(y_ref, w2_ref, s_ref, t_ref, b2_ref, out_ref, pad_ref):
    h_out = out_ref.shape[1]
    bn = y_ref[0] * s_ref[...] + t_ref[...]          # precomputed BN affine
    zrow = jnp.zeros((1, bn.shape[1]), jnp.float32)
    pad_ref[0:1, :] = zrow
    pad_ref[h_out + 1:h_out + 2, :] = zrow
    pad_ref[1:h_out + 1, :] = bn
    acc = jnp.dot(bn, w2_ref[1], preferred_element_type=jnp.float32)             # dy=1
    acc = acc + jnp.dot(pad_ref[0:h_out, :], w2_ref[0],
                        preferred_element_type=jnp.float32)                       # dy=0
    acc = acc + jnp.dot(pad_ref[2:h_out + 2, :], w2_ref[2],
                        preferred_element_type=jnp.float32)                       # dy=2
    out_ref[0] = jnp.maximum(acc + b2_ref[...], 0.0)                              # relu(conv2)


# -----------------------------------------------------------------------------
# One decoder stage (upsample + skip add + Block) built from the two kernels.
# -----------------------------------------------------------------------------

def _stage_forward(x_packed, enc_packed, stage_params, eps):
    w1, b1, gamma, beta, w2, b2 = stage_params
    n, h_in, wcin_in = x_packed.shape
    cin, cout = w1.shape[2], w1.shape[3]
    w_in = wcin_in // cin
    h_out, w_out = 2 * h_in, 2 * w_in
    wc_in = w_out * cin
    wc_out = w_out * cout

    # one-time repacking of parameters into lane-packed / banded form
    ah = _upsample_matrix(h_in)                                        # (h_out, h_in)
    bw = jnp.kron(_upsample_matrix(w_in).T,
                  jnp.eye(cin, dtype=jnp.float32))                     # (w_in*cin, wc_in)
    wb1 = _banded_conv_weight(w1, w_out)                               # (3, wc_in, wc_out)
    wb2 = _banded_conv_weight(w2, w_out)                               # (3, wc_out, wc_out)
    b1p = jnp.tile(b1, w_out)[None, :]                                 # (1, wc_out)
    b2p = jnp.tile(b2, w_out)[None, :]

    flops1 = 2 * n * (h_out * h_in * wcin_in + h_out * wcin_in * wc_in
                      + 3 * h_out * wc_in * wc_out)
    bytes1 = 4 * (x_packed.size + enc_packed.size + ah.size + bw.size + wb1.size
                  + b1p.size + n * h_out * wc_out + 2 * n * wc_out)

    y_packed, ssum, ssq = pl.pallas_call(
        _upsample_conv1_kernel,
        grid=(n,),
        in_specs=[
            pl.BlockSpec((1, h_in, wcin_in), lambda i: (i, 0, 0)),
            pl.BlockSpec((1, h_out, wc_in), lambda i: (i, 0, 0)),
            pl.BlockSpec((h_out, h_in), lambda i: (0, 0)),
            pl.BlockSpec((w_in * cin, wc_in), lambda i: (0, 0)),
            pl.BlockSpec((3, wc_in, wc_out), lambda i: (0, 0, 0)),
            pl.BlockSpec((1, wc_out), lambda i: (0, 0)),
        ],
        out_specs=[
            pl.BlockSpec((1, h_out, wc_out), lambda i: (i, 0, 0)),
            pl.BlockSpec((1, 1, wc_out), lambda i: (i, 0, 0)),
            pl.BlockSpec((1, 1, wc_out), lambda i: (i, 0, 0)),
        ],
        out_shape=[
            jax.ShapeDtypeStruct((n, h_out, wc_out), jnp.float32),
            jax.ShapeDtypeStruct((n, 1, wc_out), jnp.float32),
            jax.ShapeDtypeStruct((n, 1, wc_out), jnp.float32),
        ],
        scratch_shapes=[pltpu.VMEM((h_out + 2, wc_in), jnp.float32)],
        compiler_params=pltpu.CompilerParams(dimension_semantics=("parallel",)),
        cost_estimate=pl.CostEstimate(flops=flops1, transcendentals=0,
                                      bytes_accessed=bytes1),
    )(x_packed, enc_packed, ah, bw, wb1, b1p)

    # tiny glue: per-channel batch statistics -> BN affine (s, t), lane-packed
    count = n * h_out * w_out
    sums = jnp.sum(ssum[:, 0, :].reshape(n, w_out, cout), axis=(0, 1))
    sumsq = jnp.sum(ssq[:, 0, :].reshape(n, w_out, cout), axis=(0, 1))
    mean = sums / count
    var = jnp.maximum(sumsq / count - mean * mean, 0.0)   # biased (training) variance
    s = gamma * jax.lax.rsqrt(var + eps)
    t = beta - mean * s
    s_p = jnp.tile(s, w_out)[None, :]
    t_p = jnp.tile(t, w_out)[None, :]

    flops2 = 2 * n * 3 * h_out * wc_out * wc_out
    bytes2 = 4 * (y_packed.size + wb2.size + 3 * wc_out + n * h_out * wc_out)

    out_packed = pl.pallas_call(
        _bn_conv2_kernel,
        grid=(n,),
        in_specs=[
            pl.BlockSpec((1, h_out, wc_out), lambda i: (i, 0, 0)),
            pl.BlockSpec((3, wc_out, wc_out), lambda i: (0, 0, 0)),
            pl.BlockSpec((1, wc_out), lambda i: (0, 0)),
            pl.BlockSpec((1, wc_out), lambda i: (0, 0)),
            pl.BlockSpec((1, wc_out), lambda i: (0, 0)),
        ],
        out_specs=pl.BlockSpec((1, h_out, wc_out), lambda i: (i, 0, 0)),
        out_shape=jax.ShapeDtypeStruct((n, h_out, wc_out), jnp.float32),
        scratch_shapes=[pltpu.VMEM((h_out + 2, wc_out), jnp.float32)],
        compiler_params=pltpu.CompilerParams(dimension_semantics=("parallel",)),
        cost_estimate=pl.CostEstimate(flops=flops2, transcendentals=0,
                                      bytes_accessed=bytes2),
    )(y_packed, wb2, s_p, t_p, b2p)
    return out_packed


def decoder_forward(x_nchw, enc_features, params, eps=1e-5):
    """Pallas forward of Decoder(channels): per stage upsample + skip add + Block."""
    xp = _pack(x_nchw)
    c_cur = x_nchw.shape[1]
    for enc, stage_params in zip(enc_features, params):
        cin = stage_params[0].shape[2]
        assert cin == c_cur
        ce = enc.shape[1]
        enc_pad = jnp.pad(enc, ((0, 0), (0, cin - ce), (0, 0), (0, 0)))
        xp = _stage_forward(xp, _pack(enc_pad), stage_params, eps)
        c_cur = stage_params[0].shape[3]
    n, h, wc = xp.shape
    return jnp.transpose(xp.reshape(n, h, wc // c_cur, c_cur), (0, 3, 1, 2))


# -----------------------------------------------------------------------------
# Plain-JAX reference mirroring the PyTorch semantics (independent code path).
# -----------------------------------------------------------------------------

def _upsample_bilinear_2x_ref(x_nchw):
    """UpsamplingBilinear2d(scale_factor=2): align_corners=True, gather + lerp."""
    n, c, h, w = x_nchw.shape
    ho, wo = 2 * h, 2 * w

    def coords(n_in, n_out):
        if n_in == 1:
            return jnp.zeros((n_out,), jnp.int32), jnp.zeros((n_out,), jnp.float32)
        src = np.arange(n_out) * (n_in - 1) / (n_out - 1)
        lo = np.clip(np.floor(src).astype(np.int32), 0, n_in - 2)
        frac = (src - lo).astype(np.float32)
        return jnp.asarray(lo), jnp.asarray(frac)

    hlo, hf = coords(h, ho)
    wlo, wf = coords(w, wo)
    top = x_nchw[:, :, hlo, :]
    bot = x_nchw[:, :, jnp.minimum(hlo + 1, h - 1), :]
    xr = top * (1.0 - hf)[None, None, :, None] + bot * hf[None, None, :, None]
    left = xr[:, :, :, wlo]
    right = xr[:, :, :, jnp.minimum(wlo + 1, w - 1)]
    return left * (1.0 - wf) + right * wf


def _block_ref(x_nchw, stage_params, eps):
    w1, b1, gamma, beta, w2, b2 = stage_params
    x = jnp.transpose(x_nchw, (0, 2, 3, 1))
    dn = jax.lax.conv_dimension_numbers(x.shape, w1.shape, ('NHWC', 'HWIO', 'NHWC'))
    y = jax.lax.conv_general_dilated(x, w1, (1, 1), ((1, 1), (1, 1)),
                                     dimension_numbers=dn) + b1
    y = jnp.maximum(y, 0.0)
    mean = jnp.mean(y, axis=(0, 1, 2))
    var = jnp.mean((y - mean) ** 2, axis=(0, 1, 2))
    y = (y - mean) * jax.lax.rsqrt(var + eps) * gamma + beta
    dn2 = jax.lax.conv_dimension_numbers(y.shape, w2.shape, ('NHWC', 'HWIO', 'NHWC'))
    y = jax.lax.conv_general_dilated(y, w2, (1, 1), ((1, 1), (1, 1)),
                                     dimension_numbers=dn2) + b2
    y = jnp.maximum(y, 0.0)
    return jnp.transpose(y, (0, 3, 1, 2))


def decoder_reference(x_nchw, enc_features, params, eps=1e-5):
    x = x_nchw
    for enc, stage_params in zip(enc_features, params):
        x = _upsample_bilinear_2x_ref(x)
        ce = enc.shape[1]
        x = x.at[:, :ce, :, :].add(enc)
        x = _block_ref(x, stage_params, eps)
    return x


if __name__ == "__main__":
    # Decoder(channels=(16, 8, 4)) on a (2, 16, 8, 8) input; encoder skip features
    # match the upsampled spatial sizes (standard UNet decoder usage).
    channels = (16, 8, 4)
    N, H0, W0 = 2, 8, 8

    key = jax.random.PRNGKey(0)
    keys = iter(jax.random.split(key, 32))

    x = jax.random.normal(next(keys), (N, channels[0], H0, W0), jnp.float32)
    enc_features = []
    params = []
    h, w = H0, W0
    for i in range(len(channels) - 1):
        cin, cout = channels[i], channels[i + 1]
        h, w = 2 * h, 2 * w
        enc_features.append(
            jax.random.normal(next(keys), (N, cout, h, w), jnp.float32))
        w1 = 0.1 * jax.random.normal(next(keys), (3, 3, cin, cout), jnp.float32)   # HWIO
        b1 = 0.1 * jax.random.normal(next(keys), (cout,), jnp.float32)
        gamma = 1.0 + 0.1 * jax.random.normal(next(keys), (cout,), jnp.float32)
        beta = 0.1 * jax.random.normal(next(keys), (cout,), jnp.float32)
        w2 = 0.1 * jax.random.normal(next(keys), (3, 3, cout, cout), jnp.float32)  # HWIO
        b2 = 0.1 * jax.random.normal(next(keys), (cout,), jnp.float32)
        params.append((w1, b1, gamma, beta, w2, b2))

    out = jax.jit(decoder_forward)(x, enc_features, params)
    out = jax.block_until_ready(out)

    ref = jax.block_until_ready(decoder_reference(x, enc_features, params))
    assert out.shape == (N, channels[-1], 4 * H0, 4 * W0), out.shape
    max_err = float(jnp.max(jnp.abs(out - ref)))
    assert jnp.allclose(out, ref, atol=1e-3, rtol=1e-3), max_err
    print("KERNEL_OK")
</pallas_src>

<mosaic_0001>
module attributes {stable_mosaic.version = 11 : i64} {
  func.func @_upsample_conv1_kernel(%arg0: i32, %arg1: memref<1x8x128xf32, #tpu.memory_space<vmem>>, %arg2: memref<1x16x256xf32, #tpu.memory_space<vmem>>, %arg3: memref<16x8xf32, #tpu.memory_space<vmem>>, %arg4: memref<128x256xf32, #tpu.memory_space<vmem>>, %arg5: memref<3x256x128xf32, #tpu.memory_space<vmem>>, %arg6: memref<1x128xf32, #tpu.memory_space<vmem>>, %arg7: memref<1x16x128xf32, #tpu.memory_space<vmem>>, %arg8: memref<1x1x128xf32, #tpu.memory_space<vmem>>, %arg9: memref<1x1x128xf32, #tpu.memory_space<vmem>>, %arg10: memref<18x256xf32, #tpu.memory_space<vmem>>) attributes {dimension_semantics = [#tpu.dimension_semantics<parallel>], iteration_bounds = array<i64: 2>, scalar_prefetch = 0 : i64, scratch_operands = 1 : i64, tpu.core_type = #tpu.core_type<tc>, window_params = [{transform_indices = @transform_0, window_bounds = array<i64: 1, 8, 128>}, {transform_indices = @transform_1, window_bounds = array<i64: 1, 16, 256>}, {pipeline_mode = #tpu.pipeline_mode<synchronous>, transform_indices = @transform_2, window_bounds = array<i64: 16, 8>}, {pipeline_mode = #tpu.pipeline_mode<synchronous>, transform_indices = @transform_3, window_bounds = array<i64: 128, 256>}, {pipeline_mode = #tpu.pipeline_mode<synchronous>, transform_indices = @transform_4, window_bounds = array<i64: 3, 256, 128>}, {pipeline_mode = #tpu.pipeline_mode<synchronous>, transform_indices = @transform_5, window_bounds = array<i64: 1, 128>}, {transform_indices = @transform_6, window_bounds = array<i64: 1, 16, 128>}, {transform_indices = @transform_7, window_bounds = array<i64: 1, 1, 128>}, {transform_indices = @transform_8, window_bounds = array<i64: 1, 1, 128>}]} {
    %c0 = arith.constant 0 : index
    %c0_0 = arith.constant 0 : index
    %0 = vector.load %arg3[%c0, %c0_0] : memref<16x8xf32, #tpu.memory_space<vmem>>, vector<16x8xf32>
    %c0_1 = arith.constant 0 : index
    %c0_2 = arith.constant 0 : index
    %c0_3 = arith.constant 0 : index
    %1 = vector.load %arg1[%c0_1, %c0_2, %c0_3] : memref<1x8x128xf32, #tpu.memory_space<vmem>>, vector<1x8x128xf32>
    %2 = vector.shape_cast %1 : vector<1x8x128xf32> to vector<8x128xf32>
    %cst = arith.constant dense<0.000000e+00> : vector<16x128xf32>
    %3 = tpu.matmul %0, %2, %cst {dimension_numbers = #tpu.dot_dimension_numbers<[1], [0], [0], [1], [0, 0, 1, 1], [], []>} : vector<16x8xf32>, vector<8x128xf32>, vector<16x128xf32> -> vector<16x128xf32>
    %c0_4 = arith.constant 0 : index
    %c0_5 = arith.constant 0 : index
    %4 = vector.load %arg4[%c0_4, %c0_5] : memref<128x256xf32, #tpu.memory_space<vmem>>, vector<128x256xf32>
    %cst_6 = arith.constant dense<0.000000e+00> : vector<16x256xf32>
    %5 = tpu.matmul %3, %4, %cst_6 {dimension_numbers = #tpu.dot_dimension_numbers<[1], [0], [0], [1], [0, 0, 1, 1], [], []>} : vector<16x128xf32>, vector<128x256xf32>, vector<16x256xf32> -> vector<16x256xf32>
    %c0_7 = arith.constant 0 : index
    %c0_8 = arith.constant 0 : index
    %c0_9 = arith.constant 0 : index
    %6 = vector.load %arg2[%c0_7, %c0_8, %c0_9] : memref<1x16x256xf32, #tpu.memory_space<vmem>>, vector<1x16x256xf32>
    %7 = vector.shape_cast %6 : vector<1x16x256xf32> to vector<16x256xf32>
    %8 = arith.addf %5, %7 : vector<16x256xf32>
    %cst_10 = arith.constant 0.000000e+00 : f32
    %9 = vector.broadcast %cst_10 : f32 to vector<1x256xf32>
    %c0_11 = arith.constant 0 : index
    %c0_12 = arith.constant 0 : index
    %10 = vector.load %arg10[%c0_11, %c0_12] : memref<18x256xf32, #tpu.memory_space<vmem>>, vector<1x256xf32>
    tpu.vector_store %arg10[%c0_11, %c0_12], %9 {strides = array<i32>} : memref<18x256xf32, #tpu.memory_space<vmem>>, vector<1x256xf32>,
    %c17 = arith.constant 17 : index
    %c0_13 = arith.constant 0 : index
    %11 = vector.load %arg10[%c17, %c0_13] : memref<18x256xf32, #tpu.memory_space<vmem>>, vector<1x256xf32>
    tpu.vector_store %arg10[%c17, %c0_13], %9 {strides = array<i32>} : memref<18x256xf32, #tpu.memory_space<vmem>>, vector<1x256xf32>,
    %c1 = arith.constant 1 : index
    %c0_14 = arith.constant 0 : index
    %12 = vector.load %arg10[%c1, %c0_14] : memref<18x256xf32, #tpu.memory_space<vmem>>, vector<16x256xf32>
    tpu.vector_store %arg10[%c1, %c0_14], %8 {strides = array<i32>} : memref<18x256xf32, #tpu.memory_space<vmem>>, vector<16x256xf32>,
    %c1_15 = arith.constant 1 : index
    %c0_16 = arith.constant 0 : index
    %c0_17 = arith.constant 0 : index
    %13 = vector.load %arg5[%c1_15, %c0_16, %c0_17] : memref<3x256x128xf32, #tpu.memory_space<vmem>>, vector<1x256x128xf32>
    %14 = vector.shape_cast %13 : vector<1x256x128xf32> to vector<256x128xf32>
    %cst_18 = arith.constant dense<0.000000e+00> : vector<16x128xf32>
    %15 = tpu.matmul %8, %14, %cst_18 {dimension_numbers = #tpu.dot_dimension_numbers<[1], [0], [0], [1], [0, 0, 1, 1], [], []>} : vector<16x256xf32>, vector<256x128xf32>, vector<16x128xf32> -> vector<16x128xf32>
    %c0_19 = arith.constant 0 : index
    %c0_20 = arith.constant 0 : index
    %16 = vector.load %arg10[%c0_19, %c0_20] : memref<18x256xf32, #tpu.memory_space<vmem>>, vector<16x256xf32>
    %c0_21 = arith.constant 0 : index
    %c0_22 = arith.constant 0 : index
    %c0_23 = arith.constant 0 : index
    %17 = vector.load %arg5[%c0_21, %c0_22, %c0_23] : memref<3x256x128xf32, #tpu.memory_space<vmem>>, vector<1x256x128xf32>
    %18 = vector.shape_cast %17 : vector<1x256x128xf32> to vector<256x128xf32>
    %cst_24 = arith.constant dense<0.000000e+00> : vector<16x128xf32>
    %19 = tpu.matmul %16, %18, %cst_24 {dimension_numbers = #tpu.dot_dimension_numbers<[1], [0], [0], [1], [0, 0, 1, 1], [], []>} : vector<16x256xf32>, vector<256x128xf32>, vector<16x128xf32> -> vector<16x128xf32>
    %20 = arith.addf %15, %19 : vector<16x128xf32>
    %c2 = arith.constant 2 : index
    %c0_25 = arith.constant 0 : index
    %21 = vector.load %arg10[%c2, %c0_25] : memref<18x256xf32, #tpu.memory_space<vmem>>, vector<16x256xf32>
    %c2_26 = arith.constant 2 : index
    %c0_27 = arith.constant 0 : index
    %c0_28 = arith.constant 0 : index
    %22 = vector.load %arg5[%c2_26, %c0_27, %c0_28] : memref<3x256x128xf32, #tpu.memory_space<vmem>>, vector<1x256x128xf32>
    %23 = vector.shape_cast %22 : vector<1x256x128xf32> to vector<256x128xf32>
    %cst_29 = arith.constant dense<0.000000e+00> : vector<16x128xf32>
    %24 = tpu.matmul %21, %23, %cst_29 {dimension_numbers = #tpu.dot_dimension_numbers<[1], [0], [0], [1], [0, 0, 1, 1], [], []>} : vector<16x256xf32>, vector<256x128xf32>, vector<16x128xf32> -> vector<16x128xf32>
    %25 = arith.addf %20, %24 : vector<16x128xf32>
    %c0_30 = arith.constant 0 : index
    %c0_31 = arith.constant 0 : index
    %26 = vector.load %arg6[%c0_30, %c0_31] : memref<1x128xf32, #tpu.memory_space<vmem>>, vector<1x128xf32>
    %27 = vector.broadcast %26 : vector<1x128xf32> to vector<16x128xf32>
    %28 = arith.addf %25, %27 : vector<16x128xf32>
    %cst_32 = arith.constant 0.000000e+00 : f32
    %29 = vector.broadcast %cst_32 : f32 to vector<16x128xf32>
    %30 = arith.maximumf %28, %29 : vector<16x128xf32>
    %c0_33 = arith.constant 0 : index
    %c0_34 = arith.constant 0 : index
    %c0_35 = arith.constant 0 : index
    %31 = vector.load %arg7[%c0_33, %c0_34, %c0_35] : memref<1x16x128xf32, #tpu.memory_space<vmem>>, vector<1x16x128xf32>
    %32 = vector.shape_cast %31 : vector<1x16x128xf32> to vector<16x128xf32>
    %33 = vector.shape_cast %30 : vector<16x128xf32> to vector<1x16x128xf32>
    tpu.vector_store %arg7[%c0_33, %c0_34, %c0_35], %33 {strides = array<i32>} : memref<1x16x128xf32, #tpu.memory_space<vmem>>, vector<1x16x128xf32>,
    %cst_36 = arith.constant dense<0.000000e+00> : vector<128xf32>
    %34 = vector.multi_reduction <add>, %30, %cst_36 [0] : vector<16x128xf32> to vector<128xf32>
    %35 = vector.shape_cast %34 : vector<128xf32> to vector<1x128xf32>
    %c0_37 = arith.constant 0 : index
    %c0_38 = arith.constant 0 : index
    %c0_39 = arith.constant 0 : index
    %36 = vector.load %arg8[%c0_37, %c0_38, %c0_39] : memref<1x1x128xf32, #tpu.memory_space<vmem>>, vector<1x1x128xf32>
    %37 = vector.shape_cast %36 : vector<1x1x128xf32> to vector<1x128xf32>
    %38 = vector.shape_cast %35 : vector<1x128xf32> to vector<1x1x128xf32>
    tpu.vector_store %arg8[%c0_37, %c0_38, %c0_39], %38 {strides = array<i32>} : memref<1x1x128xf32, #tpu.memory_space<vmem>>, vector<1x1x128xf32>,
    %39 = arith.mulf %30, %30 : vector<16x128xf32>
    %cst_40 = arith.constant dense<0.000000e+00> : vector<128xf32>
    %40 = vector.multi_reduction <add>, %39, %cst_40 [0] : vector<16x128xf32> to vector<128xf32>
    %41 = vector.shape_cast %40 : vector<128xf32> to vector<1x128xf32>
    %c0_41 = arith.constant 0 : index
    %c0_42 = arith.constant 0 : index
    %c0_43 = arith.constant 0 : index
    %42 = vector.load %arg9[%c0_41, %c0_42, %c0_43] : memref<1x1x128xf32, #tpu.memory_space<vmem>>, vector<1x1x128xf32>
    %43 = vector.shape_cast %42 : vector<1x1x128xf32> to vector<1x128xf32>
    %44 = vector.shape_cast %41 : vector<1x128xf32> to vector<1x1x128xf32>
    tpu.vector_store %arg9[%c0_41, %c0_42, %c0_43], %44 {strides = array<i32>} : memref<1x1x128xf32, #tpu.memory_space<vmem>>, vector<1x1x128xf32>,
    return
  }
  func.func @transform_0(%arg0: i32) -> (i32, i32, i32) {
    %c0_i32 = arith.constant 0 : i32
    %c0_i32_0 = arith.constant 0 : i32
    %c0_i32_1 = arith.constant 0 : i32
    return %arg0, %c0_i32, %c0_i32_0 : i32, i32, i32
  }
  func.func @transform_1(%arg0: i32) -> (i32, i32, i32) {
    %c0_i32 = arith.constant 0 : i32
    %c0_i32_0 = arith.constant 0 : i32
    %c0_i32_1 = arith.constant 0 : i32
    return %arg0, %c0_i32, %c0_i32_0 : i32, i32, i32
  }
  func.func @transform_2(%arg0: i32) -> (i32, i32) {
    %c0_i32 = arith.constant 0 : i32
    %c0_i32_0 = arith.constant 0 : i32
    %c0_i32_1 = arith.constant 0 : i32
    return %c0_i32, %c0_i32_0 : i32, i32
  }
  func.func @transform_3(%arg0: i32) -> (i32, i32) {
    %c0_i32 = arith.constant 0 : i32
    %c0_i32_0 = arith.constant 0 : i32
    %c0_i32_1 = arith.constant 0 : i32
    return %c0_i32, %c0_i32_0 : i32, i32
  }
  func.func @transform_4(%arg0: i32) -> (i32, i32, i32) {
    %c0_i32 = arith.constant 0 : i32
    %c0_i32_0 = arith.constant 0 : i32
    %c0_i32_1 = arith.constant 0 : i32
    %c0_i32_2 = arith.constant 0 : i32
    return %c0_i32, %c0_i32_0, %c0_i32_1 : i32, i32, i32
  }
  func.func @transform_5(%arg0: i32) -> (i32, i32) {
    %c0_i32 = arith.constant 0 : i32
    %c0_i32_0 = arith.constant 0 : i32
    %c0_i32_1 = arith.constant 0 : i32
    return %c0_i32, %c0_i32_0 : i32, i32
  }
  func.func @transform_6(%arg0: i32) -> (i32, i32, i32) {
    %c0_i32 = arith.constant 0 : i32
    %c0_i32_0 = arith.constant 0 : i32
    %c0_i32_1 = arith.constant 0 : i32
    return %arg0, %c0_i32, %c0_i32_0 : i32, i32, i32
  }
  func.func @transform_7(%arg0: i32) -> (i32, i32, i32) {
    %c0_i32 = arith.constant 0 : i32
    %c0_i32_0 = arith.constant 0 : i32
    %c0_i32_1 = arith.constant 0 : i32
    return %arg0, %c0_i32, %c0_i32_0 : i32, i32, i32
  }
  func.func @transform_8(%arg0: i32) -> (i32, i32, i32) {
    %c0_i32 = arith.constant 0 : i32
    %c0_i32_0 = arith.constant 0 : i32
    %c0_i32_1 = arith.constant 0 : i32
    return %arg0, %c0_i32, %c0_i32_0 : i32, i32, i32
  }
}

module attributes {stable_mosaic.version = 11 : i64} {
  func.func @_bn_conv2_kernel(%arg0: i32, %arg1: memref<1x16x128xf32, #tpu.memory_space<vmem>>, %arg2: memref<3x128x128xf32, #tpu.memory_space<vmem>>, %arg3: memref<1x128xf32, #tpu.memory_space<vmem>>, %arg4: memref<1x128xf32, #tpu.memory_space<vmem>>, %arg5: memref<1x128xf32, #tpu.memory_space<vmem>>, %arg6: memref<1x16x128xf32, #tpu.memory_space<vmem>>, %arg7: memref<18x128xf32, #tpu.memory_space<vmem>>) attributes {dimension_semantics = [#tpu.dimension_semantics<parallel>], iteration_bounds = array<i64: 2>, scalar_prefetch = 0 : i64, scratch_operands = 1 : i64, tpu.core_type = #tpu.core_type<tc>, window_params = [{transform_indices = @transform_0, window_bounds = array<i64: 1, 16, 128>}, {pipeline_mode = #tpu.pipeline_mode<synchronous>, transform_indices = @transform_1, window_bounds = array<i64: 3, 128, 128>}, {pipeline_mode = #tpu.pipeline_mode<synchronous>, transform_indices = @transform_2, window_bounds = array<i64: 1, 128>}, {pipeline_mode = #tpu.pipeline_mode<synchronous>, transform_indices = @transform_3, window_bounds = array<i64: 1, 128>}, {pipeline_mode = #tpu.pipeline_mode<synchronous>, transform_indices = @transform_4, window_bounds = array<i64: 1, 128>}, {transform_indices = @transform_5, window_bounds = array<i64: 1, 16, 128>}]} {
    %c0 = arith.constant 0 : index
    %c0_0 = arith.constant 0 : index
    %c0_1 = arith.constant 0 : index
    %0 = vector.load %arg1[%c0, %c0_0, %c0_1] : memref<1x16x128xf32, #tpu.memory_space<vmem>>, vector<1x16x128xf32>
    %1 = vector.shape_cast %0 : vector<1x16x128xf32> to vector<16x128xf32>
    %c0_2 = arith.constant 0 : index
    %c0_3 = arith.constant 0 : index
    %2 = vector.load %arg3[%c0_2, %c0_3] : memref<1x128xf32, #tpu.memory_space<vmem>>, vector<1x128xf32>
    %3 = vector.broadcast %2 : vector<1x128xf32> to vector<16x128xf32>
    %4 = arith.mulf %1, %3 : vector<16x128xf32>
    %c0_4 = arith.constant 0 : index
    %c0_5 = arith.constant 0 : index
    %5 = vector.load %arg4[%c0_4, %c0_5] : memref<1x128xf32, #tpu.memory_space<vmem>>, vector<1x128xf32>
    %6 = vector.broadcast %5 : vector<1x128xf32> to vector<16x128xf32>
    %7 = arith.addf %4, %6 : vector<16x128xf32>
    %cst = arith.constant 0.000000e+00 : f32
    %8 = vector.broadcast %cst : f32 to vector<1x128xf32>
    %c0_6 = arith.constant 0 : index
    %c0_7 = arith.constant 0 : index
    %9 = vector.load %arg7[%c0_6, %c0_7] : memref<18x128xf32, #tpu.memory_space<vmem>>, vector<1x128xf32>
    tpu.vector_store %arg7[%c0_6, %c0_7], %8 {strides = array<i32>} : memref<18x128xf32, #tpu.memory_space<vmem>>, vector<1x128xf32>,
    %c17 = arith.constant 17 : index
    %c0_8 = arith.constant 0 : index
    %10 = vector.load %arg7[%c17, %c0_8] : memref<18x128xf32, #tpu.memory_space<vmem>>, vector<1x128xf32>
    tpu.vector_store %arg7[%c17, %c0_8], %8 {strides = array<i32>} : memref<18x128xf32, #tpu.memory_space<vmem>>, vector<1x128xf32>,
    %c1 = arith.constant 1 : index
    %c0_9 = arith.constant 0 : index
    %11 = vector.load %arg7[%c1, %c0_9] : memref<18x128xf32, #tpu.memory_space<vmem>>, vector<16x128xf32>
    tpu.vector_store %arg7[%c1, %c0_9], %7 {strides = array<i32>} : memref<18x128xf32, #tpu.memory_space<vmem>>, vector<16x128xf32>,
    %c1_10 = arith.constant 1 : index
    %c0_11 = arith.constant 0 : index
    %c0_12 = arith.constant 0 : index
    %12 = vector.load %arg2[%c1_10, %c0_11, %c0_12] : memref<3x128x128xf32, #tpu.memory_space<vmem>>, vector<1x128x128xf32>
    %13 = vector.shape_cast %12 : vector<1x128x128xf32> to vector<128x128xf32>
    %cst_13 = arith.constant dense<0.000000e+00> : vector<16x128xf32>
    %14 = tpu.matmul %7, %13, %cst_13 {dimension_numbers = #tpu.dot_dimension_numbers<[1], [0], [0], [1], [0, 0, 1, 1], [], []>} : vector<16x128xf32>, vector<128x128xf32>, vector<16x128xf32> -> vector<16x128xf32>
    %c0_14 = arith.constant 0 : index
    %c0_15 = arith.constant 0 : index
    %15 = vector.load %arg7[%c0_14, %c0_15] : memref<18x128xf32, #tpu.memory_space<vmem>>, vector<16x128xf32>
    %c0_16 = arith.constant 0 : index
    %c0_17 = arith.constant 0 : index
    %c0_18 = arith.constant 0 : index
    %16 = vector.load %arg2[%c0_16, %c0_17, %c0_18] : memref<3x128x128xf32, #tpu.memory_space<vmem>>, vector<1x128x128xf32>
    %17 = vector.shape_cast %16 : vector<1x128x128xf32> to vector<128x128xf32>
    %cst_19 = arith.constant dense<0.000000e+00> : vector<16x128xf32>
    %18 = tpu.matmul %15, %17, %cst_19 {dimension_numbers = #tpu.dot_dimension_numbers<[1], [0], [0], [1], [0, 0, 1, 1], [], []>} : vector<16x128xf32>, vector<128x128xf32>, vector<16x128xf32> -> vector<16x128xf32>
    %19 = arith.addf %14, %18 : vector<16x128xf32>
    %c2 = arith.constant 2 : index
    %c0_20 = arith.constant 0 : index
    %20 = vector.load %arg7[%c2, %c0_20] : memref<18x128xf32, #tpu.memory_space<vmem>>, vector<16x128xf32>
    %c2_21 = arith.constant 2 : index
    %c0_22 = arith.constant 0 : index
    %c0_23 = arith.constant 0 : index
    %21 = vector.load %arg2[%c2_21, %c0_22, %c0_23] : memref<3x128x128xf32, #tpu.memory_space<vmem>>, vector<1x128x128xf32>
    %22 = vector.shape_cast %21 : vector<1x128x128xf32> to vector<128x128xf32>
    %cst_24 = arith.constant dense<0.000000e+00> : vector<16x128xf32>
    %23 = tpu.matmul %20, %22, %cst_24 {dimension_numbers = #tpu.dot_dimension_numbers<[1], [0], [0], [1], [0, 0, 1, 1], [], []>} : vector<16x128xf32>, vector<128x128xf32>, vector<16x128xf32> -> vector<16x128xf32>
    %24 = arith.addf %19, %23 : vector<16x128xf32>
    %c0_25 = arith.constant 0 : index
    %c0_26 = arith.constant 0 : index
    %25 = vector.load %arg5[%c0_25, %c0_26] : memref<1x128xf32, #tpu.memory_space<vmem>>, vector<1x128xf32>
    %26 = vector.broadcast %25 : vector<1x128xf32> to vector<16x128xf32>
    %27 = arith.addf %24, %26 : vector<16x128xf32>
    %cst_27 = arith.constant 0.000000e+00 : f32
    %28 = vector.broadcast %cst_27 : f32 to vector<16x128xf32>
    %29 = arith.maximumf %27, %28 : vector<16x128xf32>
    %c0_28 = arith.constant 0 : index
    %c0_29 = arith.constant 0 : index
    %c0_30 = arith.constant 0 : index
    %30 = vector.load %arg6[%c0_28, %c0_29, %c0_30] : memref<1x16x128xf32, #tpu.memory_space<vmem>>, vector<1x16x128xf32>
    %31 = vector.shape_cast %30 : vector<1x16x128xf32> to vector<16x128xf32>
    %32 = vector.shape_cast %29 : vector<16x128xf32> to vector<1x16x128xf32>
    tpu.vector_store %arg6[%c0_28, %c0_29, %c0_30], %32 {strides = array<i32>} : memref<1x16x128xf32, #tpu.memory_space<vmem>>, vector<1x16x128xf32>,
    return
  }
  func.func @transform_0(%arg0: i32) -> (i32, i32, i32) {
    %c0_i32 = arith.constant 0 : i32
    %c0_i32_0 = arith.constant 0 : i32
    %c0_i32_1 = arith.constant 0 : i32
    return %arg0, %c0_i32, %c0_i32_0 : i32, i32, i32
  }
  func.func @transform_1(%arg0: i32) -> (i32, i32, i32) {
    %c0_i32 = arith.constant 0 : i32
    %c0_i32_0 = arith.constant 0 : i32
    %c0_i32_1 = arith.constant 0 : i32
    %c0_i32_2 = arith.constant 0 : i32
    return %c0_i32, %c0_i32_0, %c0_i32_1 : i32, i32, i32
  }
  func.func @transform_2(%arg0: i32) -> (i32, i32) {
    %c0_i32 = arith.constant 0 : i32
    %c0_i32_0 = arith.constant 0 : i32
    %c0_i32_1 = arith.constant 0 : i32
    return %c0_i32, %c0_i32_0 : i32, i32
  }
  func.func @transform_3(%arg0: i32) -> (i32, i32) {
    %c0_i32 = arith.constant 0 : i32
    %c0_i32_0 = arith.constant 0 : i32
    %c0_i32_1 = arith.constant 0 : i32
    return %c0_i32, %c0_i32_0 : i32, i32
  }
  func.func @transform_4(%arg0: i32) -> (i32, i32) {
    %c0_i32 = arith.constant 0 : i32
    %c0_i32_0 = arith.constant 0 : i32
    %c0_i32_1 = arith.constant 0 : i32
    return %c0_i32, %c0_i32_0 : i32, i32
  }
  func.func @transform_5(%arg0: i32) -> (i32, i32, i32) {
    %c0_i32 = arith.constant 0 : i32
    %c0_i32_0 = arith.constant 0 : i32
    %c0_i32_1 = arith.constant 0 : i32
    return %arg0, %c0_i32, %c0_i32_0 : i32, i32, i32
  }
}

module attributes {stable_mosaic.version = 11 : i64} {
  func.func @_upsample_conv1_kernel(%arg0: i32, %arg1: memref<1x16x128xf32, #tpu.memory_space<vmem>>, %arg2: memref<1x32x256xf32, #tpu.memory_space<vmem>>, %arg3: memref<32x16xf32, #tpu.memory_space<vmem>>, %arg4: memref<128x256xf32, #tpu.memory_space<vmem>>, %arg5: memref<3x256x128xf32, #tpu.memory_space<vmem>>, %arg6: memref<1x128xf32, #tpu.memory_space<vmem>>, %arg7: memref<1x32x128xf32, #tpu.memory_space<vmem>>, %arg8: memref<1x1x128xf32, #tpu.memory_space<vmem>>, %arg9: memref<1x1x128xf32, #tpu.memory_space<vmem>>, %arg10: memref<34x256xf32, #tpu.memory_space<vmem>>) attributes {dimension_semantics = [#tpu.dimension_semantics<parallel>], iteration_bounds = array<i64: 2>, scalar_prefetch = 0 : i64, scratch_operands = 1 : i64, tpu.core_type = #tpu.core_type<tc>, window_params = [{transform_indices = @transform_0, window_bounds = array<i64: 1, 16, 128>}, {transform_indices = @transform_1, window_bounds = array<i64: 1, 32, 256>}, {pipeline_mode = #tpu.pipeline_mode<synchronous>, transform_indices = @transform_2, window_bounds = array<i64: 32, 16>}, {pipeline_mode = #tpu.pipeline_mode<synchronous>, transform_indices = @transform_3, window_bounds = array<i64: 128, 256>}, {pipeline_mode = #tpu.pipeline_mode<synchronous>, transform_indices = @transform_4, window_bounds = array<i64: 3, 256, 128>}, {pipeline_mode = #tpu.pipeline_mode<synchronous>, transform_indices = @transform_5, window_bounds = array<i64: 1, 128>}, {transform_indices = @transform_6, window_bounds = array<i64: 1, 32, 128>}, {transform_indices = @transform_7, window_bounds = array<i64: 1, 1, 128>}, {transform_indices = @transform_8, window_bounds = array<i64: 1, 1, 128>}]} {
    %c0 = arith.constant 0 : index
    %c0_0 = arith.constant 0 : index
    %0 = vector.load %arg3[%c0, %c0_0] : memref<32x16xf32, #tpu.memory_space<vmem>>, vector<32x16xf32>
    %c0_1 = arith.constant 0 : index
    %c0_2 = arith.constant 0 : index
    %c0_3 = arith.constant 0 : index
    %1 = vector.load %arg1[%c0_1, %c0_2, %c0_3] : memref<1x16x128xf32, #tpu.memory_space<vmem>>, vector<1x16x128xf32>
    %2 = vector.shape_cast %1 : vector<1x16x128xf32> to vector<16x128xf32>
    %cst = arith.constant dense<0.000000e+00> : vector<32x128xf32>
    %3 = tpu.matmul %0, %2, %cst {dimension_numbers = #tpu.dot_dimension_numbers<[1], [0], [0], [1], [0, 0, 1, 1], [], []>} : vector<32x16xf32>, vector<16x128xf32>, vector<32x128xf32> -> vector<32x128xf32>
    %c0_4 = arith.constant 0 : index
    %c0_5 = arith.constant 0 : index
    %4 = vector.load %arg4[%c0_4, %c0_5] : memref<128x256xf32, #tpu.memory_space<vmem>>, vector<128x256xf32>
    %cst_6 = arith.constant dense<0.000000e+00> : vector<32x256xf32>
    %5 = tpu.matmul %3, %4, %cst_6 {dimension_numbers = #tpu.dot_dimension_numbers<[1], [0], [0], [1], [0, 0, 1, 1], [], []>} : vector<32x128xf32>, vector<128x256xf32>, vector<32x256xf32> -> vector<32x256xf32>
    %c0_7 = arith.constant 0 : index
    %c0_8 = arith.constant 0 : index
    %c0_9 = arith.constant 0 : index
    %6 = vector.load %arg2[%c0_7, %c0_8, %c0_9] : memref<1x32x256xf32, #tpu.memory_space<vmem>>, vector<1x32x256xf32>
    %7 = vector.shape_cast %6 : vector<1x32x256xf32> to vector<32x256xf32>
    %8 = arith.addf %5, %7 : vector<32x256xf32>
    %cst_10 = arith.constant 0.000000e+00 : f32
    %9 = vector.broadcast %cst_10 : f32 to vector<1x256xf32>
    %c0_11 = arith.constant 0 : index
    %c0_12 = arith.constant 0 : index
    %10 = vector.load %arg10[%c0_11, %c0_12] : memref<34x256xf32, #tpu.memory_space<vmem>>, vector<1x256xf32>
    tpu.vector_store %arg10[%c0_11, %c0_12], %9 {strides = array<i32>} : memref<34x256xf32, #tpu.memory_space<vmem>>, vector<1x256xf32>,
    %c33 = arith.constant 33 : index
    %c0_13 = arith.constant 0 : index
    %11 = vector.load %arg10[%c33, %c0_13] : memref<34x256xf32, #tpu.memory_space<vmem>>, vector<1x256xf32>
    tpu.vector_store %arg10[%c33, %c0_13], %9 {strides = array<i32>} : memref<34x256xf32, #tpu.memory_space<vmem>>, vector<1x256xf32>,
    %c1 = arith.constant 1 : index
    %c0_14 = arith.constant 0 : index
    %12 = vector.load %arg10[%c1, %c0_14] : memref<34x256xf32, #tpu.memory_space<vmem>>, vector<32x256xf32>
    tpu.vector_store %arg10[%c1, %c0_14], %8 {strides = array<i32>} : memref<34x256xf32, #tpu.memory_space<vmem>>, vector<32x256xf32>,
    %c1_15 = arith.constant 1 : index
    %c0_16 = arith.constant 0 : index
    %c0_17 = arith.constant 0 : index
    %13 = vector.load %arg5[%c1_15, %c0_16, %c0_17] : memref<3x256x128xf32, #tpu.memory_space<vmem>>, vector<1x256x128xf32>
    %14 = vector.shape_cast %13 : vector<1x256x128xf32> to vector<256x128xf32>
    %cst_18 = arith.constant dense<0.000000e+00> : vector<32x128xf32>
    %15 = tpu.matmul %8, %14, %cst_18 {dimension_numbers = #tpu.dot_dimension_numbers<[1], [0], [0], [1], [0, 0, 1, 1], [], []>} : vector<32x256xf32>, vector<256x128xf32>, vector<32x128xf32> -> vector<32x128xf32>
    %c0_19 = arith.constant 0 : index
    %c0_20 = arith.constant 0 : index
    %16 = vector.load %arg10[%c0_19, %c0_20] : memref<34x256xf32, #tpu.memory_space<vmem>>, vector<32x256xf32>
    %c0_21 = arith.constant 0 : index
    %c0_22 = arith.constant 0 : index
    %c0_23 = arith.constant 0 : index
    %17 = vector.load %arg5[%c0_21, %c0_22, %c0_23] : memref<3x256x128xf32, #tpu.memory_space<vmem>>, vector<1x256x128xf32>
    %18 = vector.shape_cast %17 : vector<1x256x128xf32> to vector<256x128xf32>
    %cst_24 = arith.constant dense<0.000000e+00> : vector<32x128xf32>
    %19 = tpu.matmul %16, %18, %cst_24 {dimension_numbers = #tpu.dot_dimension_numbers<[1], [0], [0], [1], [0, 0, 1, 1], [], []>} : vector<32x256xf32>, vector<256x128xf32>, vector<32x128xf32> -> vector<32x128xf32>
    %20 = arith.addf %15, %19 : vector<32x128xf32>
    %c2 = arith.constant 2 : index
    %c0_25 = arith.constant 0 : index
    %21 = vector.load %arg10[%c2, %c0_25] : memref<34x256xf32, #tpu.memory_space<vmem>>, vector<32x256xf32>
    %c2_26 = arith.constant 2 : index
    %c0_27 = arith.constant 0 : index
    %c0_28 = arith.constant 0 : index
    %22 = vector.load %arg5[%c2_26, %c0_27, %c0_28] : memref<3x256x128xf32, #tpu.memory_space<vmem>>, vector<1x256x128xf32>
    %23 = vector.shape_cast %22 : vector<1x256x128xf32> to vector<256x128xf32>
    %cst_29 = arith.constant dense<0.000000e+00> : vector<32x128xf32>
    %24 = tpu.matmul %21, %23, %cst_29 {dimension_numbers = #tpu.dot_dimension_numbers<[1], [0], [0], [1], [0, 0, 1, 1], [], []>} : vector<32x256xf32>, vector<256x128xf32>, vector<32x128xf32> -> vector<32x128xf32>
    %25 = arith.addf %20, %24 : vector<32x128xf32>
    %c0_30 = arith.constant 0 : index
    %c0_31 = arith.constant 0 : index
    %26 = vector.load %arg6[%c0_30, %c0_31] : memref<1x128xf32, #tpu.memory_space<vmem>>, vector<1x128xf32>
    %27 = vector.broadcast %26 : vector<1x128xf32> to vector<32x128xf32>
    %28 = arith.addf %25, %27 : vector<32x128xf32>
    %cst_32 = arith.constant 0.000000e+00 : f32
    %29 = vector.broadcast %cst_32 : f32 to vector<32x128xf32>
    %30 = arith.maximumf %28, %29 : vector<32x128xf32>
    %c0_33 = arith.constant 0 : index
    %c0_34 = arith.constant 0 : index
    %c0_35 = arith.constant 0 : index
    %31 = vector.load %arg7[%c0_33, %c0_34, %c0_35] : memref<1x32x128xf32, #tpu.memory_space<vmem>>, vector<1x32x128xf32>
    %32 = vector.shape_cast %31 : vector<1x32x128xf32> to vector<32x128xf32>
    %33 = vector.shape_cast %30 : vector<32x128xf32> to vector<1x32x128xf32>
    tpu.vector_store %arg7[%c0_33, %c0_34, %c0_35], %33 {strides = array<i32>} : memref<1x32x128xf32, #tpu.memory_space<vmem>>, vector<1x32x128xf32>,
    %cst_36 = arith.constant dense<0.000000e+00> : vector<128xf32>
    %34 = vector.multi_reduction <add>, %30, %cst_36 [0] : vector<32x128xf32> to vector<128xf32>
    %35 = vector.shape_cast %34 : vector<128xf32> to vector<1x128xf32>
    %c0_37 = arith.constant 0 : index
    %c0_38 = arith.constant 0 : index
    %c0_39 = arith.constant 0 : index
    %36 = vector.load %arg8[%c0_37, %c0_38, %c0_39] : memref<1x1x128xf32, #tpu.memory_space<vmem>>, vector<1x1x128xf32>
    %37 = vector.shape_cast %36 : vector<1x1x128xf32> to vector<1x128xf32>
    %38 = vector.shape_cast %35 : vector<1x128xf32> to vector<1x1x128xf32>
    tpu.vector_store %arg8[%c0_37, %c0_38, %c0_39], %38 {strides = array<i32>} : memref<1x1x128xf32, #tpu.memory_space<vmem>>, vector<1x1x128xf32>,
    %39 = arith.mulf %30, %30 : vector<32x128xf32>
    %cst_40 = arith.constant dense<0.000000e+00> : vector<128xf32>
    %40 = vector.multi_reduction <add>, %39, %cst_40 [0] : vector<32x128xf32> to vector<128xf32>
    %41 = vector.shape_cast %40 : vector<128xf32> to vector<1x128xf32>
    %c0_41 = arith.constant 0 : index
    %c0_42 = arith.constant 0 : index
    %c0_43 = arith.constant 0 : index
    %42 = vector.load %arg9[%c0_41, %c0_42, %c0_43] : memref<1x1x128xf32, #tpu.memory_space<vmem>>, vector<1x1x128xf32>
    %43 = vector.shape_cast %42 : vector<1x1x128xf32> to vector<1x128xf32>
    %44 = vector.shape_cast %41 : vector<1x128xf32> to vector<1x1x128xf32>
    tpu.vector_store %arg9[%c0_41, %c0_42, %c0_43], %44 {strides = array<i32>} : memref<1x1x128xf32, #tpu.memory_space<vmem>>, vector<1x1x128xf32>,
    return
  }
  func.func @transform_0(%arg0: i32) -> (i32, i32, i32) {
    %c0_i32 = arith.constant 0 : i32
    %c0_i32_0 = arith.constant 0 : i32
    %c0_i32_1 = arith.constant 0 : i32
    return %arg0, %c0_i32, %c0_i32_0 : i32, i32, i32
  }
  func.func @transform_1(%arg0: i32) -> (i32, i32, i32) {
    %c0_i32 = arith.constant 0 : i32
    %c0_i32_0 = arith.constant 0 : i32
    %c0_i32_1 = arith.constant 0 : i32
    return %arg0, %c0_i32, %c0_i32_0 : i32, i32, i32
  }
  func.func @transform_2(%arg0: i32) -> (i32, i32) {
    %c0_i32 = arith.constant 0 : i32
    %c0_i32_0 = arith.constant 0 : i32
    %c0_i32_1 = arith.constant 0 : i32
    return %c0_i32, %c0_i32_0 : i32, i32
  }
  func.func @transform_3(%arg0: i32) -> (i32, i32) {
    %c0_i32 = arith.constant 0 : i32
    %c0_i32_0 = arith.constant 0 : i32
    %c0_i32_1 = arith.constant 0 : i32
    return %c0_i32, %c0_i32_0 : i32, i32
  }
  func.func @transform_4(%arg0: i32) -> (i32, i32, i32) {
    %c0_i32 = arith.constant 0 : i32
    %c0_i32_0 = arith.constant 0 : i32
    %c0_i32_1 = arith.constant 0 : i32
    %c0_i32_2 = arith.constant 0 : i32
    return %c0_i32, %c0_i32_0, %c0_i32_1 : i32, i32, i32
  }
  func.func @transform_5(%arg0: i32) -> (i32, i32) {
    %c0_i32 = arith.constant 0 : i32
    %c0_i32_0 = arith.constant 0 : i32
    %c0_i32_1 = arith.constant 0 : i32
    return %c0_i32, %c0_i32_0 : i32, i32
  }
  func.func @transform_6(%arg0: i32) -> (i32, i32, i32) {
    %c0_i32 = arith.constant 0 : i32
    %c0_i32_0 = arith.constant 0 : i32
    %c0_i32_1 = arith.constant 0 : i32
    return %arg0, %c0_i32, %c0_i32_0 : i32, i32, i32
  }
  func.func @transform_7(%arg0: i32) -> (i32, i32, i32) {
    %c0_i32 = arith.constant 0 : i32
    %c0_i32_0 = arith.constant 0 : i32
    %c0_i32_1 = arith.constant 0 : i32
    return %arg0, %c0_i32, %c0_i32_0 : i32, i32, i32
  }
  func.func @transform_8(%arg0: i32) -> (i32, i32, i32) {
    %c0_i32 = arith.constant 0 : i32
    %c0_i32_0 = arith.constant 0 : i32
    %c0_i32_1 = arith.constant 0 : i32
    return %arg0, %c0_i32, %c0_i32_0 : i32, i32, i32
  }
}

module attributes {stable_mosaic.version = 11 : i64} {
  func.func @_bn_conv2_kernel(%arg0: i32, %arg1: memref<1x32x128xf32, #tpu.memory_space<vmem>>, %arg2: memref<3x128x128xf32, #tpu.memory_space<vmem>>, %arg3: memref<1x128xf32, #tpu.memory_space<vmem>>, %arg4: memref<1x128xf32, #tpu.memory_space<vmem>>, %arg5: memref<1x128xf32, #tpu.memory_space<vmem>>, %arg6: memref<1x32x128xf32, #tpu.memory_space<vmem>>, %arg7: memref<34x128xf32, #tpu.memory_space<vmem>>) attributes {dimension_semantics = [#tpu.dimension_semantics<parallel>], iteration_bounds = array<i64: 2>, scalar_prefetch = 0 : i64, scratch_operands = 1 : i64, tpu.core_type = #tpu.core_type<tc>, window_params = [{transform_indices = @transform_0, window_bounds = array<i64: 1, 32, 128>}, {pipeline_mode = #tpu.pipeline_mode<synchronous>, transform_indices = @transform_1, window_bounds = array<i64: 3, 128, 128>}, {pipeline_mode = #tpu.pipeline_mode<synchronous>, transform_indices = @transform_2, window_bounds = array<i64: 1, 128>}, {pipeline_mode = #tpu.pipeline_mode<synchronous>, transform_indices = @transform_3, window_bounds = array<i64: 1, 128>}, {pipeline_mode = #tpu.pipeline_mode<synchronous>, transform_indices = @transform_4, window_bounds = array<i64: 1, 128>}, {transform_indices = @transform_5, window_bounds = array<i64: 1, 32, 128>}]} {
    %c0 = arith.constant 0 : index
    %c0_0 = arith.constant 0 : index
    %c0_1 = arith.constant 0 : index
    %0 = vector.load %arg1[%c0, %c0_0, %c0_1] : memref<1x32x128xf32, #tpu.memory_space<vmem>>, vector<1x32x128xf32>
    %1 = vector.shape_cast %0 : vector<1x32x128xf32> to vector<32x128xf32>
    %c0_2 = arith.constant 0 : index
    %c0_3 = arith.constant 0 : index
    %2 = vector.load %arg3[%c0_2, %c0_3] : memref<1x128xf32, #tpu.memory_space<vmem>>, vector<1x128xf32>
    %3 = vector.broadcast %2 : vector<1x128xf32> to vector<32x128xf32>
    %4 = arith.mulf %1, %3 : vector<32x128xf32>
    %c0_4 = arith.constant 0 : index
    %c0_5 = arith.constant 0 : index
    %5 = vector.load %arg4[%c0_4, %c0_5] : memref<1x128xf32, #tpu.memory_space<vmem>>, vector<1x128xf32>
    %6 = vector.broadcast %5 : vector<1x128xf32> to vector<32x128xf32>
    %7 = arith.addf %4, %6 : vector<32x128xf32>
    %cst = arith.constant 0.000000e+00 : f32
    %8 = vector.broadcast %cst : f32 to vector<1x128xf32>
    %c0_6 = arith.constant 0 : index
    %c0_7 = arith.constant 0 : index
    %9 = vector.load %arg7[%c0_6, %c0_7] : memref<34x128xf32, #tpu.memory_space<vmem>>, vector<1x128xf32>
    tpu.vector_store %arg7[%c0_6, %c0_7], %8 {strides = array<i32>} : memref<34x128xf32, #tpu.memory_space<vmem>>, vector<1x128xf32>,
    %c33 = arith.constant 33 : index
    %c0_8 = arith.constant 0 : index
    %10 = vector.load %arg7[%c33, %c0_8] : memref<34x128xf32, #tpu.memory_space<vmem>>, vector<1x128xf32>
    tpu.vector_store %arg7[%c33, %c0_8], %8 {strides = array<i32>} : memref<34x128xf32, #tpu.memory_space<vmem>>, vector<1x128xf32>,
    %c1 = arith.constant 1 : index
    %c0_9 = arith.constant 0 : index
    %11 = vector.load %arg7[%c1, %c0_9] : memref<34x128xf32, #tpu.memory_space<vmem>>, vector<32x128xf32>
    tpu.vector_store %arg7[%c1, %c0_9], %7 {strides = array<i32>} : memref<34x128xf32, #tpu.memory_space<vmem>>, vector<32x128xf32>,
    %c1_10 = arith.constant 1 : index
    %c0_11 = arith.constant 0 : index
    %c0_12 = arith.constant 0 : index
    %12 = vector.load %arg2[%c1_10, %c0_11, %c0_12] : memref<3x128x128xf32, #tpu.memory_space<vmem>>, vector<1x128x128xf32>
    %13 = vector.shape_cast %12 : vector<1x128x128xf32> to vector<128x128xf32>
    %cst_13 = arith.constant dense<0.000000e+00> : vector<32x128xf32>
    %14 = tpu.matmul %7, %13, %cst_13 {dimension_numbers = #tpu.dot_dimension_numbers<[1], [0], [0], [1], [0, 0, 1, 1], [], []>} : vector<32x128xf32>, vector<128x128xf32>, vector<32x128xf32> -> vector<32x128xf32>
    %c0_14 = arith.constant 0 : index
    %c0_15 = arith.constant 0 : index
    %15 = vector.load %arg7[%c0_14, %c0_15] : memref<34x128xf32, #tpu.memory_space<vmem>>, vector<32x128xf32>
    %c0_16 = arith.constant 0 : index
    %c0_17 = arith.constant 0 : index
    %c0_18 = arith.constant 0 : index
    %16 = vector.load %arg2[%c0_16, %c0_17, %c0_18] : memref<3x128x128xf32, #tpu.memory_space<vmem>>, vector<1x128x128xf32>
    %17 = vector.shape_cast %16 : vector<1x128x128xf32> to vector<128x128xf32>
    %cst_19 = arith.constant dense<0.000000e+00> : vector<32x128xf32>
    %18 = tpu.matmul %15, %17, %cst_19 {dimension_numbers = #tpu.dot_dimension_numbers<[1], [0], [0], [1], [0, 0, 1, 1], [], []>} : vector<32x128xf32>, vector<128x128xf32>, vector<32x128xf32> -> vector<32x128xf32>
    %19 = arith.addf %14, %18 : vector<32x128xf32>
    %c2 = arith.constant 2 : index
    %c0_20 = arith.constant 0 : index
    %20 = vector.load %arg7[%c2, %c0_20] : memref<34x128xf32, #tpu.memory_space<vmem>>, vector<32x128xf32>
    %c2_21 = arith.constant 2 : index
    %c0_22 = arith.constant 0 : index
    %c0_23 = arith.constant 0 : index
    %21 = vector.load %arg2[%c2_21, %c0_22, %c0_23] : memref<3x128x128xf32, #tpu.memory_space<vmem>>, vector<1x128x128xf32>
    %22 = vector.shape_cast %21 : vector<1x128x128xf32> to vector<128x128xf32>
    %cst_24 = arith.constant dense<0.000000e+00> : vector<32x128xf32>
    %23 = tpu.matmul %20, %22, %cst_24 {dimension_numbers = #tpu.dot_dimension_numbers<[1], [0], [0], [1], [0, 0, 1, 1], [], []>} : vector<32x128xf32>, vector<128x128xf32>, vector<32x128xf32> -> vector<32x128xf32>
    %24 = arith.addf %19, %23 : vector<32x128xf32>
    %c0_25 = arith.constant 0 : index
    %c0_26 = arith.constant 0 : index
    %25 = vector.load %arg5[%c0_25, %c0_26] : memref<1x128xf32, #tpu.memory_space<vmem>>, vector<1x128xf32>
    %26 = vector.broadcast %25 : vector<1x128xf32> to vector<32x128xf32>
    %27 = arith.addf %24, %26 : vector<32x128xf32>
    %cst_27 = arith.constant 0.000000e+00 : f32
    %28 = vector.broadcast %cst_27 : f32 to vector<32x128xf32>
    %29 = arith.maximumf %27, %28 : vector<32x128xf32>
    %c0_28 = arith.constant 0 : index
    %c0_29 = arith.constant 0 : index
    %c0_30 = arith.constant 0 : index
    %30 = vector.load %arg6[%c0_28, %c0_29, %c0_30] : memref<1x32x128xf32, #tpu.memory_space<vmem>>, vector<1x32x128xf32>
    %31 = vector.shape_cast %30 : vector<1x32x128xf32> to vector<32x128xf32>
    %32 = vector.shape_cast %29 : vector<32x128xf32> to vector<1x32x128xf32>
    tpu.vector_store %arg6[%c0_28, %c0_29, %c0_30], %32 {strides = array<i32>} : memref<1x32x128xf32, #tpu.memory_space<vmem>>, vector<1x32x128xf32>,
    return
  }
  func.func @transform_0(%arg0: i32) -> (i32, i32, i32) {
    %c0_i32 = arith.constant 0 : i32
    %c0_i32_0 = arith.constant 0 : i32
    %c0_i32_1 = arith.constant 0 : i32
    return %arg0, %c0_i32, %c0_i32_0 : i32, i32, i32
  }
  func.func @transform_1(%arg0: i32) -> (i32, i32, i32) {
    %c0_i32 = arith.constant 0 : i32
    %c0_i32_0 = arith.constant 0 : i32
    %c0_i32_1 = arith.constant 0 : i32
    %c0_i32_2 = arith.constant 0 : i32
    return %c0_i32, %c0_i32_0, %c0_i32_1 : i32, i32, i32
  }
  func.func @transform_2(%arg0: i32) -> (i32, i32) {
    %c0_i32 = arith.constant 0 : i32
    %c0_i32_0 = arith.constant 0 : i32
    %c0_i32_1 = arith.constant 0 : i32
    return %c0_i32, %c0_i32_0 : i32, i32
  }
  func.func @transform_3(%arg0: i32) -> (i32, i32) {
    %c0_i32 = arith.constant 0 : i32
    %c0_i32_0 = arith.constant 0 : i32
    %c0_i32_1 = arith.constant 0 : i32
    return %c0_i32, %c0_i32_0 : i32, i32
  }
  func.func @transform_4(%arg0: i32) -> (i32, i32) {
    %c0_i32 = arith.constant 0 : i32
    %c0_i32_0 = arith.constant 0 : i32
    %c0_i32_1 = arith.constant 0 : i32
    return %c0_i32, %c0_i32_0 : i32, i32
  }
  func.func @transform_5(%arg0: i32) -> (i32, i32, i32) {
    %c0_i32 = arith.constant 0 : i32
    %c0_i32_0 = arith.constant 0 : i32
    %c0_i32_1 = arith.constant 0 : i32
    return %arg0, %c0_i32, %c0_i32_0 : i32, i32, i32
  }
}

</mosaic_0001>

<llo_original>
// kernel: tile.43
$region0: #{tile.43}
  #allocation0 [shape = 's32[1]{0}', space=sflag, size = 0x4, scoped, tag = 'scoped memory for tile.43']
  %s0 = inlined_call_operand.vmem [shape: f32[8], index: 0, kind: input, shape index: {}]
  %s1 = inlined_call_operand.vmem [shape: f32[16,8], index: 1, kind: output, shape index: {}]
  // Predicated region
  $region2: #{tile.43} parent=0 // pred_check
    _
  $region3: #{tile.43} parent=0 // pred_check_branch
    %3 = sbr.rel (0) target = $region5
  $region4: #{tile.43} parent=0 // pred_region
    _
  $region5: #{tile.43} parent=0 // pred_fallthru
    _
  %v4 = vld [vmem:[%s0] ss:$0 sm:$0xff]
  %5 = vst [vmem:[%s1] sm:$0xff] %v4
  %s6 = scalar_lea.vmem %s1, 8
  %7 = vst [vmem:[%s6] sm:$0xff] %v4

// kernel: tile.44
$region0: #{tile.44}
  %s0 = inlined_call_operand.vmem [shape: f32[16,8], index: 0, kind: input, shape index: {}]
  %s1 = inlined_call_operand.vmem [shape: f32[1,128], index: 1, kind: output, shape index: {}]
  $region1: #{tile.44} parent=0
    #allocation0 [shape = 'u8[4096]{0}', space=vmem, size = 0x1000, scoped, tag = 'scoped mem for output reshape']
    %v2 = vld [vmem:[%s0] sm:$0x1]
    %vm3 = vcmask 64512
    %4 = vst.msk [vmem:[#allocation0] sm:$0x1] %vm3, %v2
    %s5 = scalar_lea.vmem %s0, 15
    %v6 = vld [vmem:[%s5] sm:$0x1]
    %7 = vrot.lane.b32.xlu0 %v6, 120
    %v8 = vpop.permute.xlu0 %7
    %vm9 = vcmask 1048512
    %10 = vst.msk [vmem:[#allocation0] sm:$0x1] %vm9, %v8
    %s11 = scalar_lea.vmem %s0, 14
    %v12 = vld [vmem:[%s11] sm:$0x1]
    %13 = vrot.lane.b32.xlu0 %v12, 112
    %v14 = vpop.permute.xlu0 %13
    %vm15 = vcmask 982912
    %16 = vst.msk [vmem:[#allocation0] sm:$0x1] %vm15, %v14
    %s17 = scalar_lea.vmem %s0, 13
    %v18 = vld [vmem:[%s17] sm:$0x1]
    %19 = vrot.lane.b32.xlu0 %v18, 104
    %v20 = vpop.permute.xlu0 %19
    %vm21 = vcmask 917312
    %22 = vst.msk [vmem:[#allocation0] sm:$0x1] %vm21, %v20
    %s23 = scalar_lea.vmem %s0, 12
    %v24 = vld [vmem:[%s23] sm:$0x1]
    %25 = vrot.lane.b32.xlu0 %v24, 96
    %v26 = vpop.permute.xlu0 %25
    %vm27 = vcmask 851712
    %28 = vst.msk [vmem:[#allocation0] sm:$0x1] %vm27, %v26
    %s29 = scalar_lea.vmem %s0, 11
    %v30 = vld [vmem:[%s29] sm:$0x1]
    %31 = vrot.lane.b32.xlu0 %v30, 88
    %v32 = vpop.permute.xlu0 %31
    %vm33 = vcmask 786112
    %34 = vst.msk [vmem:[#allocation0] sm:$0x1] %vm33, %v32
    %s35 = scalar_lea.vmem %s0, 10
    %v36 = vld [vmem:[%s35] sm:$0x1]
    %37 = vrot.lane.b32.xlu0 %v36, 80
    %v38 = vpop.permute.xlu0 %37
    %vm39 = vcmask 720512
    %40 = vst.msk [vmem:[#allocation0] sm:$0x1] %vm39, %v38
    %s41 = scalar_lea.vmem %s0, 9
    %v42 = vld [vmem:[%s41] sm:$0x1]
    %43 = vrot.lane.b32.xlu0 %v42, 72
    %v44 = vpop.permute.xlu0 %43
    %vm45 = vcmask 654912
    %46 = vst.msk [vmem:[#allocation0] sm:$0x1] %vm45, %v44
    %s47 = scalar_lea.vmem %s0, 8
    %v48 = vld [vmem:[%s47] sm:$0x1]
    %49 = vrot.lane.b32.xlu0 %v48, 64
    %v50 = vpop.permute.xlu0 %49
    %vm51 = vcmask 589312
    %52 = vst.msk [vmem:[#allocation0] sm:$0x1] %vm51, %v50
    %s53 = scalar_lea.vmem %s0, 7
    %v54 = vld [vmem:[%s53] sm:$0x1]
    %55 = vrot.lane.b32.xlu0 %v54, 56
    %v56 = vpop.permute.xlu0 %55
    %vm57 = vcmask 523712
    %58 = vst.msk [vmem:[#allocation0] sm:$0x1] %vm57, %v56
    %s59 = scalar_lea.vmem %s0, 6
    %v60 = vld [vmem:[%s59] sm:$0x1]
    %61 = vrot.lane.b32.xlu0 %v60, 48
    %v62 = vpop.permute.xlu0 %61
    %vm63 = vcmask 458112
    %64 = vst.msk [vmem:[#allocation0] sm:$0x1] %vm63, %v62
    %s65 = scalar_lea.vmem %s0, 5
    %v66 = vld [vmem:[%s65] sm:$0x1]
    %67 = vrot.lane.b32.xlu0 %v66, 40
    %v68 = vpop.permute.xlu0 %67
    %vm69 = vcmask 392512
    %70 = vst.msk [vmem:[#allocation0] sm:$0x1] %vm69, %v68
    %s71 = scalar_lea.vmem %s0, 4
    %v72 = vld [vmem:[%s71] sm:$0x1]
    %73 = vrot.lane.b32.xlu0 %v72, 32
    %v74 = vpop.permute.xlu0 %73
    %vm75 = vcmask 326912
    %76 = vst.msk [vmem:[#allocation0] sm:$0x1] %vm75, %v74
    %s77 = scalar_lea.vmem %s0, 3
    %v78 = vld [vmem:[%s77] sm:$0x1]
    %79 = vrot.lane.b32.xlu0 %v78, 24
    %v80 = vpop.permute.xlu0 %79
    %vm81 = vcmask 261312
    %82 = vst.msk [vmem:[#allocation0] sm:$0x1] %vm81, %v80
    %s83 = scalar_lea.vmem %s0, 2
    %v84 = vld [vmem:[%s83] sm:$0x1]
    %85 = vrot.lane.b32.xlu0 %v84, 16
    %v86 = vpop.permute.xlu0 %85
    %vm87 = vcmask 195712
    %88 = vst.msk [vmem:[#allocation0] sm:$0x1] %vm87, %v86
    %s89 = scalar_lea.vmem %s0, 1
    %v90 = vld [vmem:[%s89] sm:$0x1]
    %91 = vrot.lane.b32.xlu0 %v90, 8
    %v92 = vpop.permute.xlu0 %91
    %vm93 = vcmask 130112
    %94 = vst.msk [vmem:[#allocation0] sm:$0x1] %vm93, %v92
    %s96 = ssub.s32 2, 1
    %v97 = vld [vmem:[#allocation0] sm:%s96]
    %s99 = ssub.s32 2, 1
    %100 = vst [vmem:[%s1] sm:%s99] %v97

// kernel: decoder_forward.4
$region0: #{decoder_forward.4}
  #allocation0 [shape = 'u32[]', space=smem, size = 0x4, offset = 0x4, fixed_abs, tag = 'smem constant byte address 0x4 - core index']
  #allocation1 [shape = 'u32[72,128]{1,0:T(1,128)}', space=vmem, size = 0x9000, scoped, tag = 'internal scratch']
  #allocation2 [shape = 'f32[18,256]{1,0:T(8,128)}', space=vmem, size = 0x6000, scoped, tag = 'scratch operand']
  %s0 = inlined_call_operand.vmem [shape: f32[2,8,128], index: 0, kind: input, shape index: {}]
  %s1 = inlined_call_operand.vmem [shape: f32[2,16,256], index: 1, kind: input, shape index: {}]
  %s2 = inlined_call_operand.vmem [shape: f32[16,8], index: 2, kind: input, shape index: {}]
  %s3 = inlined_call_operand.vmem [shape: f32[128,256], index: 3, kind: input, shape index: {}]
  %s4 = inlined_call_operand.vmem [shape: f32[3,256,128], index: 4, kind: input, shape index: {}]
  %s5 = inlined_call_operand.vmem [shape: f32[1,128], index: 5, kind: input, shape index: {}]
  %s6 = inlined_call_operand.vmem [shape: f32[2,16,128], index: 6, kind: output, shape index: {0}]
  %s7 = inlined_call_operand.vmem [shape: f32[2,1,128], index: 7, kind: output, shape index: {1}]
  %s8 = inlined_call_operand.vmem [shape: f32[2,1,128], index: 8, kind: output, shape index: {2}]
  %9 = xla_tuple %s6, %s7, %s8
  %s10 = sld [smem:[#allocation0]]
  $region73: #{decoder_forward.4} parent=0
    _
  %s12 = ssub.s32 1, %s10
  %s13 = scalar_select 0, %s12, %s10
  loop: start=0, step=1, limit=4
  $region2: #{decoder_forward.4} parent=0 // loop_pre_header
    _
  $region3: #{decoder_forward.4} parent=0 // loop_header
    %s15 = sphi 0, %s19
    %p16 = scmp.ge.s32.totalorder %s15, 4
    %s25 = sphi 0, %s27
    %s28 = sphi 0, %s25
    %s29 = sphi 0, %s28
    %s45 = sphi 0, %s29
    %s51 = sphi 0, %s53
    %s54 = sphi 0, %s51
    %s55 = sphi 0, %s54
    %s71 = sphi 0, %s55
    %s75 = sphi 0, %s75
    %s77 = sphi 0, %s75
    %s78 = sphi 0, %s77
    %s92 = sphi 0, %s78
    %s96 = sphi 0, %s96
    %s98 = sphi 0, %s96
    %s99 = sphi 0, %s98
    %s113 = sphi 0, %s99
    %s117 = sphi 0, %s117
    %s119 = sphi 0, %s117
    %s120 = sphi 0, %s119
    %s134 = sphi 0, %s120
    %s138 = sphi 0, %s138
    %s140 = sphi 0, %s138
    %s141 = sphi 0, %s140
    %s155 = sphi 0, %s141
    %s161 = sphi 0, %s163
    %s164 = sphi 0, %s161
    %s165 = sphi 0, %s164
    %s181 = sphi 0, %s165
    %s187 = sphi 0, %s189
    %s190 = sphi 0, %s187
    %s191 = sphi 0, %s190
    %s207 = sphi 0, %s191
    %s213 = sphi 0, %s215
    %s216 = sphi 0, %s213
    %s217 = sphi 0, %s216
    %s233 = sphi 0, %s217
  $region4: #{decoder_forward.4} parent=0 // loop_header_branch
    %18 = sbr.rel (%p16) target = $region8
  $region5: #{decoder_forward.4} parent=0 // loop_body
    %s20 = ssub.s32 %s15, 1
    %s21 = ssub.s32 %s15, 2
    %s22 = sadd.s32 %s15, 1
    %s23 = ssub.s32 %s15, %s22
    %p24 = scmp.eq.s32.totalorder %s23, 0
    %s26 = sadd.s32 %s25, 1
    %s27 = scalar_select %p24, %s25, %s26
    %p30 = pneg %p24
    %p31 = scmp.eq.s32.totalorder %s15, 1
    %p32 = por %p30, %p31
    %p33 = scmp.ne.s32.totalorder %s25, %s28
    %p34 = scmp.eq.s32.totalorder %s15, 0
    %p35 = por %p33, %p34
    %p36 = scmp.ne.s32.totalorder %s25, %s28
    %p37 = scmp.eq.s32.totalorder %s20, 1
    %p38 = por %p36, %p37
    %p39 = scmp.ne.s32.totalorder %s28, %s29
    %p40 = scmp.eq.s32.totalorder %s20, 0
    %p41 = por %p39, %p40
    %p42 = scmp.ne.s32.totalorder %s28, %s29
    %p43 = scmp.eq.s32.totalorder %s21, 1
    %p44 = por %p42, %p43
    %p46 = scmp.ne.s32.totalorder %s29, %s45
    %p47 = scmp.eq.s32.totalorder %s21, 0
    %p48 = por %p46, %p47
    %s49 = ssub.s32 %s15, %s22
    %p50 = scmp.eq.s32.totalorder %s49, 0
    %s52 = sadd.s32 %s51, 1
    %s53 = scalar_select %p50, %s51, %s52
    %p56 = pneg %p50
    %p57 = scmp.eq.s32.totalorder %s15, 1
    %p58 = por %p56, %p57
    %p59 = scmp.ne.s32.totalorder %s51, %s54
    %p60 = scmp.eq.s32.totalorder %s15, 0
    %p61 = por %p59, %p60
    %p62 = scmp.ne.s32.totalorder %s51, %s54
    %p63 = scmp.eq.s32.totalorder %s20, 1
    %p64 = por %p62, %p63
    %p65 = scmp.ne.s32.totalorder %s54, %s55
    %p66 = scmp.eq.s32.totalorder %s20, 0
    %p67 = por %p65, %p66
    %p68 = scmp.ne.s32.totalorder %s54, %s55
    %p69 = scmp.eq.s32.totalorder %s21, 1
    %p70 = por %p68, %p69
    %p72 = scmp.ne.s32.totalorder %s55, %s71
    %p73 = scmp.eq.s32.totalorder %s21, 0
    %p74 = por %p72, %p73
    %s76 = sadd.s32 %s75, 1
    %p79 = scmp.eq.s32.totalorder %s15, 1
    %p80 = scmp.ne.s32.totalorder %s75, %s77
    %p81 = scmp.eq.s32.totalorder %s15, 0
    %p82 = por %p80, %p81
    %p83 = scmp.ne.s32.totalorder %s75, %s77
    %p84 = scmp.eq.s32.totalorder %s20, 1
    %p85 = por %p83, %p84
    %p86 = scmp.ne.s32.totalorder %s77, %s78
    %p87 = scmp.eq.s32.totalorder %s20, 0
    %p88 = por %p86, %p87
    %p89 = scmp.ne.s32.totalorder %s77, %s78
    %p90 = scmp.eq.s32.totalorder %s21, 1
    %p91 = por %p89, %p90
    %p93 = scmp.ne.s32.totalorder %s78, %s92
    %p94 = scmp.eq.s32.totalorder %s21, 0
    %p95 = por %p93, %p94
    %s97 = sadd.s32 %s96, 1
    %p100 = scmp.eq.s32.totalorder %s15, 1
    %p101 = scmp.ne.s32.totalorder %s96, %s98
    %p102 = scmp.eq.s32.totalorder %s15, 0
    %p103 = por %p101, %p102
    %p104 = scmp.ne.s32.totalorder %s96, %s98
    %p105 = scmp.eq.s32.totalorder %s20, 1
    %p106 = por %p104, %p105
    %p107 = scmp.ne.s32.totalorder %s98, %s99
    %p108 = scmp.eq.s32.totalorder %s20, 0
    %p109 = por %p107, %p108
    %p110 = scmp.ne.s32.totalorder %s98, %s99
    %p111 = scmp.eq.s32.totalorder %s21, 1
    %p112 = por %p110, %p111
    %p114 = scmp.ne.s32.totalorder %s99, %s113
    %p115 = scmp.eq.s32.totalorder %s21, 0
    %p116 = por %p114, %p115
    %s118 = sadd.s32 %s117, 1
    %p121 = scmp.eq.s32.totalorder %s15, 1
    %p122 = scmp.ne.s32.totalorder %s117, %s119
    %p123 = scmp.eq.s32.totalorder %s15, 0
    %p124 = por %p122, %p123
    %p125 = scmp.ne.s32.totalorder %s117, %s119
    %p126 = scmp.eq.s32.totalorder %s20, 1
    %p127 = por %p125, %p126
    %p128 = scmp.ne.s32.totalorder %s119, %s120
    %p129 = scmp.eq.s32.totalorder %s20, 0
    %p130 = por %p128, %p129
    %p131 = scmp.ne.s32.totalorder %s119, %s120
    %p132 = scmp.eq.s32.totalorder %s21, 1
    %p133 = por %p131, %p132
    %p135 = scmp.ne.s32.totalorder %s120, %s134
    %p136 = scmp.eq.s32.totalorder %s21, 0
    %p137 = por %p135, %p136
    %s139 = sadd.s32 %s138, 1
    %p142 = scmp.eq.s32.totalorder %s15, 1
    %p143 = scmp.ne.s32.totalorder %s138, %s140
    %p144 = scmp.eq.s32.totalorder %s15, 0
    %p145 = por %p143, %p144
    %p146 = scmp.ne.s32.totalorder %s138, %s140
    %p147 = scmp.eq.s32.totalorder %s20, 1
    %p148 = por %p146, %p147
    %p149 = scmp.ne.s32.totalorder %s140, %s141
    %p150 = scmp.eq.s32.totalorder %s20, 0
    %p151 = por %p149, %p150
    %p152 = scmp.ne.s32.totalorder %s140, %s141
    %p153 = scmp.eq.s32.totalorder %s21, 1
    %p154 = por %p152, %p153
    %p156 = scmp.ne.s32.totalorder %s141, %s155
    %p157 = scmp.eq.s32.totalorder %s21, 0
    %p158 = por %p156, %p157
    %s159 = ssub.s32 %s15, %s22
    %p160 = scmp.eq.s32.totalorder %s159, 0
    %s162 = sadd.s32 %s161, 1
    %s163 = scalar_select %p160, %s161, %s162
    %p166 = pneg %p160
    %p167 = scmp.eq.s32.totalorder %s15, 1
    %p168 = por %p166, %p167
    %p169 = scmp.ne.s32.totalorder %s161, %s164
    %p170 = scmp.eq.s32.totalorder %s15, 0
    %p171 = por %p169, %p170
    %p172 = scmp.ne.s32.totalorder %s161, %s164
    %p173 = scmp.eq.s32.totalorder %s20, 1
    %p174 = por %p172, %p173
    %p175 = scmp.ne.s32.totalorder %s164, %s165
    %p176 = scmp.eq.s32.totalorder %s20, 0
    %p177 = por %p175, %p176
    %p178 = scmp.ne.s32.totalorder %s164, %s165
    %p179 = scmp.eq.s32.totalorder %s21, 1
    %p180 = por %p178, %p179
    %p182 = scmp.ne.s32.totalorder %s165, %s181
    %p183 = scmp.eq.s32.totalorder %s21, 0
    %p184 = por %p182, %p183
    %s185 = ssub.s32 %s15, %s22
    %p186 = scmp.eq.s32.totalorder %s185, 0
    %s188 = sadd.s32 %s187, 1
    %s189 = scalar_select %p186, %s187, %s188
    %p192 = pneg %p186
    %p193 = scmp.eq.s32.totalorder %s15, 1
    %p194 = por %p192, %p193
    %p195 = scmp.ne.s32.totalorder %s187, %s190
    %p196 = scmp.eq.s32.totalorder %s15, 0
    %p197 = por %p195, %p196
    %p198 = scmp.ne.s32.totalorder %s187, %s190
    %p199 = scmp.eq.s32.totalorder %s20, 1
    %p200 = por %p198, %p199
    %p201 = scmp.ne.s32.totalorder %s190, %s191
    %p202 = scmp.eq.s32.totalorder %s20, 0
    %p203 = por %p201, %p202
    %p204 = scmp.ne.s32.totalorder %s190, %s191
    %p205 = scmp.eq.s32.totalorder %s21, 1
    %p206 = por %p204, %p205
    %p208 = scmp.ne.s32.totalorder %s191, %s207
    %p209 = scmp.eq.s32.totalorder %s21, 0
    %p210 = por %p208, %p209
    %s211 = ssub.s32 %s15, %s22
    %p212 = scmp.eq.s32.totalorder %s211, 0
    %s214 = sadd.s32 %s213, 1
    %s215 = scalar_select %p212, %s213, %s214
    %p218 = pneg %p212
    %p219 = scmp.eq.s32.totalorder %s15, 1
    %p220 = por %p218, %p219
    %p221 = scmp.ne.s32.totalorder %s213, %s216
    %p222 = scmp.eq.s32.totalorder %s15, 0
    %p223 = por %p221, %p222
    %p224 = scmp.ne.s32.totalorder %s213, %s216
    %p225 = scmp.eq.s32.totalorder %s20, 1
    %p226 = por %p224, %p225
    %p227 = scmp.ne.s32.totalorder %s216, %s217
    %p228 = scmp.eq.s32.totalorder %s20, 0
    %p229 = por %p227, %p228
    %p230 = scmp.ne.s32.totalorder %s216, %s217
    %p231 = scmp.eq.s32.totalorder %s21, 1
    %p232 = por %p230, %p231
    %p234 = scmp.ne.s32.totalorder %s217, %s233
    %p235 = scmp.eq.s32.totalorder %s21, 0
    %p236 = por %p234, %p235
    %p237 = scmp.le.s32.totalorder 1, %s15
    %p238 = scmp.lt.s32.totalorder %s15, 3
    %p239 = pnand %p237, %p238
    %p240 = pneg %p239
    // Predicated region
    $region9: #{decoder_forward.4} parent=5 // pred_check
      _
    $region10: #{decoder_forward.4} parent=5 // pred_check_branch
      %242 = sbr.rel (%p239) target = $region12
    $region11: #{decoder_forward.4} parent=5 // pred_region
      %s243 = ssub.s32 %s15, 1
      // Predicated region
      $region13: #{decoder_forward.4} parent=11 // pred_check
        %p244 = pneg %p88
      $region14: #{decoder_forward.4} parent=11 // pred_check_branch
        %246 = sbr.rel (%p244) target = $region16
      $region15: #{decoder_forward.4} parent=11 // pred_region
        _
      $region16: #{decoder_forward.4} parent=11 // pred_fallthru
        _
      // Predicated region
      $region17: #{decoder_forward.4} parent=11 // pred_check
        %p247 = pneg %p109
      $region18: #{decoder_forward.4} parent=11 // pred_check_branch
        %249 = sbr.rel (%p247) target = $region20
      $region19: #{decoder_forward.4} parent=11 // pred_region
        _
      $region20: #{decoder_forward.4} parent=11 // pred_fallthru
        _
      // Predicated region
      $region21: #{decoder_forward.4} parent=11 // pred_check
        %p250 = pneg %p130
      $region22: #{decoder_forward.4} parent=11 // pred_check_branch
        %252 = sbr.rel (%p250) target = $region24
      $region23: #{decoder_forward.4} parent=11 // pred_region
        _
      $region24: #{decoder_forward.4} parent=11 // pred_fallthru
        _
      // Predicated region
      $region25: #{decoder_forward.4} parent=11 // pred_check
        %p253 = pneg %p151
      $region26: #{decoder_forward.4} parent=11 // pred_check_branch
        %255 = sbr.rel (%p253) target = $region28
      $region27: #{decoder_forward.4} parent=11 // pred_region
        _
      $region28: #{decoder_forward.4} parent=11 // pred_fallthru
        _
    $region12: #{decoder_forward.4} parent=5 // pred_fallthru
      _
    %p256 = scmp.lt.s32.totalorder %s15, 2
    // Predicated region
    $region29: #{decoder_forward.4} parent=5 // pred_check
      %p257 = pneg %p256
    $region30: #{decoder_forward.4} parent=5 // pred_check_branch
      %259 = sbr.rel (%p257) target = $region32
    $region31: #{decoder_forward.4} parent=5 // pred_region
      // Predicated region
      $region33: #{decoder_forward.4} parent=31 // pred_check
        %p260 = pneg %p35
      $region34: #{decoder_forward.4} parent=31 // pred_check_branch
        %262 = sbr.rel (%p260) target = $region36
      $region35: #{decoder_forward.4} parent=31 // pred_region
        %p263 = scmp.lt.s32.totalorder %s15, 1
        %s264 = scalar_select %p263, %s15, 1
        %s265 = smul.addr %s264, 8
        %s266 = scalar_lea.vmem %s0, %s265
      $region36: #{decoder_forward.4} parent=31 // pred_fallthru
        _
      // Predicated region
      $region37: #{decoder_forward.4} parent=31 // pred_check
        %p267 = pneg %p61
      $region38: #{decoder_forward.4} parent=31 // pred_check_branch
        %269 = sbr.rel (%p267) target = $region40
      $region39: #{decoder_forward.4} parent=31 // pred_region
        %p270 = scmp.lt.s32.totalorder %s15, 1
        %s271 = scalar_select %p270, %s15, 1
        %s272 = smul.addr %s271, 4
        %s273 = smul.addr %s272, 8
        %s274 = scalar_lea.vmem %s1, %s273
      $region40: #{decoder_forward.4} parent=31 // pred_fallthru
        _
    $region32: #{decoder_forward.4} parent=5 // pred_fallthru
      _
    %p275 = scmp.le.s32.totalorder 1, %s15
    %p276 = scmp.lt.s32.totalorder %s15, 3
    %p277 = pnand %p275, %p276
    %p278 = pneg %p277
    // Predicated region
    $region41: #{decoder_forward.4} parent=5 // pred_check
      _
    $region42: #{decoder_forward.4} parent=5 // pred_check_branch
      %280 = sbr.rel (%p277) target = $region44
    $region43: #{decoder_forward.4} parent=5 // pred_region
      %s281 = ssub.s32 %s15, 1
      %p282 = scmp.lt.s32.totalorder %s20, 1
      %s283 = scalar_select %p282, %s20, 1
      %s284 = smul.addr %s283, 8
      %s285 = scalar_lea.vmem %s0, %s284
      %p286 = pneg %p41
      %p287 = pneg %p38
      %p288 = scmp.lt.s32.totalorder %s20, 1
      %s289 = scalar_select %p288, %s20, 1
      %s290 = smul.addr %s289, 4
      %s291 = smul.addr %s290, 8
      %s292 = scalar_lea.vmem %s1, %s291
      %p293 = pneg %p67
      %p294 = pneg %p64
      %p295 = pneg %p88
      %p296 = pneg %p85
      %p297 = pneg %p109
      %p298 = pneg %p106
      %p299 = pneg %p130
      %p300 = pneg %p127
      %p301 = pneg %p151
      %p302 = pneg %p148
      %p303 = pneg %p177
      %p304 = pneg %p174
      %p305 = scmp.lt.s32.totalorder %s20, 1
      %s306 = scalar_select %p305, %s20, 1
      %s307 = smul.addr %s306, 2
      %s308 = smul.addr %s307, 8
      %s309 = scalar_lea.vmem %s6, %s308
      %p310 = pneg %p203
      %p311 = pneg %p200
      %p312 = scmp.lt.s32.totalorder %s20, 1
      %s313 = scalar_select %p312, %s20, 1
      %s314 = scalar_lea.vmem %s7, %s313
      %p315 = pneg %p229
      %p316 = pneg %p226
      %p317 = scmp.lt.s32.totalorder %s20, 1
      %s318 = scalar_select %p317, %s20, 1
      %s319 = scalar_lea.vmem %s8, %s318
      %p320 = scmp.lt.s32.totalorder %s20, 1
      %s321 = scalar_select %p320, %s20, 1
      %s322 = smul.addr %s321, 8
      %s323 = scalar_lea.vmem %s0, %s322
      %p324 = scmp.lt.s32.totalorder %s20, 1
      %s325 = scalar_select %p324, %s20, 1
      %s326 = smul.addr %s325, 4
      %s327 = smul.addr %s326, 8
      %s328 = scalar_lea.vmem %s1, %s327
      %p329 = scmp.lt.s32.totalorder %s20, 1
      %s330 = scalar_select %p329, %s20, 1
      %s331 = smul.addr %s330, 2
      %s332 = smul.addr %s331, 8
      %s333 = scalar_lea.vmem %s6, %s332
      %p334 = scmp.lt.s32.totalorder %s20, 1
      %s335 = scalar_select %p334, %s20, 1
      %s336 = scalar_lea.vmem %s7, %s335
      %p337 = scmp.lt.s32.totalorder %s20, 1
      %s338 = scalar_select %p337, %s20, 1
      %s339 = scalar_lea.vmem %s8, %s338
      %v340 = vld [vmem:[%s2] sm:$0xff]
      %v341 = vld [vmem:[%s2 + $0x8] sm:$0xff]
      %v342 = vld [vmem:[%s323] sm:$0xff]
      %vm343 = vcmask 64512
      %v345 = vsel %vm343, %v340, 0
      %v348 = vsel %vm343, %v341, 0
      %350 = vmatpush.msra.mxu0 0.0
      %351 = vmatpush.msra.mxu0 0.0
      %352 = vmatpush.msra.mxu0 0.0
      %353 = vmatpush.msra.mxu0 0.0
      %354 = vmatpush.msra.mxu0 0.0
      %355 = vmatpush.msra.mxu0 0.0
      %356 = vmatpush.msra.mxu0 0.0
      %357 = vmatpush.msra.mxu0 0.0
      %358 = vmatpush.msra.mxu0 0.0
      %359 = vmatpush.msra.mxu0 0.0
      %360 = vmatpush.msra.mxu0 0.0
      %361 = vmatpush.msra.mxu0 0.0
      %362 = vmatpush.msra.mxu0 0.0
      %363 = vmatpush.msra.mxu0 0.0
      %364 = vmatpush.msra.mxu0 0.0
      %365 = vmatpush.msra.mxu0 %v342
      %366 = vmatmul.f32.gmra.mxu0 %v345
      %v367 = vpop.f32.mrf.mxu0
      %v368 = vadd.f32 0.0, %v367
      %369 = vmatmul.f32.gmra.mxu0 %v348
      %v370 = vpop.f32.mrf.mxu0
      %v371 = vadd.f32 0.0, %v370
      %372 = vdwg.mxu0
      %v373 = vld [vmem:[%s3] sm:$0xff]
      %v374 = vld [vmem:[%s3 + $0x8] sm:$0xff]
      %v375 = vld [vmem:[%s3 + $0x10] sm:$0xff]
      %v376 = vld [vmem:[%s3 + $0x18] sm:$0xff]
      %v377 = vld [vmem:[%s3 + $0x20] sm:$0xff]
      %v378 = vld [vmem:[%s3 + $0x28] sm:$0xff]
      %v379 = vld [vmem:[%s3 + $0x30] sm:$0xff]
      %v380 = vld [vmem:[%s3 + $0x38] sm:$0xff]
      %v381 = vld [vmem:[%s3 + $0x40] sm:$0xff]
      %v382 = vld [vmem:[%s3 + $0x48] sm:$0xff]
      %v383 = vld [vmem:[%s3 + $0x50] sm:$0xff]
      %v384 = vld [vmem:[%s3 + $0x58] sm:$0xff]
      %v385 = vld [vmem:[%s3 + $0x60] sm:$0xff]
      %v386 = vld [vmem:[%s3 + $0x68] sm:$0xff]
      %v387 = vld [vmem:[%s3 + $0x70] sm:$0xff]
      %v388 = vld [vmem:[%s3 + $0x78] sm:$0xff]
      %v389 = vld [vmem:[%s3 + $0x80] sm:$0xff]
      %v390 = vld [vmem:[%s3 + $0x88] sm:$0xff]
      %v391 = vld [vmem:[%s3 + $0x90] sm:$0xff]
      %v392 = vld [vmem:[%s3 + $0x98] sm:$0xff]
      %v393 = vld [vmem:[%s3 + $0xa0] sm:$0xff]
      %v394 = vld [vmem:[%s3 + $0xa8] sm:$0xff]
      %v395 = vld [vmem:[%s3 + $0xb0] sm:$0xff]
      %v396 = vld [vmem:[%s3 + $0xb8] sm:$0xff]
      %v397 = vld [vmem:[%s3 + $0xc0] sm:$0xff]
      %v398 = vld [vmem:[%s3 + $0xc8] sm:$0xff]
      %v399 = vld [vmem:[%s3 + $0xd0] sm:$0xff]
      %v400 = vld [vmem:[%s3 + $0xd8] sm:$0xff]
      %v401 = vld [vmem:[%s3 + $0xe0] sm:$0xff]
      %v402 = vld [vmem:[%s3 + $0xe8] sm:$0xff]
      %v403 = vld [vmem:[%s3 + $0xf0] sm:$0xff]
      %v404 = vld [vmem:[%s3 + $0xf8] sm:$0xff]
      %v405 = vld [vmem:[%s328] sm:$0xff]
      %v406 = vld [vmem:[%s328 + $0x8] sm:$0xff]
      %v407 = vld [vmem:[%s328 + $0x10] sm:$0xff]
      %v408 = vld [vmem:[%s328 + $0x18] sm:$0xff]
      %409 = vmatpush.msra.mxu0 %v403
      %410 = vmatpush.msra.mxu0 %v401
      %411 = vmatpush.msra.mxu0 %v399
      %412 = vmatpush.msra.mxu0 %v397
      %413 = vmatpush.msra.mxu0 %v395
      %414 = vmatpush.msra.mxu0 %v393
      %415 = vmatpush.msra.mxu0 %v391
      %416 = vmatpush.msra.mxu0 %v389
      %417 = vmatpush.msra.mxu0 %v387
      %418 = vmatpush.msra.mxu0 %v385
      %419 = vmatpush.msra.mxu0 %v383
      %420 = vmatpush.msra.mxu0 %v381
      %421 = vmatpush.msra.mxu0 %v379
      %422 = vmatpush.msra.mxu0 %v377
      %423 = vmatpush.msra.mxu0 %v375
      %424 = vmatpush.msra.mxu0 %v373
      %425 = vmatmul.f32.gmra.mxu0 %v368
      %v426 = vpop.f32.mrf.mxu0
      %v427 = vadd.f32 %v405, %v426
      %428 = vmatmul.f32.gmra.mxu0 %v371
      %v429 = vpop.f32.mrf.mxu0
      %v430 = vadd.f32 %v407, %v429
      %431 = vdwg.mxu0
      %432 = vmatpush.msra.mxu0 %v404
      %433 = vmatpush.msra.mxu0 %v402
      %434 = vmatpush.msra.mxu0 %v400
      %435 = vmatpush.msra.mxu0 %v398
      %436 = vmatpush.msra.mxu0 %v396
      %437 = vmatpush.msra.mxu0 %v394
      %438 = vmatpush.msra.mxu0 %v392
      %439 = vmatpush.msra.mxu0 %v390
      %440 = vmatpush.msra.mxu0 %v388
      %441 = vmatpush.msra.mxu0 %v386
      %442 = vmatpush.msra.mxu0 %v384
      %443 = vmatpush.msra.mxu0 %v382
      %444 = vmatpush.msra.mxu0 %v380
      %445 = vmatpush.msra.mxu0 %v378
      %446 = vmatpush.msra.mxu0 %v376
      %447 = vmatpush.msra.mxu0 %v374
      %448 = vmatmul.f32.gmra.mxu0 %v368
      %v449 = vpop.f32.mrf.mxu0
      %v450 = vadd.f32 %v406, %v449
      %451 = vmatmul.f32.gmra.mxu0 %v371
      %v452 = vpop.f32.mrf.mxu0
      %v453 = vadd.f32 %v408, %v452
      %454 = vdwg.mxu0
      %v455 = vlaneseq
      %vm456 = vcmp.ge.s32.totalorder %v455, 0
      %vm457 = vcmp.lt.s32.totalorder %v455, 256
      %vm458 = vmand %vm456, %vm457
      %459 = vst.msk [vmem:[#allocation2] ss:$8 sm:$0x3] %vm458, 0.0
      %460 = vst.msk [vmem:[#allocation2] ss:$8 sm:$0x0] %vm458, 0.0
      %s461 = scalar_lea.vmem [#allocation2], 33
      %462 = vst.msk [vmem:[%s461] ss:$8 sm:$0x3] %vm458, 0.0
      %463 = vst.msk [vmem:[%s461] ss:$8 sm:$0x0] %vm458, 0.0
      %vm468 = vcmask 1040384
      %v469 = vrot.slane %v427, 7
      %v470 = vrot.slane %v450, 7
      %v471 = vrot.slane %v430, 7
      %v472 = vsel %vm468, %v469, %v471
      %v473 = vrot.slane %v453, 7
      %v474 = vsel %vm468, %v470, %v473
      %481 = vst [vmem:[#allocation2] sm:$0xfe] %v469
      %482 = vst [vmem:[#allocation2 + $0x8] sm:$0xfe] %v470
      %483 = vst [vmem:[#allocation2 + $0x10] sm:$0xff] %v472
      %484 = vst [vmem:[#allocation2 + $0x18] sm:$0xff] %v474
      %485 = vst [vmem:[#allocation2 + $0x20] sm:$0x1] %v471
      %486 = vst [vmem:[#allocation2 + $0x28] sm:$0x1] %v473
      %s487 = scalar_lea.vmem %s4, 256
      %v488 = vld [vmem:[%s487] sm:$0xff]
      %v489 = vld [vmem:[%s487 + $0x8] sm:$0xff]
      %v490 = vld [vmem:[%s487 + $0x10] sm:$0xff]
      %v491 = vld [vmem:[%s487 + $0x18] sm:$0xff]
      %v492 = vld [vmem:[%s487 + $0x20] sm:$0xff]
      %v493 = vld [vmem:[%s487 + $0x28] sm:$0xff]
      %v494 = vld [vmem:[%s487 + $0x30] sm:$0xff]
      %v495 = vld [vmem:[%s487 + $0x38] sm:$0xff]
      %v496 = vld [vmem:[%s487 + $0x40] sm:$0xff]
      %v497 = vld [vmem:[%s487 + $0x48] sm:$0xff]
      %v498 = vld [vmem:[%s487 + $0x50] sm:$0xff]
      %v499 = vld [vmem:[%s487 + $0x58] sm:$0xff]
      %v500 = vld [vmem:[%s487 + $0x60] sm:$0xff]
      %v501 = vld [vmem:[%s487 + $0x68] sm:$0xff]
      %v502 = vld [vmem:[%s487 + $0x70] sm:$0xff]
      %v503 = vld [vmem:[%s487 + $0x78] sm:$0xff]
      %v504 = vld [vmem:[%s487 + $0x80] sm:$0xff]
      %v505 = vld [vmem:[%s487 + $0x88] sm:$0xff]
      %v506 = vld [vmem:[%s487 + $0x90] sm:$0xff]
      %v507 = vld [vmem:[%s487 + $0x98] sm:$0xff]
      %v508 = vld [vmem:[%s487 + $0xa0] sm:$0xff]
      %v509 = vld [vmem:[%s487 + $0xa8] sm:$0xff]
      %v510 = vld [vmem:[%s487 + $0xb0] sm:$0xff]
      %v511 = vld [vmem:[%s487 + $0xb8] sm:$0xff]
      %v512 = vld [vmem:[%s487 + $0xc0] sm:$0xff]
      %v513 = vld [vmem:[%s487 + $0xc8] sm:$0xff]
      %v514 = vld [vmem:[%s487 + $0xd0] sm:$0xff]
      %v515 = vld [vmem:[%s487 + $0xd8] sm:$0xff]
      %v516 = vld [vmem:[%s487 + $0xe0] sm:$0xff]
      %v517 = vld [vmem:[%s487 + $0xe8] sm:$0xff]
      %v518 = vld [vmem:[%s487 + $0xf0] sm:$0xff]
      %v519 = vld [vmem:[%s487 + $0xf8] sm:$0xff]
      %v520 = vld [vmem:[#allocation2] sm:$0xff]
      %v521 = vld [vmem:[#allocation2 + $0x8] sm:$0xff]
      %v522 = vld [vmem:[#allocation2 + $0x10] sm:$0xff]
      %v523 = vld [vmem:[#allocation2 + $0x18] sm:$0xff]
      %v524 = vld [vmem:[%s4] sm:$0xff]
      %v525 = vld [vmem:[%s4 + $0x8] sm:$0xff]
      %v526 = vld [vmem:[%s4 + $0x10] sm:$0xff]
      %v527 = vld [vmem:[%s4 + $0x18] sm:$0xff]
      %v528 = vld [vmem:[%s4 + $0x20] sm:$0xff]
      %v529 = vld [vmem:[%s4 + $0x28] sm:$0xff]
      %v530 = vld [vmem:[%s4 + $0x30] sm:$0xff]
      %v531 = vld [vmem:[%s4 + $0x38] sm:$0xff]
      %v532 = vld [vmem:[%s4 + $0x40] sm:$0xff]
      %v533 = vld [vmem:[%s4 + $0x48] sm:$0xff]
      %v534 = vld [vmem:[%s4 + $0x50] sm:$0xff]
      %v535 = vld [vmem:[%s4 + $0x58] sm:$0xff]
      %v536 = vld [vmem:[%s4 + $0x60] sm:$0xff]
      %v537 = vld [vmem:[%s4 + $0x68] sm:$0xff]
      %v538 = vld [vmem:[%s4 + $0x70] sm:$0xff]
      %v539 = vld [vmem:[%s4 + $0x78] sm:$0xff]
      %v540 = vld [vmem:[%s4 + $0x80] sm:$0xff]
      %v541 = vld [vmem:[%s4 + $0x88] sm:$0xff]
      %v542 = vld [vmem:[%s4 + $0x90] sm:$0xff]
      %v543 = vld [vmem:[%s4 + $0x98] sm:$0xff]
      %v544 = vld [vmem:[%s4 + $0xa0] sm:$0xff]
      %v545 = vld [vmem:[%s4 + $0xa8] sm:$0xff]
      %v546 = vld [vmem:[%s4 + $0xb0] sm:$0xff]
      %v547 = vld [vmem:[%s4 + $0xb8] sm:$0xff]
      %v548 = vld [vmem:[%s4 + $0xc0] sm:$0xff]
      %v549 = vld [vmem:[%s4 + $0xc8] sm:$0xff]
      %v550 = vld [vmem:[%s4 + $0xd0] sm:$0xff]
      %v551 = vld [vmem:[%s4 + $0xd8] sm:$0xff]
      %v552 = vld [vmem:[%s4 + $0xe0] sm:$0xff]
      %v553 = vld [vmem:[%s4 + $0xe8] sm:$0xff]
      %v554 = vld [vmem:[%s4 + $0xf0] sm:$0xff]
      %v555 = vld [vmem:[%s4 + $0xf8] sm:$0xff]
      %556 = vmatpush.msra.mxu0 %v539
      %557 = vmatpush.msra.mxu0 %v538
      %558 = vmatpush.msra.mxu0 %v537
      %559 = vmatpush.msra.mxu0 %v536
      %560 = vmatpush.msra.mxu0 %v535
      %561 = vmatpush.msra.mxu0 %v534
      %562 = vmatpush.msra.mxu0 %v533
      %563 = vmatpush.msra.mxu0 %v532
      %564 = vmatpush.msra.mxu0 %v531
      %565 = vmatpush.msra.mxu0 %v530
      %566 = vmatpush.msra.mxu0 %v529
      %567 = vmatpush.msra.mxu0 %v528
      %568 = vmatpush.msra.mxu0 %v527
      %569 = vmatpush.msra.mxu0 %v526
      %570 = vmatpush.msra.mxu0 %v525
      %571 = vmatpush.msra.mxu0 %v524
      %572 = vmatmul.f32.gmra.mxu0 %v520
      %v573 = vpop.f32.mrf.mxu0
      %v574 = vadd.f32 0.0, %v573
      %575 = vmatmul.f32.gmra.mxu0 %v522
      %v576 = vpop.f32.mrf.mxu0
      %v577 = vadd.f32 0.0, %v576
      %578 = vdwg.mxu0
      %579 = vmatpush.msra.mxu0 %v555
      %580 = vmatpush.msra.mxu0 %v554
      %581 = vmatpush.msra.mxu0 %v553
      %582 = vmatpush.msra.mxu0 %v552
      %583 = vmatpush.msra.mxu0 %v551
      %584 = vmatpush.msra.mxu0 %v550
      %585 = vmatpush.msra.mxu0 %v549
      %586 = vmatpush.msra.mxu0 %v548
      %587 = vmatpush.msra.mxu0 %v547
      %588 = vmatpush.msra.mxu0 %v546
      %589 = vmatpush.msra.mxu0 %v545
      %590 = vmatpush.msra.mxu0 %v544
      %591 = vmatpush.msra.mxu0 %v543
      %592 = vmatpush.msra.mxu0 %v542
      %593 = vmatpush.msra.mxu0 %v541
      %594 = vmatpush.msra.mxu0 %v540
      %595 = vmatmul.f32.gmra.mxu0 %v521
      %v596 = vpop.f32.mrf.mxu0
      %v597 = vadd.f32 %v574, %v596
      %598 = vmatmul.f32.gmra.mxu0 %v523
      %v599 = vpop.f32.mrf.mxu0
      %v600 = vadd.f32 %v577, %v599
      %601 = vdwg.mxu0
      %602 = vmatpush.msra.mxu0 %v503
      %603 = vmatpush.msra.mxu0 %v502
      %604 = vmatpush.msra.mxu0 %v501
      %605 = vmatpush.msra.mxu0 %v500
      %606 = vmatpush.msra.mxu0 %v499
      %607 = vmatpush.msra.mxu0 %v498
      %608 = vmatpush.msra.mxu0 %v497
      %609 = vmatpush.msra.mxu0 %v496
      %610 = vmatpush.msra.mxu0 %v495
      %611 = vmatpush.msra.mxu0 %v494
      %612 = vmatpush.msra.mxu0 %v493
      %613 = vmatpush.msra.mxu0 %v492
      %614 = vmatpush.msra.mxu0 %v491
      %615 = vmatpush.msra.mxu0 %v490
      %616 = vmatpush.msra.mxu0 %v489
      %617 = vmatpush.msra.mxu0 %v488
      %618 = vmatmul.f32.gmra.mxu0 %v427
      %v619 = vpop.f32.mrf.mxu0
      %v620 = vadd.f32 %v597, %v619
      %621 = vmatmul.f32.gmra.mxu0 %v430
      %v622 = vpop.f32.mrf.mxu0
      %v623 = vadd.f32 %v600, %v622
      %624 = vdwg.mxu0
      %625 = vmatpush.msra.mxu0 %v519
      %626 = vmatpush.msra.mxu0 %v518
      %627 = vmatpush.msra.mxu0 %v517
      %628 = vmatpush.msra.mxu0 %v516
      %629 = vmatpush.msra.mxu0 %v515
      %630 = vmatpush.msra.mxu0 %v514
      %631 = vmatpush.msra.mxu0 %v513
      %632 = vmatpush.msra.mxu0 %v512
      %633 = vmatpush.msra.mxu0 %v511
      %634 = vmatpush.msra.mxu0 %v510
      %635 = vmatpush.msra.mxu0 %v509
      %636 = vmatpush.msra.mxu0 %v508
      %637 = vmatpush.msra.mxu0 %v507
      %638 = vmatpush.msra.mxu0 %v506
      %639 = vmatpush.msra.mxu0 %v505
      %640 = vmatpush.msra.mxu0 %v504
      %641 = vmatmul.f32.gmra.mxu0 %v450
      %v642 = vpop.f32.mrf.mxu0
      %v643 = vadd.f32 %v620, %v642
      %644 = vmatmul.f32.gmra.mxu0 %v453
      %v645 = vpop.f32.mrf.mxu0
      %v646 = vadd.f32 %v623, %v645
      %647 = vdwg.mxu0
      %v648 = vld [vmem:[#allocation2] sm:$0xfc]
      %v649 = vld [vmem:[#allocation2 + $0x8] sm:$0xfc]
      %v650 = vld [vmem:[#allocation2 + $0x10] sm:$0xff]
      %v651 = vld [vmem:[#allocation2 + $0x18] sm:$0xff]
      %v652 = vld [vmem:[#allocation2 + $0x20] sm:$0x3]
      %v653 = vld [vmem:[#allocation2 + $0x28] sm:$0x3]
      %s654 = scalar_lea.vmem %s4, 512
      %v655 = vld [vmem:[%s654] sm:$0xff]
      %v656 = vld [vmem:[%s654 + $0x8] sm:$0xff]
      %v657 = vld [vmem:[%s654 + $0x10] sm:$0xff]
      %v658 = vld [vmem:[%s654 + $0x18] sm:$0xff]
      %v659 = vld [vmem:[%s654 + $0x20] sm:$0xff]
      %v660 = vld [vmem:[%s654 + $0x28] sm:$0xff]
      %v661 = vld [vmem:[%s654 + $0x30] sm:$0xff]
      %v662 = vld [vmem:[%s654 + $0x38] sm:$0xff]
      %v663 = vld [vmem:[%s654 + $0x40] sm:$0xff]
      %v664 = vld [vmem:[%s654 + $0x48] sm:$0xff]
      %v665 = vld [vmem:[%s654 + $0x50] sm:$0xff]
      %v666 = vld [vmem:[%s654 + $0x58] sm:$0xff]
      %v667 = vld [vmem:[%s654 + $0x60] sm:$0xff]
      %v668 = vld [vmem:[%s654 + $0x68] sm:$0xff]
      %v669 = vld [vmem:[%s654 + $0x70] sm:$0xff]
      %v670 = vld [vmem:[%s654 + $0x78] sm:$0xff]
      %v671 = vld [vmem:[%s654 + $0x80] sm:$0xff]
      %v672 = vld [vmem:[%s654 + $0x88] sm:$0xff]
      %v673 = vld [vmem:[%s654 + $0x90] sm:$0xff]
      %v674 = vld [vmem:[%s654 + $0x98] sm:$0xff]
      %v675 = vld [vmem:[%s654 + $0xa0] sm:$0xff]
      %v676 = vld [vmem:[%s654 + $0xa8] sm:$0xff]
      %v677 = vld [vmem:[%s654 + $0xb0] sm:$0xff]
      %v678 = vld [vmem:[%s654 + $0xb8] sm:$0xff]
      %v679 = vld [vmem:[%s654 + $0xc0] sm:$0xff]
      %v680 = vld [vmem:[%s654 + $0xc8] sm:$0xff]
      %v681 = vld [vmem:[%s654 + $0xd0] sm:$0xff]
      %v682 = vld [vmem:[%s654 + $0xd8] sm:$0xff]
      %v683 = vld [vmem:[%s654 + $0xe0] sm:$0xff]
      %v684 = vld [vmem:[%s654 + $0xe8] sm:$0xff]
      %v685 = vld [vmem:[%s654 + $0xf0] sm:$0xff]
      %v686 = vld [vmem:[%s654 + $0xf8] sm:$0xff]
      %vm693 = vcmask 1045504
      %v694 = vrot.slane %v648, 2
      %v695 = vrot.slane %v650, 2
      %v696 = vsel %vm693, %v694, %v695
      %v697 = vrot.slane %v649, 2
      %v698 = vrot.slane %v651, 2
      %v699 = vsel %vm693, %v697, %v698
      %v700 = vrot.slane %v652, 2
      %v701 = vsel %vm693, %v695, %v700
      %v702 = vrot.slane %v653, 2
      %v703 = vsel %vm693, %v698, %v702
      %708 = vmatpush.msra.mxu0 %v670
      %709 = vmatpush.msra.mxu0 %v669
      %710 = vmatpush.msra.mxu0 %v668
      %711 = vmatpush.msra.mxu0 %v667
      %712 = vmatpush.msra.mxu0 %v666
      %713 = vmatpush.msra.mxu0 %v665
      %714 = vmatpush.msra.mxu0 %v664
      %715 = vmatpush.msra.mxu0 %v663
      %716 = vmatpush.msra.mxu0 %v662
      %717 = vmatpush.msra.mxu0 %v661
      %718 = vmatpush.msra.mxu0 %v660
      %719 = vmatpush.msra.mxu0 %v659
      %720 = vmatpush.msra.mxu0 %v658
      %721 = vmatpush.msra.mxu0 %v657
      %722 = vmatpush.msra.mxu0 %v656
      %723 = vmatpush.msra.mxu0 %v655
      %724 = vmatmul.f32.gmra.mxu0 %v696
      %v725 = vpop.f32.mrf.mxu0
      %v726 = vadd.f32 0.0, %v725
      %727 = vmatmul.f32.gmra.mxu0 %v701
      %v728 = vpop.f32.mrf.mxu0
      %v729 = vadd.f32 0.0, %v728
      %730 = vdwg.mxu0
      %731 = vmatpush.msra.mxu0 %v686
      %732 = vmatpush.msra.mxu0 %v685
      %733 = vmatpush.msra.mxu0 %v684
      %734 = vmatpush.msra.mxu0 %v683
      %735 = vmatpush.msra.mxu0 %v682
      %736 = vmatpush.msra.mxu0 %v681
      %737 = vmatpush.msra.mxu0 %v680
      %738 = vmatpush.msra.mxu0 %v679
      %739 = vmatpush.msra.mxu0 %v678
      %740 = vmatpush.msra.mxu0 %v677
      %741 = vmatpush.msra.mxu0 %v676
      %742 = vmatpush.msra.mxu0 %v675
      %743 = vmatpush.msra.mxu0 %v674
      %744 = vmatpush.msra.mxu0 %v673
      %745 = vmatpush.msra.mxu0 %v672
      %746 = vmatpush.msra.mxu0 %v671
      %747 = vmatmul.f32.gmra.mxu0 %v699
      %v748 = vpop.f32.mrf.mxu0
      %v749 = vadd.f32 %v726, %v748
      %750 = vmatmul.f32.gmra.mxu0 %v703
      %v751 = vpop.f32.mrf.mxu0
      %v752 = vadd.f32 %v729, %v751
      %753 = vdwg.mxu0
      %v754 = vadd.f32 %v643, %v749
      %v755 = vadd.f32 %v646, %v752
      %v756 = vld [vmem:[%s5] sm:$0x1]
      %v758 = vperm.slane %v756, 0
      %v760 = vadd.f32 %v754, %v758
      %v761 = vadd.f32 %v755, %v758
      %v762 = vmax.f32 %v760, 0.0
      %v763 = vmax.f32 %v761, 0.0
      %764 = vst [vmem:[%s333] sm:$0xff] %v762
      %765 = vst [vmem:[%s333 + $0x8] sm:$0xff] %v763
      %v766 = vadd.f32 %v762, %v763
      %v767 = vrot.slane %v766, 4
      %v768 = vadd.f32 %v766, %v767
      %v769 = vrot.slane %v768, 2
      %v770 = vadd.f32 %v768, %v769
      %v771 = vrot.slane %v770, 1
      %v772 = vadd.f32 %v770, %v771
      %773 = vst [vmem:[%s336] sm:$0x1] %v772
      %v774 = vmul.f32 %v762, %v762
      %v775 = vmul.f32 %v763, %v763
      %v776 = vadd.f32 %v774, %v775
      %v777 = vrot.slane %v776, 4
      %v778 = vadd.f32 %v776, %v777
      %v779 = vrot.slane %v778, 2
      %v780 = vadd.f32 %v778, %v779
      %v781 = vrot.slane %v780, 1
      %v782 = vadd.f32 %v780, %v781
      %783 = vst [vmem:[%s339] sm:$0x1] %v782
      %p784 = scmp.lt.s32.totalorder %s20, 1
      %s785 = scalar_select %p784, %s20, 1
      %s786 = smul.addr %s785, 2
      %s787 = smul.addr %s786, 8
      %s788 = scalar_lea.vmem %s6, %s787
      %p789 = scmp.lt.s32.totalorder %s20, 1
      %s790 = scalar_select %p789, %s20, 1
      %s791 = scalar_lea.vmem %s7, %s790
      %p792 = scmp.lt.s32.totalorder %s20, 1
      %s793 = scalar_select %p792, %s20, 1
      %s794 = scalar_lea.vmem %s8, %s793
      // Predicated region
      $region45: #{decoder_forward.4} parent=43 // pred_check
        %p795 = pneg %p174
      $region46: #{decoder_forward.4} parent=43 // pred_check_branch
        %797 = sbr.rel (%p795) target = $region48
      $region47: #{decoder_forward.4} parent=43 // pred_region
        _
      $region48: #{decoder_forward.4} parent=43 // pred_fallthru
        _
      // Predicated region
      $region49: #{decoder_forward.4} parent=43 // pred_check
        %p798 = pneg %p200
      $region50: #{decoder_forward.4} parent=43 // pred_check_branch
        %800 = sbr.rel (%p798) target = $region52
      $region51: #{decoder_forward.4} parent=43 // pred_region
        _
      $region52: #{decoder_forward.4} parent=43 // pred_fallthru
        _
      // Predicated region
      $region53: #{decoder_forward.4} parent=43 // pred_check
        %p801 = pneg %p226
      $region54: #{decoder_forward.4} parent=43 // pred_check_branch
        %803 = sbr.rel (%p801) target = $region56
      $region55: #{decoder_forward.4} parent=43 // pred_region
        _
      $region56: #{decoder_forward.4} parent=43 // pred_fallthru
        _
    $region44: #{decoder_forward.4} parent=5 // pred_fallthru
      _
    %p804 = scmp.le.s32.totalorder 2, %s15
    // Predicated region
    $region57: #{decoder_forward.4} parent=5 // pred_check
      %p805 = pneg %p804
    $region58: #{decoder_forward.4} parent=5 // pred_check_branch
      %807 = sbr.rel (%p805) target = $region60
    $region59: #{decoder_forward.4} parent=5 // pred_region
      %s808 = ssub.s32 %s15, 2
      // Predicated region
      $region61: #{decoder_forward.4} parent=59 // pred_check
        %p809 = pneg %p180
      $region62: #{decoder_forward.4} parent=59 // pred_check_branch
        %811 = sbr.rel (%p809) target = $region64
      $region63: #{decoder_forward.4} parent=59 // pred_region
        %p812 = scmp.lt.s32.totalorder %s21, 1
        %s813 = scalar_select %p812, %s21, 1
        %s814 = smul.addr %s813, 2
        %s815 = smul.addr %s814, 8
        %s816 = scalar_lea.vmem %s6, %s815
      $region64: #{decoder_forward.4} parent=59 // pred_fallthru
        _
      // Predicated region
      $region65: #{decoder_forward.4} parent=59 // pred_check
        %p817 = pneg %p206
      $region66: #{decoder_forward.4} parent=59 // pred_check_branch
        %819 = sbr.rel (%p817) target = $region68
      $region67: #{decoder_forward.4} parent=59 // pred_region
        %p820 = scmp.lt.s32.totalorder %s21, 1
        %s821 = scalar_select %p820, %s21, 1
        %s822 = scalar_lea.vmem %s7, %s821
      $region68: #{decoder_forward.4} parent=59 // pred_fallthru
        _
      // Predicated region
      $region69: #{decoder_forward.4} parent=59 // pred_check
        %p823 = pneg %p232
      $region70: #{decoder_forward.4} parent=59 // pred_check_branch
        %825 = sbr.rel (%p823) target = $region72
      $region71: #{decoder_forward.4} parent=59 // pred_region
        %p826 = scmp.lt.s32.totalorder %s21, 1
        %s827 = scalar_select %p826, %s21, 1
        %s828 = scalar_lea.vmem %s8, %s827
      $region72: #{decoder_forward.4} parent=59 // pred_fallthru
        _
    $region60: #{decoder_forward.4} parent=5 // pred_fallthru
      _
  $region6: #{decoder_forward.4} parent=0 // loop_footer
    %s19 = sadd.s32 1, %s15
  $region7: #{decoder_forward.4} parent=0 // loop_footer_branch
    %14 = sbr.rel target = $region3
  $region8: #{decoder_forward.4} parent=0 // loop_exit
    _

// kernel: decoder_forward.5
$region0: #{decoder_forward.5}
  #allocation0 [shape = 'u32[]', space=smem, size = 0x4, offset = 0x4, fixed_abs, tag = 'smem constant byte address 0x4 - core index']
  #allocation1 [shape = 'u32[72,128]{1,0:T(1,128)}', space=vmem, size = 0x9000, scoped, tag = 'internal scratch']
  #allocation2 [shape = 'f32[18,128]{1,0:T(8,128)}', space=vmem, size = 0x3000, scoped, tag = 'scratch operand']
  %s0 = inlined_call_operand.vmem [shape: f32[2,16,128], index: 0, kind: input, shape index: {}]
  %s1 = inlined_call_operand.vmem [shape: f32[3,128,128], index: 1, kind: input, shape index: {}]
  %s2 = inlined_call_operand.vmem [shape: f32[1,128], index: 2, kind: input, shape index: {}]
  %s3 = inlined_call_operand.vmem [shape: f32[1,128], index: 3, kind: input, shape index: {}]
  %s4 = inlined_call_operand.vmem [shape: f32[1,128], index: 4, kind: input, shape index: {}]
  %s5 = inlined_call_operand.vmem [shape: f32[2,16,128], index: 5, kind: output, shape index: {}]
  %s6 = sld [smem:[#allocation0]]
  $region53: #{decoder_forward.5} parent=0
    _
  %s8 = ssub.s32 1, %s6
  %s9 = scalar_select 0, %s8, %s6
  loop: start=0, step=1, limit=4
  $region2: #{decoder_forward.5} parent=0 // loop_pre_header
    _
  $region3: #{decoder_forward.5} parent=0 // loop_header
    %s11 = sphi 0, %s15
    %p12 = scmp.ge.s32.totalorder %s11, 4
    %s21 = sphi 0, %s23
    %s24 = sphi 0, %s21
    %s25 = sphi 0, %s24
    %s41 = sphi 0, %s25
    %s45 = sphi 0, %s45
    %s47 = sphi 0, %s45
    %s48 = sphi 0, %s47
    %s62 = sphi 0, %s48
    %s66 = sphi 0, %s66
    %s68 = sphi 0, %s66
    %s69 = sphi 0, %s68
    %s83 = sphi 0, %s69
    %s87 = sphi 0, %s87
    %s89 = sphi 0, %s87
    %s90 = sphi 0, %s89
    %s104 = sphi 0, %s90
    %s108 = sphi 0, %s108
    %s110 = sphi 0, %s108
    %s111 = sphi 0, %s110
    %s125 = sphi 0, %s111
    %s131 = sphi 0, %s133
    %s134 = sphi 0, %s131
    %s135 = sphi 0, %s134
    %s151 = sphi 0, %s135
  $region4: #{decoder_forward.5} parent=0 // loop_header_branch
    %14 = sbr.rel (%p12) target = $region8
  $region5: #{decoder_forward.5} parent=0 // loop_body
    %s16 = ssub.s32 %s11, 1
    %s17 = ssub.s32 %s11, 2
    %s18 = sadd.s32 %s11, 1
    %s19 = ssub.s32 %s11, %s18
    %p20 = scmp.eq.s32.totalorder %s19, 0
    %s22 = sadd.s32 %s21, 1
    %s23 = scalar_select %p20, %s21, %s22
    %p26 = pneg %p20
    %p27 = scmp.eq.s32.totalorder %s11, 1
    %p28 = por %p26, %p27
    %p29 = scmp.ne.s32.totalorder %s21, %s24
    %p30 = scmp.eq.s32.totalorder %s11, 0
    %p31 = por %p29, %p30
    %p32 = scmp.ne.s32.totalorder %s21, %s24
    %p33 = scmp.eq.s32.totalorder %s16, 1
    %p34 = por %p32, %p33
    %p35 = scmp.ne.s32.totalorder %s24, %s25
    %p36 = scmp.eq.s32.totalorder %s16, 0
    %p37 = por %p35, %p36
    %p38 = scmp.ne.s32.totalorder %s24, %s25
    %p39 = scmp.eq.s32.totalorder %s17, 1
    %p40 = por %p38, %p39
    %p42 = scmp.ne.s32.totalorder %s25, %s41
    %p43 = scmp.eq.s32.totalorder %s17, 0
    %p44 = por %p42, %p43
    %s46 = sadd.s32 %s45, 1
    %p49 = scmp.eq.s32.totalorder %s11, 1
    %p50 = scmp.ne.s32.totalorder %s45, %s47
    %p51 = scmp.eq.s32.totalorder %s11, 0
    %p52 = por %p50, %p51
    %p53 = scmp.ne.s32.totalorder %s45, %s47
    %p54 = scmp.eq.s32.totalorder %s16, 1
    %p55 = por %p53, %p54
    %p56 = scmp.ne.s32.totalorder %s47, %s48
    %p57 = scmp.eq.s32.totalorder %s16, 0
    %p58 = por %p56, %p57
    %p59 = scmp.ne.s32.totalorder %s47, %s48
    %p60 = scmp.eq.s32.totalorder %s17, 1
    %p61 = por %p59, %p60
    %p63 = scmp.ne.s32.totalorder %s48, %s62
    %p64 = scmp.eq.s32.totalorder %s17, 0
    %p65 = por %p63, %p64
    %s67 = sadd.s32 %s66, 1
    %p70 = scmp.eq.s32.totalorder %s11, 1
    %p71 = scmp.ne.s32.totalorder %s66, %s68
    %p72 = scmp.eq.s32.totalorder %s11, 0
    %p73 = por %p71, %p72
    %p74 = scmp.ne.s32.totalorder %s66, %s68
    %p75 = scmp.eq.s32.totalorder %s16, 1
    %p76 = por %p74, %p75
    %p77 = scmp.ne.s32.totalorder %s68, %s69
    %p78 = scmp.eq.s32.totalorder %s16, 0
    %p79 = por %p77, %p78
    %p80 = scmp.ne.s32.totalorder %s68, %s69
    %p81 = scmp.eq.s32.totalorder %s17, 1
    %p82 = por %p80, %p81
    %p84 = scmp.ne.s32.totalorder %s69, %s83
    %p85 = scmp.eq.s32.totalorder %s17, 0
    %p86 = por %p84, %p85
    %s88 = sadd.s32 %s87, 1
    %p91 = scmp.eq.s32.totalorder %s11, 1
    %p92 = scmp.ne.s32.totalorder %s87, %s89
    %p93 = scmp.eq.s32.totalorder %s11, 0
    %p94 = por %p92, %p93
    %p95 = scmp.ne.s32.totalorder %s87, %s89
    %p96 = scmp.eq.s32.totalorder %s16, 1
    %p97 = por %p95, %p96
    %p98 = scmp.ne.s32.totalorder %s89, %s90
    %p99 = scmp.eq.s32.totalorder %s16, 0
    %p100 = por %p98, %p99
    %p101 = scmp.ne.s32.totalorder %s89, %s90
    %p102 = scmp.eq.s32.totalorder %s17, 1
    %p103 = por %p101, %p102
    %p105 = scmp.ne.s32.totalorder %s90, %s104
    %p106 = scmp.eq.s32.totalorder %s17, 0
    %p107 = por %p105, %p106
    %s109 = sadd.s32 %s108, 1
    %p112 = scmp.eq.s32.totalorder %s11, 1
    %p113 = scmp.ne.s32.totalorder %s108, %s110
    %p114 = scmp.eq.s32.totalorder %s11, 0
    %p115 = por %p113, %p114
    %p116 = scmp.ne.s32.totalorder %s108, %s110
    %p117 = scmp.eq.s32.totalorder %s16, 1
    %p118 = por %p116, %p117
    %p119 = scmp.ne.s32.totalorder %s110, %s111
    %p120 = scmp.eq.s32.totalorder %s16, 0
    %p121 = por %p119, %p120
    %p122 = scmp.ne.s32.totalorder %s110, %s111
    %p123 = scmp.eq.s32.totalorder %s17, 1
    %p124 = por %p122, %p123
    %p126 = scmp.ne.s32.totalorder %s111, %s125
    %p127 = scmp.eq.s32.totalorder %s17, 0
    %p128 = por %p126, %p127
    %s129 = ssub.s32 %s11, %s18
    %p130 = scmp.eq.s32.totalorder %s129, 0
    %s132 = sadd.s32 %s131, 1
    %s133 = scalar_select %p130, %s131, %s132
    %p136 = pneg %p130
    %p137 = scmp.eq.s32.totalorder %s11, 1
    %p138 = por %p136, %p137
    %p139 = scmp.ne.s32.totalorder %s131, %s134
    %p140 = scmp.eq.s32.totalorder %s11, 0
    %p141 = por %p139, %p140
    %p142 = scmp.ne.s32.totalorder %s131, %s134
    %p143 = scmp.eq.s32.totalorder %s16, 1
    %p144 = por %p142, %p143
    %p145 = scmp.ne.s32.totalorder %s134, %s135
    %p146 = scmp.eq.s32.totalorder %s16, 0
    %p147 = por %p145, %p146
    %p148 = scmp.ne.s32.totalorder %s134, %s135
    %p149 = scmp.eq.s32.totalorder %s17, 1
    %p150 = por %p148, %p149
    %p152 = scmp.ne.s32.totalorder %s135, %s151
    %p153 = scmp.eq.s32.totalorder %s17, 0
    %p154 = por %p152, %p153
    %p155 = scmp.le.s32.totalorder 1, %s11
    %p156 = scmp.lt.s32.totalorder %s11, 3
    %p157 = pnand %p155, %p156
    %p158 = pneg %p157
    // Predicated region
    $region9: #{decoder_forward.5} parent=5 // pred_check
      _
    $region10: #{decoder_forward.5} parent=5 // pred_check_branch
      %160 = sbr.rel (%p157) target = $region12
    $region11: #{decoder_forward.5} parent=5 // pred_region
      %s161 = ssub.s32 %s11, 1
      // Predicated region
      $region13: #{decoder_forward.5} parent=11 // pred_check
        %p162 = pneg %p58
      $region14: #{decoder_forward.5} parent=11 // pred_check_branch
        %164 = sbr.rel (%p162) target = $region16
      $region15: #{decoder_forward.5} parent=11 // pred_region
        _
      $region16: #{decoder_forward.5} parent=11 // pred_fallthru
        _
      // Predicated region
      $region17: #{decoder_forward.5} parent=11 // pred_check
        %p165 = pneg %p79
      $region18: #{decoder_forward.5} parent=11 // pred_check_branch
        %167 = sbr.rel (%p165) target = $region20
      $region19: #{decoder_forward.5} parent=11 // pred_region
        _
      $region20: #{decoder_forward.5} parent=11 // pred_fallthru
        _
      // Predicated region
      $region21: #{decoder_forward.5} parent=11 // pred_check
        %p168 = pneg %p100
      $region22: #{decoder_forward.5} parent=11 // pred_check_branch
        %170 = sbr.rel (%p168) target = $region24
      $region23: #{decoder_forward.5} parent=11 // pred_region
        _
      $region24: #{decoder_forward.5} parent=11 // pred_fallthru
        _
      // Predicated region
      $region25: #{decoder_forward.5} parent=11 // pred_check
        %p171 = pneg %p121
      $region26: #{decoder_forward.5} parent=11 // pred_check_branch
        %173 = sbr.rel (%p171) target = $region28
      $region27: #{decoder_forward.5} parent=11 // pred_region
        _
      $region28: #{decoder_forward.5} parent=11 // pred_fallthru
        _
    $region12: #{decoder_forward.5} parent=5 // pred_fallthru
      _
    %p174 = scmp.lt.s32.totalorder %s11, 2
    // Predicated region
    $region29: #{decoder_forward.5} parent=5 // pred_check
      %p175 = pneg %p174
    $region30: #{decoder_forward.5} parent=5 // pred_check_branch
      %177 = sbr.rel (%p175) target = $region32
    $region31: #{decoder_forward.5} parent=5 // pred_region
      // Predicated region
      $region33: #{decoder_forward.5} parent=31 // pred_check
        %p178 = pneg %p31
      $region34: #{decoder_forward.5} parent=31 // pred_check_branch
        %180 = sbr.rel (%p178) target = $region36
      $region35: #{decoder_forward.5} parent=31 // pred_region
        %p181 = scmp.lt.s32.totalorder %s11, 1
        %s182 = scalar_select %p181, %s11, 1
        %s183 = smul.addr %s182, 2
        %s184 = smul.addr %s183, 8
        %s185 = scalar_lea.vmem %s0, %s184
      $region36: #{decoder_forward.5} parent=31 // pred_fallthru
        _
    $region32: #{decoder_forward.5} parent=5 // pred_fallthru
      _
    %p186 = scmp.le.s32.totalorder 1, %s11
    %p187 = scmp.lt.s32.totalorder %s11, 3
    %p188 = pnand %p186, %p187
    %p189 = pneg %p188
    // Predicated region
    $region37: #{decoder_forward.5} parent=5 // pred_check
      _
    $region38: #{decoder_forward.5} parent=5 // pred_check_branch
      %191 = sbr.rel (%p188) target = $region40
    $region39: #{decoder_forward.5} parent=5 // pred_region
      %s192 = ssub.s32 %s11, 1
      %p193 = scmp.lt.s32.totalorder %s16, 1
      %s194 = scalar_select %p193, %s16, 1
      %s195 = smul.addr %s194, 2
      %s196 = smul.addr %s195, 8
      %s197 = scalar_lea.vmem %s0, %s196
      %p198 = pneg %p37
      %p199 = pneg %p34
      %p200 = pneg %p58
      %p201 = pneg %p55
      %p202 = pneg %p79
      %p203 = pneg %p76
      %p204 = pneg %p100
      %p205 = pneg %p97
      %p206 = pneg %p121
      %p207 = pneg %p118
      %p208 = pneg %p147
      %p209 = pneg %p144
      %p210 = scmp.lt.s32.totalorder %s16, 1
      %s211 = scalar_select %p210, %s16, 1
      %s212 = smul.addr %s211, 2
      %s213 = smul.addr %s212, 8
      %s214 = scalar_lea.vmem %s5, %s213
      %p215 = scmp.lt.s32.totalorder %s16, 1
      %s216 = scalar_select %p215, %s16, 1
      %s217 = smul.addr %s216, 2
      %s218 = smul.addr %s217, 8
      %s219 = scalar_lea.vmem %s0, %s218
      %p220 = scmp.lt.s32.totalorder %s16, 1
      %s221 = scalar_select %p220, %s16, 1
      %s222 = smul.addr %s221, 2
      %s223 = smul.addr %s222, 8
      %s224 = scalar_lea.vmem %s5, %s223
      %v225 = vld [vmem:[%s219] sm:$0xff]
      %v226 = vld [vmem:[%s219 + $0x8] sm:$0xff]
      %v227 = vld [vmem:[%s2] sm:$0x1]
      %v229 = vperm.slane %v227, 0
      %v231 = vmul.f32 %v225, %v229
      %v232 = vmul.f32 %v226, %v229
      %v233 = vld [vmem:[%s3] sm:$0x1]
      %v235 = vperm.slane %v233, 0
      %v237 = vadd.f32 %v231, %v235
      %v238 = vadd.f32 %v232, %v235
      %239 = vst [vmem:[#allocation2] sm:$0x1] 0.0
      %240 = vst [vmem:[#allocation2 + $0x11] sm:$0x1] 0.0
      %241 = vst [vmem:[#allocation2 + $0x1] sm:$0xff] %v237
      %242 = vst [vmem:[#allocation2 + $0x9] sm:$0xff] %v238
      %s243 = scalar_lea.vmem %s1, 128
      %v244 = vld [vmem:[%s243] sm:$0xff]
      %v245 = vld [vmem:[%s243 + $0x8] sm:$0xff]
      %v246 = vld [vmem:[%s243 + $0x10] sm:$0xff]
      %v247 = vld [vmem:[%s243 + $0x18] sm:$0xff]
      %v248 = vld [vmem:[%s243 + $0x20] sm:$0xff]
      %v249 = vld [vmem:[%s243 + $0x28] sm:$0xff]
      %v250 = vld [vmem:[%s243 + $0x30] sm:$0xff]
      %v251 = vld [vmem:[%s243 + $0x38] sm:$0xff]
      %v252 = vld [vmem:[%s243 + $0x40] sm:$0xff]
      %v253 = vld [vmem:[%s243 + $0x48] sm:$0xff]
      %v254 = vld [vmem:[%s243 + $0x50] sm:$0xff]
      %v255 = vld [vmem:[%s243 + $0x58] sm:$0xff]
      %v256 = vld [vmem:[%s243 + $0x60] sm:$0xff]
      %v257 = vld [vmem:[%s243 + $0x68] sm:$0xff]
      %v258 = vld [vmem:[%s243 + $0x70] sm:$0xff]
      %v259 = vld [vmem:[%s243 + $0x78] sm:$0xff]
      %v260 = vld [vmem:[#allocation2] sm:$0xff]
      %v261 = vld [vmem:[#allocation2 + $0x8] sm:$0xff]
      %v262 = vld [vmem:[%s1] sm:$0xff]
      %v263 = vld [vmem:[%s1 + $0x8] sm:$0xff]
      %v264 = vld [vmem:[%s1 + $0x10] sm:$0xff]
      %v265 = vld [vmem:[%s1 + $0x18] sm:$0xff]
      %v266 = vld [vmem:[%s1 + $0x20] sm:$0xff]
      %v267 = vld [vmem:[%s1 + $0x28] sm:$0xff]
      %v268 = vld [vmem:[%s1 + $0x30] sm:$0xff]
      %v269 = vld [vmem:[%s1 + $0x38] sm:$0xff]
      %v270 = vld [vmem:[%s1 + $0x40] sm:$0xff]
      %v271 = vld [vmem:[%s1 + $0x48] sm:$0xff]
      %v272 = vld [vmem:[%s1 + $0x50] sm:$0xff]
      %v273 = vld [vmem:[%s1 + $0x58] sm:$0xff]
      %v274 = vld [vmem:[%s1 + $0x60] sm:$0xff]
      %v275 = vld [vmem:[%s1 + $0x68] sm:$0xff]
      %v276 = vld [vmem:[%s1 + $0x70] sm:$0xff]
      %v277 = vld [vmem:[%s1 + $0x78] sm:$0xff]
      %278 = vmatpush.msra.mxu0 %v277
      %279 = vmatpush.msra.mxu0 %v276
      %280 = vmatpush.msra.mxu0 %v275
      %281 = vmatpush.msra.mxu0 %v274
      %282 = vmatpush.msra.mxu0 %v273
      %283 = vmatpush.msra.mxu0 %v272
      %284 = vmatpush.msra.mxu0 %v271
      %285 = vmatpush.msra.mxu0 %v270
      %286 = vmatpush.msra.mxu0 %v269
      %287 = vmatpush.msra.mxu0 %v268
      %288 = vmatpush.msra.mxu0 %v267
      %289 = vmatpush.msra.mxu0 %v266
      %290 = vmatpush.msra.mxu0 %v265
      %291 = vmatpush.msra.mxu0 %v264
      %292 = vmatpush.msra.mxu0 %v263
      %293 = vmatpush.msra.mxu0 %v262
      %294 = vmatmul.f32.gmra.mxu0 %v260
      %v295 = vpop.f32.mrf.mxu0
      %v296 = vadd.f32 0.0, %v295
      %297 = vmatmul.f32.gmra.mxu0 %v261
      %v298 = vpop.f32.mrf.mxu0
      %v299 = vadd.f32 0.0, %v298
      %300 = vdwg.mxu0
      %301 = vmatpush.msra.mxu0 %v259
      %302 = vmatpush.msra.mxu0 %v258
      %303 = vmatpush.msra.mxu0 %v257
      %304 = vmatpush.msra.mxu0 %v256
      %305 = vmatpush.msra.mxu0 %v255
      %306 = vmatpush.msra.mxu0 %v254
      %307 = vmatpush.msra.mxu0 %v253
      %308 = vmatpush.msra.mxu0 %v252
      %309 = vmatpush.msra.mxu0 %v251
      %310 = vmatpush.msra.mxu0 %v250
      %311 = vmatpush.msra.mxu0 %v249
      %312 = vmatpush.msra.mxu0 %v248
      %313 = vmatpush.msra.mxu0 %v247
      %314 = vmatpush.msra.mxu0 %v246
      %315 = vmatpush.msra.mxu0 %v245
      %316 = vmatpush.msra.mxu0 %v244
      %317 = vmatmul.f32.gmra.mxu0 %v237
      %v318 = vpop.f32.mrf.mxu0
      %v319 = vadd.f32 %v296, %v318
      %320 = vmatmul.f32.gmra.mxu0 %v238
      %v321 = vpop.f32.mrf.mxu0
      %v322 = vadd.f32 %v299, %v321
      %323 = vdwg.mxu0
      %v324 = vld [vmem:[#allocation2 + $0x2] sm:$0xff]
      %v325 = vld [vmem:[#allocation2 + $0xa] sm:$0xff]
      %s326 = scalar_lea.vmem %s1, 256
      %v327 = vld [vmem:[%s326] sm:$0xff]
      %v328 = vld [vmem:[%s326 + $0x8] sm:$0xff]
      %v329 = vld [vmem:[%s326 + $0x10] sm:$0xff]
      %v330 = vld [vmem:[%s326 + $0x18] sm:$0xff]
      %v331 = vld [vmem:[%s326 + $0x20] sm:$0xff]
      %v332 = vld [vmem:[%s326 + $0x28] sm:$0xff]
      %v333 = vld [vmem:[%s326 + $0x30] sm:$0xff]
      %v334 = vld [vmem:[%s326 + $0x38] sm:$0xff]
      %v335 = vld [vmem:[%s326 + $0x40] sm:$0xff]
      %v336 = vld [vmem:[%s326 + $0x48] sm:$0xff]
      %v337 = vld [vmem:[%s326 + $0x50] sm:$0xff]
      %v338 = vld [vmem:[%s326 + $0x58] sm:$0xff]
      %v339 = vld [vmem:[%s326 + $0x60] sm:$0xff]
      %v340 = vld [vmem:[%s326 + $0x68] sm:$0xff]
      %v341 = vld [vmem:[%s326 + $0x70] sm:$0xff]
      %v342 = vld [vmem:[%s326 + $0x78] sm:$0xff]
      %343 = vmatpush.msra.mxu0 %v342
      %344 = vmatpush.msra.mxu0 %v341
      %345 = vmatpush.msra.mxu0 %v340
      %346 = vmatpush.msra.mxu0 %v339
      %347 = vmatpush.msra.mxu0 %v338
      %348 = vmatpush.msra.mxu0 %v337
      %349 = vmatpush.msra.mxu0 %v336
      %350 = vmatpush.msra.mxu0 %v335
      %351 = vmatpush.msra.mxu0 %v334
      %352 = vmatpush.msra.mxu0 %v333
      %353 = vmatpush.msra.mxu0 %v332
      %354 = vmatpush.msra.mxu0 %v331
      %355 = vmatpush.msra.mxu0 %v330
      %356 = vmatpush.msra.mxu0 %v329
      %357 = vmatpush.msra.mxu0 %v328
      %358 = vmatpush.msra.mxu0 %v327
      %359 = vmatmul.f32.gmra.mxu0 %v324
      %v360 = vpop.f32.mrf.mxu0
      %v361 = vadd.f32 0.0, %v360
      %362 = vmatmul.f32.gmra.mxu0 %v325
      %v363 = vpop.f32.mrf.mxu0
      %v364 = vadd.f32 0.0, %v363
      %365 = vdwg.mxu0
      %v366 = vadd.f32 %v319, %v361
      %v367 = vadd.f32 %v322, %v364
      %v368 = vld [vmem:[%s4] sm:$0x1]
      %v370 = vperm.slane %v368, 0
      %v372 = vadd.f32 %v366, %v370
      %v373 = vadd.f32 %v367, %v370
      %v374 = vmax.f32 %v372, 0.0
      %v375 = vmax.f32 %v373, 0.0
      %376 = vst [vmem:[%s224] sm:$0xff] %v374
      %377 = vst [vmem:[%s224 + $0x8] sm:$0xff] %v375
      %p378 = scmp.lt.s32.totalorder %s16, 1
      %s379 = scalar_select %p378, %s16, 1
      %s380 = smul.addr %s379, 2
      %s381 = smul.addr %s380, 8
      %s382 = scalar_lea.vmem %s5, %s381
      // Predicated region
      $region41: #{decoder_forward.5} parent=39 // pred_check
        %p383 = pneg %p144
      $region42: #{decoder_forward.5} parent=39 // pred_check_branch
        %385 = sbr.rel (%p383) target = $region44
      $region43: #{decoder_forward.5} parent=39 // pred_region
        _
      $region44: #{decoder_forward.5} parent=39 // pred_fallthru
        _
    $region40: #{decoder_forward.5} parent=5 // pred_fallthru
      _
    %p386 = scmp.le.s32.totalorder 2, %s11
    // Predicated region
    $region45: #{decoder_forward.5} parent=5 // pred_check
      %p387 = pneg %p386
    $region46: #{decoder_forward.5} parent=5 // pred_check_branch
      %389 = sbr.rel (%p387) target = $region48
    $region47: #{decoder_forward.5} parent=5 // pred_region
      %s390 = ssub.s32 %s11, 2
      // Predicated region
      $region49: #{decoder_forward.5} parent=47 // pred_check
        %p391 = pneg %p150
      $region50: #{decoder_forward.5} parent=47 // pred_check_branch
        %393 = sbr.rel (%p391) target = $region52
      $region51: #{decoder_forward.5} parent=47 // pred_region
        %p394 = scmp.lt.s32.totalorder %s17, 1
        %s395 = scalar_select %p394, %s17, 1
        %s396 = smul.addr %s395, 2
        %s397 = smul.addr %s396, 8
        %s398 = scalar_lea.vmem %s5, %s397
      $region52: #{decoder_forward.5} parent=47 // pred_fallthru
        _
    $region48: #{decoder_forward.5} parent=5 // pred_fallthru
      _
  $region6: #{decoder_forward.5} parent=0 // loop_footer
    %s15 = sadd.s32 1, %s11
  $region7: #{decoder_forward.5} parent=0 // loop_footer_branch
    %10 = sbr.rel target = $region3
  $region8: #{decoder_forward.5} parent=0 // loop_exit
    _

// kernel: tile.63
$region0: #{tile.63}
  #allocation0 [shape = 's32[1]{0}', space=sflag, size = 0x4, scoped, tag = 'scoped memory for tile.63']
  %s0 = inlined_call_operand.vmem [shape: f32[4], index: 0, kind: input, shape index: {}]
  %s1 = inlined_call_operand.vmem [shape: f32[32,4], index: 1, kind: output, shape index: {}]
  // Predicated region
  $region2: #{tile.63} parent=0 // pred_check
    _
  $region3: #{tile.63} parent=0 // pred_check_branch
    %3 = sbr.rel (0) target = $region5
  $region4: #{tile.63} parent=0 // pred_region
    _
  $region5: #{tile.63} parent=0 // pred_fallthru
    _
  %v4 = vld [vmem:[%s0] ss:$0 sm:$0xff]
  %5 = vst [vmem:[%s1] sm:$0xff] %v4
  %s6 = scalar_lea.vmem %s1, 8
  %7 = vst [vmem:[%s6] sm:$0xff] %v4
  %s8 = scalar_lea.vmem %s1, 16
  %9 = vst [vmem:[%s8] sm:$0xff] %v4
  %s10 = scalar_lea.vmem %s1, 24
  %11 = vst [vmem:[%s10] sm:$0xff] %v4

// kernel: tile.64
$region0: #{tile.64}
  %s0 = inlined_call_operand.vmem [shape: f32[32,4], index: 0, kind: input, shape index: {}]
  %s1 = inlined_call_operand.vmem [shape: f32[1,128], index: 1, kind: output, shape index: {}]
  $region1: #{tile.64} parent=0
    #allocation0 [shape = 'u8[4096]{0}', space=vmem, size = 0x1000, scoped, tag = 'scoped mem for output reshape']
    %v2 = vld [vmem:[%s0] sm:$0x1]
    %vm3 = vcmask 31744
    %4 = vst.msk [vmem:[#allocation0] sm:$0x1] %vm3, %v2
    %s5 = scalar_lea.vmem %s0, 31
    %v6 = vld [vmem:[%s5] sm:$0x1]
    %7 = vrot.lane.b32.xlu0 %v6, 124
    %v8 = vpop.permute.xlu0 %7
    %vm9 = vcmask 1048544
    %10 = vst.msk [vmem:[#allocation0] sm:$0x1] %vm9, %v8
    %s11 = scalar_lea.vmem %s0, 30
    %v12 = vld [vmem:[%s11] sm:$0x1]
    %13 = vrot.lane.b32.xlu0 %v12, 120
    %v14 = vpop.permute.xlu0 %13
    %vm15 = vcmask 1015744
    %16 = vst.msk [vmem:[#allocation0] sm:$0x1] %vm15, %v14
    %s17 = scalar_lea.vmem %s0, 29
    %v18 = vld [vmem:[%s17] sm:$0x1]
    %19 = vrot.lane.b32.xlu0 %v18, 116
    %v20 = vpop.permute.xlu0 %19
    %vm21 = vcmask 982944
    %22 = vst.msk [vmem:[#allocation0] sm:$0x1] %vm21, %v20
    %s23 = scalar_lea.vmem %s0, 28
    %v24 = vld [vmem:[%s23] sm:$0x1]
    %25 = vrot.lane.b32.xlu0 %v24, 112
    %v26 = vpop.permute.xlu0 %25
    %vm27 = vcmask 950144
    %28 = vst.msk [vmem:[#allocation0] sm:$0x1] %vm27, %v26
    %s29 = scalar_lea.vmem %s0, 27
    %v30 = vld [vmem:[%s29] sm:$0x1]
    %31 = vrot.lane.b32.xlu0 %v30, 108
    %v32 = vpop.permute.xlu0 %31
    %vm33 = vcmask 917344
    %34 = vst.msk [vmem:[#allocation0] sm:$0x1] %vm33, %v32
    %s35 = scalar_lea.vmem %s0, 26
    %v36 = vld [vmem:[%s35] sm:$0x1]
    %37 = vrot.lane.b32.xlu0 %v36, 104
    %v38 = vpop.permute.xlu0 %37
    %vm39 = vcmask 884544
    %40 = vst.msk [vmem:[#allocation0] sm:$0x1] %vm39, %v38
    %s41 = scalar_lea.vmem %s0, 25
    %v42 = vld [vmem:[%s41] sm:$0x1]
    %43 = vrot.lane.b32.xlu0 %v42, 100
    %v44 = vpop.permute.xlu0 %43
    %vm45 = vcmask 851744
    %46 = vst.msk [vmem:[#allocation0] sm:$0x1] %vm45, %v44
    %s47 = scalar_lea.vmem %s0, 24
    %v48 = vld [vmem:[%s47] sm:$0x1]
    %49 = vrot.lane.b32.xlu0 %v48, 96
    %v50 = vpop.permute.xlu0 %49
    %vm51 = vcmask 818944
    %52 = vst.msk [vmem:[#allocation0] sm:$0x1] %vm51, %v50
    %s53 = scalar_lea.vmem %s0, 23
    %v54 = vld [vmem:[%s53] sm:$0x1]
    %55 = vrot.lane.b32.xlu0 %v54, 92
    %v56 = vpop.permute.xlu0 %55
    %vm57 = vcmask 786144
    %58 = vst.msk [vmem:[#allocation0] sm:$0x1] %vm57, %v56
    %s59 = scalar_lea.vmem %s0, 22
    %v60 = vld [vmem:[%s59] sm:$0x1]
    %61 = vrot.lane.b32.xlu0 %v60, 88
    %v62 = vpop.permute.xlu0 %61
    %vm63 = vcmask 753344
    %64 = vst.msk [vmem:[#allocation0] sm:$0x1] %vm63, %v62
    %s65 = scalar_lea.vmem %s0, 21
    %v66 = vld [vmem:[%s65] sm:$0x1]
    %67 = vrot.lane.b32.xlu0 %v66, 84
    %v68 = vpop.permute.xlu0 %67
    %vm69 = vcmask 720544
    %70 = vst.msk [vmem:[#allocation0] sm:$0x1] %vm69, %v68
    %s71 = scalar_lea.vmem %s0, 20
    %v72 = vld [vmem:[%s71] sm:$0x1]
    %73 = vrot.lane.b32.xlu0 %v72, 80
    %v74 = vpop.permute.xlu0 %73
    %vm75 = vcmask 687744
    %76 = vst.msk [vmem:[#allocation0] sm:$0x1] %vm75, %v74
    %s77 = scalar_lea.vmem %s0, 19
    %v78 = vld [vmem:[%s77] sm:$0x1]
    %79 = vrot.lane.b32.xlu0 %v78, 76
    %v80 = vpop.permute.xlu0 %79
    %vm81 = vcmask 654944
    %82 = vst.msk [vmem:[#allocation0] sm:$0x1] %vm81, %v80
    %s83 = scalar_lea.vmem %s0, 18
    %v84 = vld [vmem:[%s83] sm:$0x1]
    %85 = vrot.lane.b32.xlu0 %v84, 72
    %v86 = vpop.permute.xlu0 %85
    %vm87 = vcmask 622144
    %88 = vst.msk [vmem:[#allocation0] sm:$0x1] %vm87, %v86
    %s89 = scalar_lea.vmem %s0, 17
    %v90 = vld [vmem:[%s89] sm:$0x1]
    %91 = vrot.lane.b32.xlu0 %v90, 68
    %v92 = vpop.permute.xlu0 %91
    %vm93 = vcmask 589344
    %94 = vst.msk [vmem:[#allocation0] sm:$0x1] %vm93, %v92
    %s95 = scalar_lea.vmem %s0, 16
    %v96 = vld [vmem:[%s95] sm:$0x1]
    %97 = vrot.lane.b32.xlu0 %v96, 64
    %v98 = vpop.permute.xlu0 %97
    %vm99 = vcmask 556544
    %100 = vst.msk [vmem:[#allocation0] sm:$0x1] %vm99, %v98
    %s101 = scalar_lea.vmem %s0, 15
    %v102 = vld [vmem:[%s101] sm:$0x1]
    %103 = vrot.lane.b32.xlu0 %v102, 60
    %v104 = vpop.permute.xlu0 %103
    %vm105 = vcmask 523744
    %106 = vst.msk [vmem:[#allocation0] sm:$0x1] %vm105, %v104
    %s107 = scalar_lea.vmem %s0, 14
    %v108 = vld [vmem:[%s107] sm:$0x1]
    %109 = vrot.lane.b32.xlu0 %v108, 56
    %v110 = vpop.permute.xlu0 %109
    %vm111 = vcmask 490944
    %112 = vst.msk [vmem:[#allocation0] sm:$0x1] %vm111, %v110
    %s113 = scalar_lea.vmem %s0, 13
    %v114 = vld [vmem:[%s113] sm:$0x1]
    %115 = vrot.lane.b32.xlu0 %v114, 52
    %v116 = vpop.permute.xlu0 %115
    %vm117 = vcmask 458144
    %118 = vst.msk [vmem:[#allocation0] sm:$0x1] %vm117, %v116
    %s119 = scalar_lea.vmem %s0, 12
    %v120 = vld [vmem:[%s119] sm:$0x1]
    %121 = vrot.lane.b32.xlu0 %v120, 48
    %v122 = vpop.permute.xlu0 %121
    %vm123 = vcmask 425344
    %124 = vst.msk [vmem:[#allocation0] sm:$0x1] %vm123, %v122
    %s125 = scalar_lea.vmem %s0, 11
    %v126 = vld [vmem:[%s125] sm:$0x1]
    %127 = vrot.lane.b32.xlu0 %v126, 44
    %v128 = vpop.permute.xlu0 %127
    %vm129 = vcmask 392544
    %130 = vst.msk [vmem:[#allocation0] sm:$0x1] %vm129, %v128
    %s131 = scalar_lea.vmem %s0, 10
    %v132 = vld [vmem:[%s131] sm:$0x1]
    %133 = vrot.lane.b32.xlu0 %v132, 40
    %v134 = vpop.permute.xlu0 %133
    %vm135 = vcmask 359744
    %136 = vst.msk [vmem:[#allocation0] sm:$0x1] %vm135, %v134
    %s137 = scalar_lea.vmem %s0, 9
    %v138 = vld [vmem:[%s137] sm:$0x1]
    %139 = vrot.lane.b32.xlu0 %v138, 36
    %v140 = vpop.permute.xlu0 %139
    %vm141 = vcmask 326944
    %142 = vst.msk [vmem:[#allocation0] sm:$0x1] %vm141, %v140
    %s143 = scalar_lea.vmem %s0, 8
    %v144 = vld [vmem:[%s143] sm:$0x1]
    %145 = vrot.lane.b32.xlu0 %v144, 32
    %v146 = vpop.permute.xlu0 %145
    %vm147 = vcmask 294144
    %148 = vst.msk [vmem:[#allocation0] sm:$0x1] %vm147, %v146
    %s149 = scalar_lea.vmem %s0, 7
    %v150 = vld [vmem:[%s149] sm:$0x1]
    %151 = vrot.lane.b32.xlu0 %v150, 28
    %v152 = vpop.permute.xlu0 %151
    %vm153 = vcmask 261344
    %154 = vst.msk [vmem:[#allocation0] sm:$0x1] %vm153, %v152
    %s155 = scalar_lea.vmem %s0, 6
    %v156 = vld [vmem:[%s155] sm:$0x1]
    %157 = vrot.lane.b32.xlu0 %v156, 24
    %v158 = vpop.permute.xlu0 %157
    %vm159 = vcmask 228544
    %160 = vst.msk [vmem:[#allocation0] sm:$0x1] %vm159, %v158
    %s161 = scalar_lea.vmem %s0, 5
    %v162 = vld [vmem:[%s161] sm:$0x1]
    %163 = vrot.lane.b32.xlu0 %v162, 20
    %v164 = vpop.permute.xlu0 %163
    %vm165 = vcmask 195744
    %166 = vst.msk [vmem:[#allocation0] sm:$0x1] %vm165, %v164
    %s167 = scalar_lea.vmem %s0, 4
    %v168 = vld [vmem:[%s167] sm:$0x1]
    %169 = vrot.lane.b32.xlu0 %v168, 16
    %v170 = vpop.permute.xlu0 %169
    %vm171 = vcmask 162944
    %172 = vst.msk [vmem:[#allocation0] sm:$0x1] %vm171, %v170
    %s173 = scalar_lea.vmem %s0, 3
    %v174 = vld [vmem:[%s173] sm:$0x1]
    %175 = vrot.lane.b32.xlu0 %v174, 12
    %v176 = vpop.permute.xlu0 %175
    %vm177 = vcmask 130144
    %178 = vst.msk [vmem:[#allocation0] sm:$0x1] %vm177, %v176
    %s179 = scalar_lea.vmem %s0, 2
    %v180 = vld [vmem:[%s179] sm:$0x1]
    %181 = vrot.lane.b32.xlu0 %v180, 8
    %v182 = vpop.permute.xlu0 %181
    %vm183 = vcmask 97344
    %184 = vst.msk [vmem:[#allocation0] sm:$0x1] %vm183, %v182
    %s185 = scalar_lea.vmem %s0, 1
    %v186 = vld [vmem:[%s185] sm:$0x1]
    %187 = vrot.lane.b32.xlu0 %v186, 4
    %v188 = vpop.permute.xlu0 %187
    %vm189 = vcmask 64544
    %190 = vst.msk [vmem:[#allocation0] sm:$0x1] %vm189, %v188
    %s192 = ssub.s32 2, 1
    %v193 = vld [vmem:[#allocation0] sm:%s192]
    %s195 = ssub.s32 2, 1
    %196 = vst [vmem:[%s1] sm:%s195] %v193

// kernel: decoder_forward.6
$region0: #{decoder_forward.6}
  #allocation0 [shape = 'u32[]', space=smem, size = 0x4, offset = 0x4, fixed_abs, tag = 'smem constant byte address 0x4 - core index']
  #allocation1 [shape = 'u32[72,128]{1,0:T(1,128)}', space=vmem, size = 0x9000, scoped, tag = 'internal scratch']
  #allocation2 [shape = 'f32[34,256]{1,0:T(8,128)}', space=vmem, size = 0xa000, scoped, tag = 'scratch operand']
  %s0 = inlined_call_operand.vmem [shape: f32[2,16,128], index: 0, kind: input, shape index: {}]
  %s1 = inlined_call_operand.vmem [shape: f32[2,32,256], index: 1, kind: input, shape index: {}]
  %s2 = inlined_call_operand.vmem [shape: f32[32,16], index: 2, kind: input, shape index: {}]
  %s3 = inlined_call_operand.vmem [shape: f32[128,256], index: 3, kind: input, shape index: {}]
  %s4 = inlined_call_operand.vmem [shape: f32[3,256,128], index: 4, kind: input, shape index: {}]
  %s5 = inlined_call_operand.vmem [shape: f32[1,128], index: 5, kind: input, shape index: {}]
  %s6 = inlined_call_operand.vmem [shape: f32[2,32,128], index: 6, kind: output, shape index: {0}]
  %s7 = inlined_call_operand.vmem [shape: f32[2,1,128], index: 7, kind: output, shape index: {1}]
  %s8 = inlined_call_operand.vmem [shape: f32[2,1,128], index: 8, kind: output, shape index: {2}]
  %9 = xla_tuple %s6, %s7, %s8
  %s10 = sld [smem:[#allocation0]]
  $region73: #{decoder_forward.6} parent=0
    _
  %s12 = ssub.s32 1, %s10
  %s13 = scalar_select 0, %s12, %s10
  loop: start=0, step=1, limit=4
  $region2: #{decoder_forward.6} parent=0 // loop_pre_header
    _
  $region3: #{decoder_forward.6} parent=0 // loop_header
    %s15 = sphi 0, %s19
    %p16 = scmp.ge.s32.totalorder %s15, 4
    %s25 = sphi 0, %s27
    %s28 = sphi 0, %s25
    %s29 = sphi 0, %s28
    %s45 = sphi 0, %s29
    %s51 = sphi 0, %s53
    %s54 = sphi 0, %s51
    %s55 = sphi 0, %s54
    %s71 = sphi 0, %s55
    %s75 = sphi 0, %s75
    %s77 = sphi 0, %s75
    %s78 = sphi 0, %s77
    %s92 = sphi 0, %s78
    %s96 = sphi 0, %s96
    %s98 = sphi 0, %s96
    %s99 = sphi 0, %s98
    %s113 = sphi 0, %s99
    %s117 = sphi 0, %s117
    %s119 = sphi 0, %s117
    %s120 = sphi 0, %s119
    %s134 = sphi 0, %s120
    %s138 = sphi 0, %s138
    %s140 = sphi 0, %s138
    %s141 = sphi 0, %s140
    %s155 = sphi 0, %s141
    %s161 = sphi 0, %s163
    %s164 = sphi 0, %s161
    %s165 = sphi 0, %s164
    %s181 = sphi 0, %s165
    %s187 = sphi 0, %s189
    %s190 = sphi 0, %s187
    %s191 = sphi 0, %s190
    %s207 = sphi 0, %s191
    %s213 = sphi 0, %s215
    %s216 = sphi 0, %s213
    %s217 = sphi 0, %s216
    %s233 = sphi 0, %s217
  $region4: #{decoder_forward.6} parent=0 // loop_header_branch
    %18 = sbr.rel (%p16) target = $region8
  $region5: #{decoder_forward.6} parent=0 // loop_body
    %s20 = ssub.s32 %s15, 1
    %s21 = ssub.s32 %s15, 2
    %s22 = sadd.s32 %s15, 1
    %s23 = ssub.s32 %s15, %s22
    %p24 = scmp.eq.s32.totalorder %s23, 0
    %s26 = sadd.s32 %s25, 1
    %s27 = scalar_select %p24, %s25, %s26
    %p30 = pneg %p24
    %p31 = scmp.eq.s32.totalorder %s15, 1
    %p32 = por %p30, %p31
    %p33 = scmp.ne.s32.totalorder %s25, %s28
    %p34 = scmp.eq.s32.totalorder %s15, 0
    %p35 = por %p33, %p34
    %p36 = scmp.ne.s32.totalorder %s25, %s28
    %p37 = scmp.eq.s32.totalorder %s20, 1
    %p38 = por %p36, %p37
    %p39 = scmp.ne.s32.totalorder %s28, %s29
    %p40 = scmp.eq.s32.totalorder %s20, 0
    %p41 = por %p39, %p40
    %p42 = scmp.ne.s32.totalorder %s28, %s29
    %p43 = scmp.eq.s32.totalorder %s21, 1
    %p44 = por %p42, %p43
    %p46 = scmp.ne.s32.totalorder %s29, %s45
    %p47 = scmp.eq.s32.totalorder %s21, 0
    %p48 = por %p46, %p47
    %s49 = ssub.s32 %s15, %s22
    %p50 = scmp.eq.s32.totalorder %s49, 0
    %s52 = sadd.s32 %s51, 1
    %s53 = scalar_select %p50, %s51, %s52
    %p56 = pneg %p50
    %p57 = scmp.eq.s32.totalorder %s15, 1
    %p58 = por %p56, %p57
    %p59 = scmp.ne.s32.totalorder %s51, %s54
    %p60 = scmp.eq.s32.totalorder %s15, 0
    %p61 = por %p59, %p60
    %p62 = scmp.ne.s32.totalorder %s51, %s54
    %p63 = scmp.eq.s32.totalorder %s20, 1
    %p64 = por %p62, %p63
    %p65 = scmp.ne.s32.totalorder %s54, %s55
    %p66 = scmp.eq.s32.totalorder %s20, 0
    %p67 = por %p65, %p66
    %p68 = scmp.ne.s32.totalorder %s54, %s55
    %p69 = scmp.eq.s32.totalorder %s21, 1
    %p70 = por %p68, %p69
    %p72 = scmp.ne.s32.totalorder %s55, %s71
    %p73 = scmp.eq.s32.totalorder %s21, 0
    %p74 = por %p72, %p73
    %s76 = sadd.s32 %s75, 1
    %p79 = scmp.eq.s32.totalorder %s15, 1
    %p80 = scmp.ne.s32.totalorder %s75, %s77
    %p81 = scmp.eq.s32.totalorder %s15, 0
    %p82 = por %p80, %p81
    %p83 = scmp.ne.s32.totalorder %s75, %s77
    %p84 = scmp.eq.s32.totalorder %s20, 1
    %p85 = por %p83, %p84
    %p86 = scmp.ne.s32.totalorder %s77, %s78
    %p87 = scmp.eq.s32.totalorder %s20, 0
    %p88 = por %p86, %p87
    %p89 = scmp.ne.s32.totalorder %s77, %s78
    %p90 = scmp.eq.s32.totalorder %s21, 1
    %p91 = por %p89, %p90
    %p93 = scmp.ne.s32.totalorder %s78, %s92
    %p94 = scmp.eq.s32.totalorder %s21, 0
    %p95 = por %p93, %p94
    %s97 = sadd.s32 %s96, 1
    %p100 = scmp.eq.s32.totalorder %s15, 1
    %p101 = scmp.ne.s32.totalorder %s96, %s98
    %p102 = scmp.eq.s32.totalorder %s15, 0
    %p103 = por %p101, %p102
    %p104 = scmp.ne.s32.totalorder %s96, %s98
    %p105 = scmp.eq.s32.totalorder %s20, 1
    %p106 = por %p104, %p105
    %p107 = scmp.ne.s32.totalorder %s98, %s99
    %p108 = scmp.eq.s32.totalorder %s20, 0
    %p109 = por %p107, %p108
    %p110 = scmp.ne.s32.totalorder %s98, %s99
    %p111 = scmp.eq.s32.totalorder %s21, 1
    %p112 = por %p110, %p111
    %p114 = scmp.ne.s32.totalorder %s99, %s113
    %p115 = scmp.eq.s32.totalorder %s21, 0
    %p116 = por %p114, %p115
    %s118 = sadd.s32 %s117, 1
    %p121 = scmp.eq.s32.totalorder %s15, 1
    %p122 = scmp.ne.s32.totalorder %s117, %s119
    %p123 = scmp.eq.s32.totalorder %s15, 0
    %p124 = por %p122, %p123
    %p125 = scmp.ne.s32.totalorder %s117, %s119
    %p126 = scmp.eq.s32.totalorder %s20, 1
    %p127 = por %p125, %p126
    %p128 = scmp.ne.s32.totalorder %s119, %s120
    %p129 = scmp.eq.s32.totalorder %s20, 0
    %p130 = por %p128, %p129
    %p131 = scmp.ne.s32.totalorder %s119, %s120
    %p132 = scmp.eq.s32.totalorder %s21, 1
    %p133 = por %p131, %p132
    %p135 = scmp.ne.s32.totalorder %s120, %s134
    %p136 = scmp.eq.s32.totalorder %s21, 0
    %p137 = por %p135, %p136
    %s139 = sadd.s32 %s138, 1
    %p142 = scmp.eq.s32.totalorder %s15, 1
    %p143 = scmp.ne.s32.totalorder %s138, %s140
    %p144 = scmp.eq.s32.totalorder %s15, 0
    %p145 = por %p143, %p144
    %p146 = scmp.ne.s32.totalorder %s138, %s140
    %p147 = scmp.eq.s32.totalorder %s20, 1
    %p148 = por %p146, %p147
    %p149 = scmp.ne.s32.totalorder %s140, %s141
    %p150 = scmp.eq.s32.totalorder %s20, 0
    %p151 = por %p149, %p150
    %p152 = scmp.ne.s32.totalorder %s140, %s141
    %p153 = scmp.eq.s32.totalorder %s21, 1
    %p154 = por %p152, %p153
    %p156 = scmp.ne.s32.totalorder %s141, %s155
    %p157 = scmp.eq.s32.totalorder %s21, 0
    %p158 = por %p156, %p157
    %s159 = ssub.s32 %s15, %s22
    %p160 = scmp.eq.s32.totalorder %s159, 0
    %s162 = sadd.s32 %s161, 1
    %s163 = scalar_select %p160, %s161, %s162
    %p166 = pneg %p160
    %p167 = scmp.eq.s32.totalorder %s15, 1
    %p168 = por %p166, %p167
    %p169 = scmp.ne.s32.totalorder %s161, %s164
    %p170 = scmp.eq.s32.totalorder %s15, 0
    %p171 = por %p169, %p170
    %p172 = scmp.ne.s32.totalorder %s161, %s164
    %p173 = scmp.eq.s32.totalorder %s20, 1
    %p174 = por %p172, %p173
    %p175 = scmp.ne.s32.totalorder %s164, %s165
    %p176 = scmp.eq.s32.totalorder %s20, 0
    %p177 = por %p175, %p176
    %p178 = scmp.ne.s32.totalorder %s164, %s165
    %p179 = scmp.eq.s32.totalorder %s21, 1
    %p180 = por %p178, %p179
    %p182 = scmp.ne.s32.totalorder %s165, %s181
    %p183 = scmp.eq.s32.totalorder %s21, 0
    %p184 = por %p182, %p183
    %s185 = ssub.s32 %s15, %s22
    %p186 = scmp.eq.s32.totalorder %s185, 0
    %s188 = sadd.s32 %s187, 1
    %s189 = scalar_select %p186, %s187, %s188
    %p192 = pneg %p186
    %p193 = scmp.eq.s32.totalorder %s15, 1
    %p194 = por %p192, %p193
    %p195 = scmp.ne.s32.totalorder %s187, %s190
    %p196 = scmp.eq.s32.totalorder %s15, 0
    %p197 = por %p195, %p196
    %p198 = scmp.ne.s32.totalorder %s187, %s190
    %p199 = scmp.eq.s32.totalorder %s20, 1
    %p200 = por %p198, %p199
    %p201 = scmp.ne.s32.totalorder %s190, %s191
    %p202 = scmp.eq.s32.totalorder %s20, 0
    %p203 = por %p201, %p202
    %p204 = scmp.ne.s32.totalorder %s190, %s191
    %p205 = scmp.eq.s32.totalorder %s21, 1
    %p206 = por %p204, %p205
    %p208 = scmp.ne.s32.totalorder %s191, %s207
    %p209 = scmp.eq.s32.totalorder %s21, 0
    %p210 = por %p208, %p209
    %s211 = ssub.s32 %s15, %s22
    %p212 = scmp.eq.s32.totalorder %s211, 0
    %s214 = sadd.s32 %s213, 1
    %s215 = scalar_select %p212, %s213, %s214
    %p218 = pneg %p212
    %p219 = scmp.eq.s32.totalorder %s15, 1
    %p220 = por %p218, %p219
    %p221 = scmp.ne.s32.totalorder %s213, %s216
    %p222 = scmp.eq.s32.totalorder %s15, 0
    %p223 = por %p221, %p222
    %p224 = scmp.ne.s32.totalorder %s213, %s216
    %p225 = scmp.eq.s32.totalorder %s20, 1
    %p226 = por %p224, %p225
    %p227 = scmp.ne.s32.totalorder %s216, %s217
    %p228 = scmp.eq.s32.totalorder %s20, 0
    %p229 = por %p227, %p228
    %p230 = scmp.ne.s32.totalorder %s216, %s217
    %p231 = scmp.eq.s32.totalorder %s21, 1
    %p232 = por %p230, %p231
    %p234 = scmp.ne.s32.totalorder %s217, %s233
    %p235 = scmp.eq.s32.totalorder %s21, 0
    %p236 = por %p234, %p235
    %p237 = scmp.le.s32.totalorder 1, %s15
    %p238 = scmp.lt.s32.totalorder %s15, 3
    %p239 = pnand %p237, %p238
    %p240 = pneg %p239
    // Predicated region
    $region9: #{decoder_forward.6} parent=5 // pred_check
      _
    $region10: #{decoder_forward.6} parent=5 // pred_check_branch
      %242 = sbr.rel (%p239) target = $region12
    $region11: #{decoder_forward.6} parent=5 // pred_region
      %s243 = ssub.s32 %s15, 1
      // Predicated region
      $region13: #{decoder_forward.6} parent=11 // pred_check
        %p244 = pneg %p88
      $region14: #{decoder_forward.6} parent=11 // pred_check_branch
        %246 = sbr.rel (%p244) target = $region16
      $region15: #{decoder_forward.6} parent=11 // pred_region
        _
      $region16: #{decoder_forward.6} parent=11 // pred_fallthru
        _
      // Predicated region
      $region17: #{decoder_forward.6} parent=11 // pred_check
        %p247 = pneg %p109
      $region18: #{decoder_forward.6} parent=11 // pred_check_branch
        %249 = sbr.rel (%p247) target = $region20
      $region19: #{decoder_forward.6} parent=11 // pred_region
        _
      $region20: #{decoder_forward.6} parent=11 // pred_fallthru
        _
      // Predicated region
      $region21: #{decoder_forward.6} parent=11 // pred_check
        %p250 = pneg %p130
      $region22: #{decoder_forward.6} parent=11 // pred_check_branch
        %252 = sbr.rel (%p250) target = $region24
      $region23: #{decoder_forward.6} parent=11 // pred_region
        _
      $region24: #{decoder_forward.6} parent=11 // pred_fallthru
        _
      // Predicated region
      $region25: #{decoder_forward.6} parent=11 // pred_check
        %p253 = pneg %p151
      $region26: #{decoder_forward.6} parent=11 // pred_check_branch
        %255 = sbr.rel (%p253) target = $region28
      $region27: #{decoder_forward.6} parent=11 // pred_region
        _
      $region28: #{decoder_forward.6} parent=11 // pred_fallthru
        _
    $region12: #{decoder_forward.6} parent=5 // pred_fallthru
      _
    %p256 = scmp.lt.s32.totalorder %s15, 2
    // Predicated region
    $region29: #{decoder_forward.6} parent=5 // pred_check
      %p257 = pneg %p256
    $region30: #{decoder_forward.6} parent=5 // pred_check_branch
      %259 = sbr.rel (%p257) target = $region32
    $region31: #{decoder_forward.6} parent=5 // pred_region
      // Predicated region
      $region33: #{decoder_forward.6} parent=31 // pred_check
        %p260 = pneg %p35
      $region34: #{decoder_forward.6} parent=31 // pred_check_branch
        %262 = sbr.rel (%p260) target = $region36
      $region35: #{decoder_forward.6} parent=31 // pred_region
        %p263 = scmp.lt.s32.totalorder %s15, 1
        %s264 = scalar_select %p263, %s15, 1
        %s265 = smul.addr %s264, 2
        %s266 = smul.addr %s265, 8
        %s267 = scalar_lea.vmem %s0, %s266
      $region36: #{decoder_forward.6} parent=31 // pred_fallthru
        _
      // Predicated region
      $region37: #{decoder_forward.6} parent=31 // pred_check
        %p268 = pneg %p61
      $region38: #{decoder_forward.6} parent=31 // pred_check_branch
        %270 = sbr.rel (%p268) target = $region40
      $region39: #{decoder_forward.6} parent=31 // pred_region
        %p271 = scmp.lt.s32.totalorder %s15, 1
        %s272 = scalar_select %p271, %s15, 1
        %s273 = smul.addr %s272, 8
        %s274 = smul.addr %s273, 8
        %s275 = scalar_lea.vmem %s1, %s274
      $region40: #{decoder_forward.6} parent=31 // pred_fallthru
        _
    $region32: #{decoder_forward.6} parent=5 // pred_fallthru
      _
    %p276 = scmp.le.s32.totalorder 1, %s15
    %p277 = scmp.lt.s32.totalorder %s15, 3
    %p278 = pnand %p276, %p277
    %p279 = pneg %p278
    // Predicated region
    $region41: #{decoder_forward.6} parent=5 // pred_check
      _
    $region42: #{decoder_forward.6} parent=5 // pred_check_branch
      %281 = sbr.rel (%p278) target = $region44
    $region43: #{decoder_forward.6} parent=5 // pred_region
      %s282 = ssub.s32 %s15, 1
      %p283 = scmp.lt.s32.totalorder %s20, 1
      %s284 = scalar_select %p283, %s20, 1
      %s285 = smul.addr %s284, 2
      %s286 = smul.addr %s285, 8
      %s287 = scalar_lea.vmem %s0, %s286
      %p288 = pneg %p41
      %p289 = pneg %p38
      %p290 = scmp.lt.s32.totalorder %s20, 1
      %s291 = scalar_select %p290, %s20, 1
      %s292 = smul.addr %s291, 8
      %s293 = smul.addr %s292, 8
      %s294 = scalar_lea.vmem %s1, %s293
      %p295 = pneg %p67
      %p296 = pneg %p64
      %p297 = pneg %p88
      %p298 = pneg %p85
      %p299 = pneg %p109
      %p300 = pneg %p106
      %p301 = pneg %p130
      %p302 = pneg %p127
      %p303 = pneg %p151
      %p304 = pneg %p148
      %p305 = pneg %p177
      %p306 = pneg %p174
      %p307 = scmp.lt.s32.totalorder %s20, 1
      %s308 = scalar_select %p307, %s20, 1
      %s309 = smul.addr %s308, 4
      %s310 = smul.addr %s309, 8
      %s311 = scalar_lea.vmem %s6, %s310
      %p312 = pneg %p203
      %p313 = pneg %p200
      %p314 = scmp.lt.s32.totalorder %s20, 1
      %s315 = scalar_select %p314, %s20, 1
      %s316 = scalar_lea.vmem %s7, %s315
      %p317 = pneg %p229
      %p318 = pneg %p226
      %p319 = scmp.lt.s32.totalorder %s20, 1
      %s320 = scalar_select %p319, %s20, 1
      %s321 = scalar_lea.vmem %s8, %s320
      %p322 = scmp.lt.s32.totalorder %s20, 1
      %s323 = scalar_select %p322, %s20, 1
      %s324 = smul.addr %s323, 2
      %s325 = smul.addr %s324, 8
      %s326 = scalar_lea.vmem %s0, %s325
      %p327 = scmp.lt.s32.totalorder %s20, 1
      %s328 = scalar_select %p327, %s20, 1
      %s329 = smul.addr %s328, 8
      %s330 = smul.addr %s329, 8
      %s331 = scalar_lea.vmem %s1, %s330
      %p332 = scmp.lt.s32.totalorder %s20, 1
      %s333 = scalar_select %p332, %s20, 1
      %s334 = smul.addr %s333, 4
      %s335 = smul.addr %s334, 8
      %s336 = scalar_lea.vmem %s6, %s335
      %p337 = scmp.lt.s32.totalorder %s20, 1
      %s338 = scalar_select %p337, %s20, 1
      %s339 = scalar_lea.vmem %s7, %s338
      %p340 = scmp.lt.s32.totalorder %s20, 1
      %s341 = scalar_select %p340, %s20, 1
      %s342 = scalar_lea.vmem %s8, %s341
      %v343 = vld [vmem:[%s2] sm:$0xff]
      %v344 = vld [vmem:[%s2 + $0x8] sm:$0xff]
      %v345 = vld [vmem:[%s2 + $0x10] sm:$0xff]
      %v346 = vld [vmem:[%s2 + $0x18] sm:$0xff]
      %v347 = vld [vmem:[%s326] sm:$0xff]
      %v348 = vld [vmem:[%s326 + $0x8] sm:$0xff]
      %vm349 = vcmask 130048
      %v351 = vsel %vm349, %v343, 0
      %v354 = vsel %vm349, %v344, 0
      %v357 = vsel %vm349, %v345, 0
      %v360 = vsel %vm349, %v346, 0
      %362 = vmatpush.msra.mxu0 0.0
      %363 = vmatpush.msra.mxu0 0.0
      %364 = vmatpush.msra.mxu0 0.0
      %365 = vmatpush.msra.mxu0 0.0
      %366 = vmatpush.msra.mxu0 0.0
      %367 = vmatpush.msra.mxu0 0.0
      %368 = vmatpush.msra.mxu0 0.0
      %369 = vmatpush.msra.mxu0 0.0
      %370 = vmatpush.msra.mxu0 0.0
      %371 = vmatpush.msra.mxu0 0.0
      %372 = vmatpush.msra.mxu0 0.0
      %373 = vmatpush.msra.mxu0 0.0
      %374 = vmatpush.msra.mxu0 0.0
      %375 = vmatpush.msra.mxu0 0.0
      %376 = vmatpush.msra.mxu0 %v348
      %377 = vmatpush.msra.mxu0 %v347
      %378 = vmatmul.f32.gmra.mxu0 %v351
      %v379 = vpop.f32.mrf.mxu0
      %v380 = vadd.f32 0.0, %v379
      %381 = vmatmul.f32.gmra.mxu0 %v354
      %v382 = vpop.f32.mrf.mxu0
      %v383 = vadd.f32 0.0, %v382
      %384 = vmatmul.f32.gmra.mxu0 %v357
      %v385 = vpop.f32.mrf.mxu0
      %v386 = vadd.f32 0.0, %v385
      %387 = vmatmul.f32.gmra.mxu0 %v360
      %v388 = vpop.f32.mrf.mxu0
      %v389 = vadd.f32 0.0, %v388
      %390 = vdwg.mxu0
      %v391 = vld [vmem:[%s3] sm:$0xff]
      %v392 = vld [vmem:[%s3 + $0x8] sm:$0xff]
      %v393 = vld [vmem:[%s3 + $0x10] sm:$0xff]
      %v394 = vld [vmem:[%s3 + $0x18] sm:$0xff]
      %v395 = vld [vmem:[%s3 + $0x20] sm:$0xff]
      %v396 = vld [vmem:[%s3 + $0x28] sm:$0xff]
      %v397 = vld [vmem:[%s3 + $0x30] sm:$0xff]
      %v398 = vld [vmem:[%s3 + $0x38] sm:$0xff]
      %v399 = vld [vmem:[%s3 + $0x40] sm:$0xff]
      %v400 = vld [vmem:[%s3 + $0x48] sm:$0xff]
      %v401 = vld [vmem:[%s3 + $0x50] sm:$0xff]
      %v402 = vld [vmem:[%s3 + $0x58] sm:$0xff]
      %v403 = vld [vmem:[%s3 + $0x60] sm:$0xff]
      %v404 = vld [vmem:[%s3 + $0x68] sm:$0xff]
      %v405 = vld [vmem:[%s3 + $0x70] sm:$0xff]
      %v406 = vld [vmem:[%s3 + $0x78] sm:$0xff]
      %v407 = vld [vmem:[%s3 + $0x80] sm:$0xff]
      %v408 = vld [vmem:[%s3 + $0x88] sm:$0xff]
      %v409 = vld [vmem:[%s3 + $0x90] sm:$0xff]
      %v410 = vld [vmem:[%s3 + $0x98] sm:$0xff]
      %v411 = vld [vmem:[%s3 + $0xa0] sm:$0xff]
      %v412 = vld [vmem:[%s3 + $0xa8] sm:$0xff]
      %v413 = vld [vmem:[%s3 + $0xb0] sm:$0xff]
      %v414 = vld [vmem:[%s3 + $0xb8] sm:$0xff]
      %v415 = vld [vmem:[%s3 + $0xc0] sm:$0xff]
      %v416 = vld [vmem:[%s3 + $0xc8] sm:$0xff]
      %v417 = vld [vmem:[%s3 + $0xd0] sm:$0xff]
      %v418 = vld [vmem:[%s3 + $0xd8] sm:$0xff]
      %v419 = vld [vmem:[%s3 + $0xe0] sm:$0xff]
      %v420 = vld [vmem:[%s3 + $0xe8] sm:$0xff]
      %v421 = vld [vmem:[%s3 + $0xf0] sm:$0xff]
      %v422 = vld [vmem:[%s3 + $0xf8] sm:$0xff]
      %v423 = vld [vmem:[%s331] sm:$0xff]
      %v424 = vld [vmem:[%s331 + $0x8] sm:$0xff]
      %v425 = vld [vmem:[%s331 + $0x10] sm:$0xff]
      %v426 = vld [vmem:[%s331 + $0x18] sm:$0xff]
      %v427 = vld [vmem:[%s331 + $0x20] sm:$0xff]
      %v428 = vld [vmem:[%s331 + $0x28] sm:$0xff]
      %v429 = vld [vmem:[%s331 + $0x30] sm:$0xff]
      %v430 = vld [vmem:[%s331 + $0x38] sm:$0xff]
      %431 = vmatpush.msra.mxu0 %v421
      %432 = vmatpush.msra.mxu0 %v419
      %433 = vmatpush.msra.mxu0 %v417
      %434 = vmatpush.msra.mxu0 %v415
      %435 = vmatpush.msra.mxu0 %v413
      %436 = vmatpush.msra.mxu0 %v411
      %437 = vmatpush.msra.mxu0 %v409
      %438 = vmatpush.msra.mxu0 %v407
      %439 = vmatpush.msra.mxu0 %v405
      %440 = vmatpush.msra.mxu0 %v403
      %441 = vmatpush.msra.mxu0 %v401
      %442 = vmatpush.msra.mxu0 %v399
      %443 = vmatpush.msra.mxu0 %v397
      %444 = vmatpush.msra.mxu0 %v395
      %445 = vmatpush.msra.mxu0 %v393
      %446 = vmatpush.msra.mxu0 %v391
      %447 = vmatmul.f32.gmra.mxu0 %v380
      %v448 = vpop.f32.mrf.mxu0
      %v449 = vadd.f32 %v423, %v448
      %450 = vmatmul.f32.gmra.mxu0 %v383
      %v451 = vpop.f32.mrf.mxu0
      %v452 = vadd.f32 %v425, %v451
      %453 = vmatmul.f32.gmra.mxu0 %v386
      %v454 = vpop.f32.mrf.mxu0
      %v455 = vadd.f32 %v427, %v454
      %456 = vmatmul.f32.gmra.mxu0 %v389
      %v457 = vpop.f32.mrf.mxu0
      %v458 = vadd.f32 %v429, %v457
      %459 = vdwg.mxu0
      %460 = vmatpush.msra.mxu0 %v422
      %461 = vmatpush.msra.mxu0 %v420
      %462 = vmatpush.msra.mxu0 %v418
      %463 = vmatpush.msra.mxu0 %v416
      %464 = vmatpush.msra.mxu0 %v414
      %465 = vmatpush.msra.mxu0 %v412
      %466 = vmatpush.msra.mxu0 %v410
      %467 = vmatpush.msra.mxu0 %v408
      %468 = vmatpush.msra.mxu0 %v406
      %469 = vmatpush.msra.mxu0 %v404
      %470 = vmatpush.msra.mxu0 %v402
      %471 = vmatpush.msra.mxu0 %v400
      %472 = vmatpush.msra.mxu0 %v398
      %473 = vmatpush.msra.mxu0 %v396
      %474 = vmatpush.msra.mxu0 %v394
      %475 = vmatpush.msra.mxu0 %v392
      %476 = vmatmul.f32.gmra.mxu0 %v380
      %v477 = vpop.f32.mrf.mxu0
      %v478 = vadd.f32 %v424, %v477
      %479 = vmatmul.f32.gmra.mxu0 %v383
      %v480 = vpop.f32.mrf.mxu0
      %v481 = vadd.f32 %v426, %v480
      %482 = vmatmul.f32.gmra.mxu0 %v386
      %v483 = vpop.f32.mrf.mxu0
      %v484 = vadd.f32 %v428, %v483
      %485 = vmatmul.f32.gmra.mxu0 %v389
      %v486 = vpop.f32.mrf.mxu0
      %v487 = vadd.f32 %v430, %v486
      %488 = vdwg.mxu0
      %v489 = vlaneseq
      %vm490 = vcmp.ge.s32.totalorder %v489, 0
      %vm491 = vcmp.lt.s32.totalorder %v489, 256
      %vm492 = vmand %vm490, %vm491
      %493 = vst.msk [vmem:[#allocation2] ss:$8 sm:$0x3] %vm492, 0.0
      %494 = vst.msk [vmem:[#allocation2] ss:$8 sm:$0x0] %vm492, 0.0
      %s495 = scalar_lea.vmem [#allocation2], 65
      %496 = vst.msk [vmem:[%s495] ss:$8 sm:$0x3] %vm492, 0.0
      %497 = vst.msk [vmem:[%s495] ss:$8 sm:$0x0] %vm492, 0.0
      %vm506 = vcmask 1040384
      %v507 = vrot.slane %v449, 7
      %v508 = vrot.slane %v478, 7
      %v509 = vrot.slane %v452, 7
      %v510 = vsel %vm506, %v507, %v509
      %v511 = vrot.slane %v481, 7
      %v512 = vsel %vm506, %v508, %v511
      %v513 = vrot.slane %v455, 7
      %v514 = vsel %vm506, %v509, %v513
      %v515 = vrot.slane %v484, 7
      %v516 = vsel %vm506, %v511, %v515
      %v517 = vrot.slane %v458, 7
      %v518 = vsel %vm506, %v513, %v517
      %v519 = vrot.slane %v487, 7
      %v520 = vsel %vm506, %v515, %v519
      %531 = vst [vmem:[#allocation2] sm:$0xfe] %v507
      %532 = vst [vmem:[#allocation2 + $0x8] sm:$0xfe] %v508
      %533 = vst [vmem:[#allocation2 + $0x10] sm:$0xff] %v510
      %534 = vst [vmem:[#allocation2 + $0x18] sm:$0xff] %v512
      %535 = vst [vmem:[#allocation2 + $0x20] sm:$0xff] %v514
      %536 = vst [vmem:[#allocation2 + $0x28] sm:$0xff] %v516
      %537 = vst [vmem:[#allocation2 + $0x30] sm:$0xff] %v518
      %538 = vst [vmem:[#allocation2 + $0x38] sm:$0xff] %v520
      %539 = vst [vmem:[#allocation2 + $0x40] sm:$0x1] %v517
      %540 = vst [vmem:[#allocation2 + $0x48] sm:$0x1] %v519
      %s541 = scalar_lea.vmem %s4, 256
      %v542 = vld [vmem:[%s541] sm:$0xff]
      %v543 = vld [vmem:[%s541 + $0x8] sm:$0xff]
      %v544 = vld [vmem:[%s541 + $0x10] sm:$0xff]
      %v545 = vld [vmem:[%s541 + $0x18] sm:$0xff]
      %v546 = vld [vmem:[%s541 + $0x20] sm:$0xff]
      %v547 = vld [vmem:[%s541 + $0x28] sm:$0xff]
      %v548 = vld [vmem:[%s541 + $0x30] sm:$0xff]
      %v549 = vld [vmem:[%s541 + $0x38] sm:$0xff]
      %v550 = vld [vmem:[%s541 + $0x40] sm:$0xff]
      %v551 = vld [vmem:[%s541 + $0x48] sm:$0xff]
      %v552 = vld [vmem:[%s541 + $0x50] sm:$0xff]
      %v553 = vld [vmem:[%s541 + $0x58] sm:$0xff]
      %v554 = vld [vmem:[%s541 + $0x60] sm:$0xff]
      %v555 = vld [vmem:[%s541 + $0x68] sm:$0xff]
      %v556 = vld [vmem:[%s541 + $0x70] sm:$0xff]
      %v557 = vld [vmem:[%s541 + $0x78] sm:$0xff]
      %v558 = vld [vmem:[%s541 + $0x80] sm:$0xff]
      %v559 = vld [vmem:[%s541 + $0x88] sm:$0xff]
      %v560 = vld [vmem:[%s541 + $0x90] sm:$0xff]
      %v561 = vld [vmem:[%s541 + $0x98] sm:$0xff]
      %v562 = vld [vmem:[%s541 + $0xa0] sm:$0xff]
      %v563 = vld [vmem:[%s541 + $0xa8] sm:$0xff]
      %v564 = vld [vmem:[%s541 + $0xb0] sm:$0xff]
      %v565 = vld [vmem:[%s541 + $0xb8] sm:$0xff]
      %v566 = vld [vmem:[%s541 + $0xc0] sm:$0xff]
      %v567 = vld [vmem:[%s541 + $0xc8] sm:$0xff]
      %v568 = vld [vmem:[%s541 + $0xd0] sm:$0xff]
      %v569 = vld [vmem:[%s541 + $0xd8] sm:$0xff]
      %v570 = vld [vmem:[%s541 + $0xe0] sm:$0xff]
      %v571 = vld [vmem:[%s541 + $0xe8] sm:$0xff]
      %v572 = vld [vmem:[%s541 + $0xf0] sm:$0xff]
      %v573 = vld [vmem:[%s541 + $0xf8] sm:$0xff]
      %v574 = vld [vmem:[#allocation2] sm:$0xff]
      %v575 = vld [vmem:[#allocation2 + $0x8] sm:$0xff]
      %v576 = vld [vmem:[#allocation2 + $0x10] sm:$0xff]
      %v577 = vld [vmem:[#allocation2 + $0x18] sm:$0xff]
      %v578 = vld [vmem:[#allocation2 + $0x20] sm:$0xff]
      %v579 = vld [vmem:[#allocation2 + $0x28] sm:$0xff]
      %v580 = vld [vmem:[#allocation2 + $0x30] sm:$0xff]
      %v581 = vld [vmem:[#allocation2 + $0x38] sm:$0xff]
      %v582 = vld [vmem:[%s4] sm:$0xff]
      %v583 = vld [vmem:[%s4 + $0x8] sm:$0xff]
      %v584 = vld [vmem:[%s4 + $0x10] sm:$0xff]
      %v585 = vld [vmem:[%s4 + $0x18] sm:$0xff]
      %v586 = vld [vmem:[%s4 + $0x20] sm:$0xff]
      %v587 = vld [vmem:[%s4 + $0x28] sm:$0xff]
      %v588 = vld [vmem:[%s4 + $0x30] sm:$0xff]
      %v589 = vld [vmem:[%s4 + $0x38] sm:$0xff]
      %v590 = vld [vmem:[%s4 + $0x40] sm:$0xff]
      %v591 = vld [vmem:[%s4 + $0x48] sm:$0xff]
      %v592 = vld [vmem:[%s4 + $0x50] sm:$0xff]
      %v593 = vld [vmem:[%s4 + $0x58] sm:$0xff]
      %v594 = vld [vmem:[%s4 + $0x60] sm:$0xff]
      %v595 = vld [vmem:[%s4 + $0x68] sm:$0xff]
      %v596 = vld [vmem:[%s4 + $0x70] sm:$0xff]
      %v597 = vld [vmem:[%s4 + $0x78] sm:$0xff]
      %v598 = vld [vmem:[%s4 + $0x80] sm:$0xff]
      %v599 = vld [vmem:[%s4 + $0x88] sm:$0xff]
      %v600 = vld [vmem:[%s4 + $0x90] sm:$0xff]
      %v601 = vld [vmem:[%s4 + $0x98] sm:$0xff]
      %v602 = vld [vmem:[%s4 + $0xa0] sm:$0xff]
      %v603 = vld [vmem:[%s4 + $0xa8] sm:$0xff]
      %v604 = vld [vmem:[%s4 + $0xb0] sm:$0xff]
      %v605 = vld [vmem:[%s4 + $0xb8] sm:$0xff]
      %v606 = vld [vmem:[%s4 + $0xc0] sm:$0xff]
      %v607 = vld [vmem:[%s4 + $0xc8] sm:$0xff]
      %v608 = vld [vmem:[%s4 + $0xd0] sm:$0xff]
      %v609 = vld [vmem:[%s4 + $0xd8] sm:$0xff]
      %v610 = vld [vmem:[%s4 + $0xe0] sm:$0xff]
      %v611 = vld [vmem:[%s4 + $0xe8] sm:$0xff]
      %v612 = vld [vmem:[%s4 + $0xf0] sm:$0xff]
      %v613 = vld [vmem:[%s4 + $0xf8] sm:$0xff]
      %614 = vmatpush.msra.mxu0 %v597
      %615 = vmatpush.msra.mxu0 %v596
      %616 = vmatpush.msra.mxu0 %v595
      %617 = vmatpush.msra.mxu0 %v594
      %618 = vmatpush.msra.mxu0 %v593
      %619 = vmatpush.msra.mxu0 %v592
      %620 = vmatpush.msra.mxu0 %v591
      %621 = vmatpush.msra.mxu0 %v590
      %622 = vmatpush.msra.mxu0 %v589
      %623 = vmatpush.msra.mxu0 %v588
      %624 = vmatpush.msra.mxu0 %v587
      %625 = vmatpush.msra.mxu0 %v586
      %626 = vmatpush.msra.mxu0 %v585
      %627 = vmatpush.msra.mxu0 %v584
      %628 = vmatpush.msra.mxu0 %v583
      %629 = vmatpush.msra.mxu0 %v582
      %630 = vmatmul.f32.gmra.mxu0 %v574
      %v631 = vpop.f32.mrf.mxu0
      %v632 = vadd.f32 0.0, %v631
      %633 = vmatmul.f32.gmra.mxu0 %v576
      %v634 = vpop.f32.mrf.mxu0
      %v635 = vadd.f32 0.0, %v634
      %636 = vmatmul.f32.gmra.mxu0 %v578
      %v637 = vpop.f32.mrf.mxu0
      %v638 = vadd.f32 0.0, %v637
      %639 = vmatmul.f32.gmra.mxu0 %v580
      %v640 = vpop.f32.mrf.mxu0
      %v641 = vadd.f32 0.0, %v640
      %642 = vdwg.mxu0
      %643 = vmatpush.msra.mxu0 %v613
      %644 = vmatpush.msra.mxu0 %v612
      %645 = vmatpush.msra.mxu0 %v611
      %646 = vmatpush.msra.mxu0 %v610
      %647 = vmatpush.msra.mxu0 %v609
      %648 = vmatpush.msra.mxu0 %v608
      %649 = vmatpush.msra.mxu0 %v607
      %650 = vmatpush.msra.mxu0 %v606
      %651 = vmatpush.msra.mxu0 %v605
      %652 = vmatpush.msra.mxu0 %v604
      %653 = vmatpush.msra.mxu0 %v603
      %654 = vmatpush.msra.mxu0 %v602
      %655 = vmatpush.msra.mxu0 %v601
      %656 = vmatpush.msra.mxu0 %v600
      %657 = vmatpush.msra.mxu0 %v599
      %658 = vmatpush.msra.mxu0 %v598
      %659 = vmatmul.f32.gmra.mxu0 %v575
      %v660 = vpop.f32.mrf.mxu0
      %v661 = vadd.f32 %v632, %v660
      %662 = vmatmul.f32.gmra.mxu0 %v577
      %v663 = vpop.f32.mrf.mxu0
      %v664 = vadd.f32 %v635, %v663
      %665 = vmatmul.f32.gmra.mxu0 %v579
      %v666 = vpop.f32.mrf.mxu0
      %v667 = vadd.f32 %v638, %v666
      %668 = vmatmul.f32.gmra.mxu0 %v581
      %v669 = vpop.f32.mrf.mxu0
      %v670 = vadd.f32 %v641, %v669
      %671 = vdwg.mxu0
      %672 = vmatpush.msra.mxu0 %v557
      %673 = vmatpush.msra.mxu0 %v556
      %674 = vmatpush.msra.mxu0 %v555
      %675 = vmatpush.msra.mxu0 %v554
      %676 = vmatpush.msra.mxu0 %v553
      %677 = vmatpush.msra.mxu0 %v552
      %678 = vmatpush.msra.mxu0 %v551
      %679 = vmatpush.msra.mxu0 %v550
      %680 = vmatpush.msra.mxu0 %v549
      %681 = vmatpush.msra.mxu0 %v548
      %682 = vmatpush.msra.mxu0 %v547
      %683 = vmatpush.msra.mxu0 %v546
      %684 = vmatpush.msra.mxu0 %v545
      %685 = vmatpush.msra.mxu0 %v544
      %686 = vmatpush.msra.mxu0 %v543
      %687 = vmatpush.msra.mxu0 %v542
      %688 = vmatmul.f32.gmra.mxu0 %v449
      %v689 = vpop.f32.mrf.mxu0
      %v690 = vadd.f32 %v661, %v689
      %691 = vmatmul.f32.gmra.mxu0 %v452
      %v692 = vpop.f32.mrf.mxu0
      %v693 = vadd.f32 %v664, %v692
      %694 = vmatmul.f32.gmra.mxu0 %v455
      %v695 = vpop.f32.mrf.mxu0
      %v696 = vadd.f32 %v667, %v695
      %697 = vmatmul.f32.gmra.mxu0 %v458
      %v698 = vpop.f32.mrf.mxu0
      %v699 = vadd.f32 %v670, %v698
      %700 = vdwg.mxu0
      %701 = vmatpush.msra.mxu0 %v573
      %702 = vmatpush.msra.mxu0 %v572
      %703 = vmatpush.msra.mxu0 %v571
      %704 = vmatpush.msra.mxu0 %v570
      %705 = vmatpush.msra.mxu0 %v569
      %706 = vmatpush.msra.mxu0 %v568
      %707 = vmatpush.msra.mxu0 %v567
      %708 = vmatpush.msra.mxu0 %v566
      %709 = vmatpush.msra.mxu0 %v565
      %710 = vmatpush.msra.mxu0 %v564
      %711 = vmatpush.msra.mxu0 %v563
      %712 = vmatpush.msra.mxu0 %v562
      %713 = vmatpush.msra.mxu0 %v561
      %714 = vmatpush.msra.mxu0 %v560
      %715 = vmatpush.msra.mxu0 %v559
      %716 = vmatpush.msra.mxu0 %v558
      %717 = vmatmul.f32.gmra.mxu0 %v478
      %v718 = vpop.f32.mrf.mxu0
      %v719 = vadd.f32 %v690, %v718
      %720 = vmatmul.f32.gmra.mxu0 %v481
      %v721 = vpop.f32.mrf.mxu0
      %v722 = vadd.f32 %v693, %v721
      %723 = vmatmul.f32.gmra.mxu0 %v484
      %v724 = vpop.f32.mrf.mxu0
      %v725 = vadd.f32 %v696, %v724
      %726 = vmatmul.f32.gmra.mxu0 %v487
      %v727 = vpop.f32.mrf.mxu0
      %v728 = vadd.f32 %v699, %v727
      %729 = vdwg.mxu0
      %v730 = vld [vmem:[#allocation2] sm:$0xfc]
      %v731 = vld [vmem:[#allocation2 + $0x8] sm:$0xfc]
      %v732 = vld [vmem:[#allocation2 + $0x10] sm:$0xff]
      %v733 = vld [vmem:[#allocation2 + $0x18] sm:$0xff]
      %v734 = vld [vmem:[#allocation2 + $0x20] sm:$0xff]
      %v735 = vld [vmem:[#allocation2 + $0x28] sm:$0xff]
      %v736 = vld [vmem:[#allocation2 + $0x30] sm:$0xff]
      %v737 = vld [vmem:[#allocation2 + $0x38] sm:$0xff]
      %v738 = vld [vmem:[#allocation2 + $0x40] sm:$0x3]
      %v739 = vld [vmem:[#allocation2 + $0x48] sm:$0x3]
      %s740 = scalar_lea.vmem %s4, 512
      %v741 = vld [vmem:[%s740] sm:$0xff]
      %v742 = vld [vmem:[%s740 + $0x8] sm:$0xff]
      %v743 = vld [vmem:[%s740 + $0x10] sm:$0xff]
      %v744 = vld [vmem:[%s740 + $0x18] sm:$0xff]
      %v745 = vld [vmem:[%s740 + $0x20] sm:$0xff]
      %v746 = vld [vmem:[%s740 + $0x28] sm:$0xff]
      %v747 = vld [vmem:[%s740 + $0x30] sm:$0xff]
      %v748 = vld [vmem:[%s740 + $0x38] sm:$0xff]
      %v749 = vld [vmem:[%s740 + $0x40] sm:$0xff]
      %v750 = vld [vmem:[%s740 + $0x48] sm:$0xff]
      %v751 = vld [vmem:[%s740 + $0x50] sm:$0xff]
      %v752 = vld [vmem:[%s740 + $0x58] sm:$0xff]
      %v753 = vld [vmem:[%s740 + $0x60] sm:$0xff]
      %v754 = vld [vmem:[%s740 + $0x68] sm:$0xff]
      %v755 = vld [vmem:[%s740 + $0x70] sm:$0xff]
      %v756 = vld [vmem:[%s740 + $0x78] sm:$0xff]
      %v757 = vld [vmem:[%s740 + $0x80] sm:$0xff]
      %v758 = vld [vmem:[%s740 + $0x88] sm:$0xff]
      %v759 = vld [vmem:[%s740 + $0x90] sm:$0xff]
      %v760 = vld [vmem:[%s740 + $0x98] sm:$0xff]
      %v761 = vld [vmem:[%s740 + $0xa0] sm:$0xff]
      %v762 = vld [vmem:[%s740 + $0xa8] sm:$0xff]
      %v763 = vld [vmem:[%s740 + $0xb0] sm:$0xff]
      %v764 = vld [vmem:[%s740 + $0xb8] sm:$0xff]
      %v765 = vld [vmem:[%s740 + $0xc0] sm:$0xff]
      %v766 = vld [vmem:[%s740 + $0xc8] sm:$0xff]
      %v767 = vld [vmem:[%s740 + $0xd0] sm:$0xff]
      %v768 = vld [vmem:[%s740 + $0xd8] sm:$0xff]
      %v769 = vld [vmem:[%s740 + $0xe0] sm:$0xff]
      %v770 = vld [vmem:[%s740 + $0xe8] sm:$0xff]
      %v771 = vld [vmem:[%s740 + $0xf0] sm:$0xff]
      %v772 = vld [vmem:[%s740 + $0xf8] sm:$0xff]
      %vm783 = vcmask 1045504
      %v784 = vrot.slane %v730, 2
      %v785 = vrot.slane %v732, 2
      %v786 = vsel %vm783, %v784, %v785
      %v787 = vrot.slane %v731, 2
      %v788 = vrot.slane %v733, 2
      %v789 = vsel %vm783, %v787, %v788
      %v790 = vrot.slane %v734, 2
      %v791 = vsel %vm783, %v785, %v790
      %v792 = vrot.slane %v735, 2
      %v793 = vsel %vm783, %v788, %v792
      %v794 = vrot.slane %v736, 2
      %v795 = vsel %vm783, %v790, %v794
      %v796 = vrot.slane %v737, 2
      %v797 = vsel %vm783, %v792, %v796
      %v798 = vrot.slane %v738, 2
      %v799 = vsel %vm783, %v794, %v798
      %v800 = vrot.slane %v739, 2
      %v801 = vsel %vm783, %v796, %v800
      %810 = vmatpush.msra.mxu0 %v756
      %811 = vmatpush.msra.mxu0 %v755
      %812 = vmatpush.msra.mxu0 %v754
      %813 = vmatpush.msra.mxu0 %v753
      %814 = vmatpush.msra.mxu0 %v752
      %815 = vmatpush.msra.mxu0 %v751
      %816 = vmatpush.msra.mxu0 %v750
      %817 = vmatpush.msra.mxu0 %v749
      %818 = vmatpush.msra.mxu0 %v748
      %819 = vmatpush.msra.mxu0 %v747
      %820 = vmatpush.msra.mxu0 %v746
      %821 = vmatpush.msra.mxu0 %v745
      %822 = vmatpush.msra.mxu0 %v744
      %823 = vmatpush.msra.mxu0 %v743
      %824 = vmatpush.msra.mxu0 %v742
      %825 = vmatpush.msra.mxu0 %v741
      %826 = vmatmul.f32.gmra.mxu0 %v786
      %v827 = vpop.f32.mrf.mxu0
      %v828 = vadd.f32 0.0, %v827
      %829 = vmatmul.f32.gmra.mxu0 %v791
      %v830 = vpop.f32.mrf.mxu0
      %v831 = vadd.f32 0.0, %v830
      %832 = vmatmul.f32.gmra.mxu0 %v795
      %v833 = vpop.f32.mrf.mxu0
      %v834 = vadd.f32 0.0, %v833
      %835 = vmatmul.f32.gmra.mxu0 %v799
      %v836 = vpop.f32.mrf.mxu0
      %v837 = vadd.f32 0.0, %v836
      %838 = vdwg.mxu0
      %839 = vmatpush.msra.mxu0 %v772
      %840 = vmatpush.msra.mxu0 %v771
      %841 = vmatpush.msra.mxu0 %v770
      %842 = vmatpush.msra.mxu0 %v769
      %843 = vmatpush.msra.mxu0 %v768
      %844 = vmatpush.msra.mxu0 %v767
      %845 = vmatpush.msra.mxu0 %v766
      %846 = vmatpush.msra.mxu0 %v765
      %847 = vmatpush.msra.mxu0 %v764
      %848 = vmatpush.msra.mxu0 %v763
      %849 = vmatpush.msra.mxu0 %v762
      %850 = vmatpush.msra.mxu0 %v761
      %851 = vmatpush.msra.mxu0 %v760
      %852 = vmatpush.msra.mxu0 %v759
      %853 = vmatpush.msra.mxu0 %v758
      %854 = vmatpush.msra.mxu0 %v757
      %855 = vmatmul.f32.gmra.mxu0 %v789
      %v856 = vpop.f32.mrf.mxu0
      %v857 = vadd.f32 %v828, %v856
      %858 = vmatmul.f32.gmra.mxu0 %v793
      %v859 = vpop.f32.mrf.mxu0
      %v860 = vadd.f32 %v831, %v859
      %861 = vmatmul.f32.gmra.mxu0 %v797
      %v862 = vpop.f32.mrf.mxu0
      %v863 = vadd.f32 %v834, %v862
      %864 = vmatmul.f32.gmra.mxu0 %v801
      %v865 = vpop.f32.mrf.mxu0
      %v866 = vadd.f32 %v837, %v865
      %867 = vdwg.mxu0
      %v868 = vadd.f32 %v719, %v857
      %v869 = vadd.f32 %v722, %v860
      %v870 = vadd.f32 %v725, %v863
      %v871 = vadd.f32 %v728, %v866
      %v872 = vld [vmem:[%s5] sm:$0x1]
      %v874 = vperm.slane %v872, 0
      %v876 = vadd.f32 %v868, %v874
      %v877 = vadd.f32 %v869, %v874
      %v878 = vadd.f32 %v870, %v874
      %v879 = vadd.f32 %v871, %v874
      %v880 = vmax.f32 %v876, 0.0
      %v881 = vmax.f32 %v877, 0.0
      %v882 = vmax.f32 %v878, 0.0
      %v883 = vmax.f32 %v879, 0.0
      %884 = vst [vmem:[%s336] sm:$0xff] %v880
      %885 = vst [vmem:[%s336 + $0x8] sm:$0xff] %v881
      %886 = vst [vmem:[%s336 + $0x10] sm:$0xff] %v882
      %887 = vst [vmem:[%s336 + $0x18] sm:$0xff] %v883
      %v888 = vadd.f32 %v880, %v881
      %v889 = vadd.f32 %v888, %v882
      %v890 = vadd.f32 %v889, %v883
      %v891 = vrot.slane %v890, 4
      %v892 = vadd.f32 %v890, %v891
      %v893 = vrot.slane %v892, 2
      %v894 = vadd.f32 %v892, %v893
      %v895 = vrot.slane %v894, 1
      %v896 = vadd.f32 %v894, %v895
      %897 = vst [vmem:[%s339] sm:$0x1] %v896
      %v898 = vmul.f32 %v880, %v880
      %v899 = vmul.f32 %v881, %v881
      %v900 = vmul.f32 %v882, %v882
      %v901 = vmul.f32 %v883, %v883
      %v902 = vadd.f32 %v898, %v899
      %v903 = vadd.f32 %v902, %v900
      %v904 = vadd.f32 %v903, %v901
      %v905 = vrot.slane %v904, 4
      %v906 = vadd.f32 %v904, %v905
      %v907 = vrot.slane %v906, 2
      %v908 = vadd.f32 %v906, %v907
      %v909 = vrot.slane %v908, 1
      %v910 = vadd.f32 %v908, %v909
      %911 = vst [vmem:[%s342] sm:$0x1] %v910
      %p912 = scmp.lt.s32.totalorder %s20, 1
      %s913 = scalar_select %p912, %s20, 1
      %s914 = smul.addr %s913, 4
      %s915 = smul.addr %s914, 8
      %s916 = scalar_lea.vmem %s6, %s915
      %p917 = scmp.lt.s32.totalorder %s20, 1
      %s918 = scalar_select %p917, %s20, 1
      %s919 = scalar_lea.vmem %s7, %s918
      %p920 = scmp.lt.s32.totalorder %s20, 1
      %s921 = scalar_select %p920, %s20, 1
      %s922 = scalar_lea.vmem %s8, %s921
      // Predicated region
      $region45: #{decoder_forward.6} parent=43 // pred_check
        %p923 = pneg %p174
      $region46: #{decoder_forward.6} parent=43 // pred_check_branch
        %925 = sbr.rel (%p923) target = $region48
      $region47: #{decoder_forward.6} parent=43 // pred_region
        _
      $region48: #{decoder_forward.6} parent=43 // pred_fallthru
        _
      // Predicated region
      $region49: #{decoder_forward.6} parent=43 // pred_check
        %p926 = pneg %p200
      $region50: #{decoder_forward.6} parent=43 // pred_check_branch
        %928 = sbr.rel (%p926) target = $region52
      $region51: #{decoder_forward.6} parent=43 // pred_region
        _
      $region52: #{decoder_forward.6} parent=43 // pred_fallthru
        _
      // Predicated region
      $region53: #{decoder_forward.6} parent=43 // pred_check
        %p929 = pneg %p226
      $region54: #{decoder_forward.6} parent=43 // pred_check_branch
        %931 = sbr.rel (%p929) target = $region56
      $region55: #{decoder_forward.6} parent=43 // pred_region
        _
      $region56: #{decoder_forward.6} parent=43 // pred_fallthru
        _
    $region44: #{decoder_forward.6} parent=5 // pred_fallthru
      _
    %p932 = scmp.le.s32.totalorder 2, %s15
    // Predicated region
    $region57: #{decoder_forward.6} parent=5 // pred_check
      %p933 = pneg %p932
    $region58: #{decoder_forward.6} parent=5 // pred_check_branch
      %935 = sbr.rel (%p933) target = $region60
    $region59: #{decoder_forward.6} parent=5 // pred_region
      %s936 = ssub.s32 %s15, 2
      // Predicated region
      $region61: #{decoder_forward.6} parent=59 // pred_check
        %p937 = pneg %p180
      $region62: #{decoder_forward.6} parent=59 // pred_check_branch
        %939 = sbr.rel (%p937) target = $region64
      $region63: #{decoder_forward.6} parent=59 // pred_region
        %p940 = scmp.lt.s32.totalorder %s21, 1
        %s941 = scalar_select %p940, %s21, 1
        %s942 = smul.addr %s941, 4
        %s943 = smul.addr %s942, 8
        %s944 = scalar_lea.vmem %s6, %s943
      $region64: #{decoder_forward.6} parent=59 // pred_fallthru
        _
      // Predicated region
      $region65: #{decoder_forward.6} parent=59 // pred_check
        %p945 = pneg %p206
      $region66: #{decoder_forward.6} parent=59 // pred_check_branch
        %947 = sbr.rel (%p945) target = $region68
      $region67: #{decoder_forward.6} parent=59 // pred_region
        %p948 = scmp.lt.s32.totalorder %s21, 1
        %s949 = scalar_select %p948, %s21, 1
        %s950 = scalar_lea.vmem %s7, %s949
      $region68: #{decoder_forward.6} parent=59 // pred_fallthru
        _
      // Predicated region
      $region69: #{decoder_forward.6} parent=59 // pred_check
        %p951 = pneg %p232
      $region70: #{decoder_forward.6} parent=59 // pred_check_branch
        %953 = sbr.rel (%p951) target = $region72
      $region71: #{decoder_forward.6} parent=59 // pred_region
        %p954 = scmp.lt.s32.totalorder %s21, 1
        %s955 = scalar_select %p954, %s21, 1
        %s956 = scalar_lea.vmem %s8, %s955
      $region72: #{decoder_forward.6} parent=59 // pred_fallthru
        _
    $region60: #{decoder_forward.6} parent=5 // pred_fallthru
      _
  $region6: #{decoder_forward.6} parent=0 // loop_footer
    %s19 = sadd.s32 1, %s15
  $region7: #{decoder_forward.6} parent=0 // loop_footer_branch
    %14 = sbr.rel target = $region3
  $region8: #{decoder_forward.6} parent=0 // loop_exit
    _

// kernel: decoder_forward.7
$region0: #{decoder_forward.7}
  #allocation0 [shape = 'u32[]', space=smem, size = 0x4, offset = 0x4, fixed_abs, tag = 'smem constant byte address 0x4 - core index']
  #allocation1 [shape = 'u32[72,128]{1,0:T(1,128)}', space=vmem, size = 0x9000, scoped, tag = 'internal scratch']
  #allocation2 [shape = 'f32[34,128]{1,0:T(8,128)}', space=vmem, size = 0x5000, scoped, tag = 'scratch operand']
  %s0 = inlined_call_operand.vmem [shape: f32[2,32,128], index: 0, kind: input, shape index: {}]
  %s1 = inlined_call_operand.vmem [shape: f32[3,128,128], index: 1, kind: input, shape index: {}]
  %s2 = inlined_call_operand.vmem [shape: f32[1,128], index: 2, kind: input, shape index: {}]
  %s3 = inlined_call_operand.vmem [shape: f32[1,128], index: 3, kind: input, shape index: {}]
  %s4 = inlined_call_operand.vmem [shape: f32[1,128], index: 4, kind: input, shape index: {}]
  %s5 = inlined_call_operand.vmem [shape: f32[2,32,128], index: 5, kind: output, shape index: {}]
  %s6 = sld [smem:[#allocation0]]
  $region53: #{decoder_forward.7} parent=0
    _
  %s8 = ssub.s32 1, %s6
  %s9 = scalar_select 0, %s8, %s6
  loop: start=0, step=1, limit=4
  $region2: #{decoder_forward.7} parent=0 // loop_pre_header
    _
  $region3: #{decoder_forward.7} parent=0 // loop_header
    %s11 = sphi 0, %s15
    %p12 = scmp.ge.s32.totalorder %s11, 4
    %s21 = sphi 0, %s23
    %s24 = sphi 0, %s21
    %s25 = sphi 0, %s24
    %s41 = sphi 0, %s25
    %s45 = sphi 0, %s45
    %s47 = sphi 0, %s45
    %s48 = sphi 0, %s47
    %s62 = sphi 0, %s48
    %s66 = sphi 0, %s66
    %s68 = sphi 0, %s66
    %s69 = sphi 0, %s68
    %s83 = sphi 0, %s69
    %s87 = sphi 0, %s87
    %s89 = sphi 0, %s87
    %s90 = sphi 0, %s89
    %s104 = sphi 0, %s90
    %s108 = sphi 0, %s108
    %s110 = sphi 0, %s108
    %s111 = sphi 0, %s110
    %s125 = sphi 0, %s111
    %s131 = sphi 0, %s133
    %s134 = sphi 0, %s131
    %s135 = sphi 0, %s134
    %s151 = sphi 0, %s135
  $region4: #{decoder_forward.7} parent=0 // loop_header_branch
    %14 = sbr.rel (%p12) target = $region8
  $region5: #{decoder_forward.7} parent=0 // loop_body
    %s16 = ssub.s32 %s11, 1
    %s17 = ssub.s32 %s11, 2
    %s18 = sadd.s32 %s11, 1
    %s19 = ssub.s32 %s11, %s18
    %p20 = scmp.eq.s32.totalorder %s19, 0
    %s22 = sadd.s32 %s21, 1
    %s23 = scalar_select %p20, %s21, %s22
    %p26 = pneg %p20
    %p27 = scmp.eq.s32.totalorder %s11, 1
    %p28 = por %p26, %p27
    %p29 = scmp.ne.s32.totalorder %s21, %s24
    %p30 = scmp.eq.s32.totalorder %s11, 0
    %p31 = por %p29, %p30
    %p32 = scmp.ne.s32.totalorder %s21, %s24
    %p33 = scmp.eq.s32.totalorder %s16, 1
    %p34 = por %p32, %p33
    %p35 = scmp.ne.s32.totalorder %s24, %s25
    %p36 = scmp.eq.s32.totalorder %s16, 0
    %p37 = por %p35, %p36
    %p38 = scmp.ne.s32.totalorder %s24, %s25
    %p39 = scmp.eq.s32.totalorder %s17, 1
    %p40 = por %p38, %p39
    %p42 = scmp.ne.s32.totalorder %s25, %s41
    %p43 = scmp.eq.s32.totalorder %s17, 0
    %p44 = por %p42, %p43
    %s46 = sadd.s32 %s45, 1
    %p49 = scmp.eq.s32.totalorder %s11, 1
    %p50 = scmp.ne.s32.totalorder %s45, %s47
    %p51 = scmp.eq.s32.totalorder %s11, 0
    %p52 = por %p50, %p51
    %p53 = scmp.ne.s32.totalorder %s45, %s47
    %p54 = scmp.eq.s32.totalorder %s16, 1
    %p55 = por %p53, %p54
    %p56 = scmp.ne.s32.totalorder %s47, %s48
    %p57 = scmp.eq.s32.totalorder %s16, 0
    %p58 = por %p56, %p57
    %p59 = scmp.ne.s32.totalorder %s47, %s48
    %p60 = scmp.eq.s32.totalorder %s17, 1
    %p61 = por %p59, %p60
    %p63 = scmp.ne.s32.totalorder %s48, %s62
    %p64 = scmp.eq.s32.totalorder %s17, 0
    %p65 = por %p63, %p64
    %s67 = sadd.s32 %s66, 1
    %p70 = scmp.eq.s32.totalorder %s11, 1
    %p71 = scmp.ne.s32.totalorder %s66, %s68
    %p72 = scmp.eq.s32.totalorder %s11, 0
    %p73 = por %p71, %p72
    %p74 = scmp.ne.s32.totalorder %s66, %s68
    %p75 = scmp.eq.s32.totalorder %s16, 1
    %p76 = por %p74, %p75
    %p77 = scmp.ne.s32.totalorder %s68, %s69
    %p78 = scmp.eq.s32.totalorder %s16, 0
    %p79 = por %p77, %p78
    %p80 = scmp.ne.s32.totalorder %s68, %s69
    %p81 = scmp.eq.s32.totalorder %s17, 1
    %p82 = por %p80, %p81
    %p84 = scmp.ne.s32.totalorder %s69, %s83
    %p85 = scmp.eq.s32.totalorder %s17, 0
    %p86 = por %p84, %p85
    %s88 = sadd.s32 %s87, 1
    %p91 = scmp.eq.s32.totalorder %s11, 1
    %p92 = scmp.ne.s32.totalorder %s87, %s89
    %p93 = scmp.eq.s32.totalorder %s11, 0
    %p94 = por %p92, %p93
    %p95 = scmp.ne.s32.totalorder %s87, %s89
    %p96 = scmp.eq.s32.totalorder %s16, 1
    %p97 = por %p95, %p96
    %p98 = scmp.ne.s32.totalorder %s89, %s90
    %p99 = scmp.eq.s32.totalorder %s16, 0
    %p100 = por %p98, %p99
    %p101 = scmp.ne.s32.totalorder %s89, %s90
    %p102 = scmp.eq.s32.totalorder %s17, 1
    %p103 = por %p101, %p102
    %p105 = scmp.ne.s32.totalorder %s90, %s104
    %p106 = scmp.eq.s32.totalorder %s17, 0
    %p107 = por %p105, %p106
    %s109 = sadd.s32 %s108, 1
    %p112 = scmp.eq.s32.totalorder %s11, 1
    %p113 = scmp.ne.s32.totalorder %s108, %s110
    %p114 = scmp.eq.s32.totalorder %s11, 0
    %p115 = por %p113, %p114
    %p116 = scmp.ne.s32.totalorder %s108, %s110
    %p117 = scmp.eq.s32.totalorder %s16, 1
    %p118 = por %p116, %p117
    %p119 = scmp.ne.s32.totalorder %s110, %s111
    %p120 = scmp.eq.s32.totalorder %s16, 0
    %p121 = por %p119, %p120
    %p122 = scmp.ne.s32.totalorder %s110, %s111
    %p123 = scmp.eq.s32.totalorder %s17, 1
    %p124 = por %p122, %p123
    %p126 = scmp.ne.s32.totalorder %s111, %s125
    %p127 = scmp.eq.s32.totalorder %s17, 0
    %p128 = por %p126, %p127
    %s129 = ssub.s32 %s11, %s18
    %p130 = scmp.eq.s32.totalorder %s129, 0
    %s132 = sadd.s32 %s131, 1
    %s133 = scalar_select %p130, %s131, %s132
    %p136 = pneg %p130
    %p137 = scmp.eq.s32.totalorder %s11, 1
    %p138 = por %p136, %p137
    %p139 = scmp.ne.s32.totalorder %s131, %s134
    %p140 = scmp.eq.s32.totalorder %s11, 0
    %p141 = por %p139, %p140
    %p142 = scmp.ne.s32.totalorder %s131, %s134
    %p143 = scmp.eq.s32.totalorder %s16, 1
    %p144 = por %p142, %p143
    %p145 = scmp.ne.s32.totalorder %s134, %s135
    %p146 = scmp.eq.s32.totalorder %s16, 0
    %p147 = por %p145, %p146
    %p148 = scmp.ne.s32.totalorder %s134, %s135
    %p149 = scmp.eq.s32.totalorder %s17, 1
    %p150 = por %p148, %p149
    %p152 = scmp.ne.s32.totalorder %s135, %s151
    %p153 = scmp.eq.s32.totalorder %s17, 0
    %p154 = por %p152, %p153
    %p155 = scmp.le.s32.totalorder 1, %s11
    %p156 = scmp.lt.s32.totalorder %s11, 3
    %p157 = pnand %p155, %p156
    %p158 = pneg %p157
    // Predicated region
    $region9: #{decoder_forward.7} parent=5 // pred_check
      _
    $region10: #{decoder_forward.7} parent=5 // pred_check_branch
      %160 = sbr.rel (%p157) target = $region12
    $region11: #{decoder_forward.7} parent=5 // pred_region
      %s161 = ssub.s32 %s11, 1
      // Predicated region
      $region13: #{decoder_forward.7} parent=11 // pred_check
        %p162 = pneg %p58
      $region14: #{decoder_forward.7} parent=11 // pred_check_branch
        %164 = sbr.rel (%p162) target = $region16
      $region15: #{decoder_forward.7} parent=11 // pred_region
        _
      $region16: #{decoder_forward.7} parent=11 // pred_fallthru
        _
      // Predicated region
      $region17: #{decoder_forward.7} parent=11 // pred_check
        %p165 = pneg %p79
      $region18: #{decoder_forward.7} parent=11 // pred_check_branch
        %167 = sbr.rel (%p165) target = $region20
      $region19: #{decoder_forward.7} parent=11 // pred_region
        _
      $region20: #{decoder_forward.7} parent=11 // pred_fallthru
        _
      // Predicated region
      $region21: #{decoder_forward.7} parent=11 // pred_check
        %p168 = pneg %p100
      $region22: #{decoder_forward.7} parent=11 // pred_check_branch
        %170 = sbr.rel (%p168) target = $region24
      $region23: #{decoder_forward.7} parent=11 // pred_region
        _
      $region24: #{decoder_forward.7} parent=11 // pred_fallthru
        _
      // Predicated region
      $region25: #{decoder_forward.7} parent=11 // pred_check
        %p171 = pneg %p121
      $region26: #{decoder_forward.7} parent=11 // pred_check_branch
        %173 = sbr.rel (%p171) target = $region28
      $region27: #{decoder_forward.7} parent=11 // pred_region
        _
      $region28: #{decoder_forward.7} parent=11 // pred_fallthru
        _
    $region12: #{decoder_forward.7} parent=5 // pred_fallthru
      _
    %p174 = scmp.lt.s32.totalorder %s11, 2
    // Predicated region
    $region29: #{decoder_forward.7} parent=5 // pred_check
      %p175 = pneg %p174
    $region30: #{decoder_forward.7} parent=5 // pred_check_branch
      %177 = sbr.rel (%p175) target = $region32
    $region31: #{decoder_forward.7} parent=5 // pred_region
      // Predicated region
      $region33: #{decoder_forward.7} parent=31 // pred_check
        %p178 = pneg %p31
      $region34: #{decoder_forward.7} parent=31 // pred_check_branch
        %180 = sbr.rel (%p178) target = $region36
      $region35: #{decoder_forward.7} parent=31 // pred_region
        %p181 = scmp.lt.s32.totalorder %s11, 1
        %s182 = scalar_select %p181, %s11, 1
        %s183 = smul.addr %s182, 4
        %s184 = smul.addr %s183, 8
        %s185 = scalar_lea.vmem %s0, %s184
      $region36: #{decoder_forward.7} parent=31 // pred_fallthru
        _
    $region32: #{decoder_forward.7} parent=5 // pred_fallthru
      _
    %p186 = scmp.le.s32.totalorder 1, %s11
    %p187 = scmp.lt.s32.totalorder %s11, 3
    %p188 = pnand %p186, %p187
    %p189 = pneg %p188
    // Predicated region
    $region37: #{decoder_forward.7} parent=5 // pred_check
      _
    $region38: #{decoder_forward.7} parent=5 // pred_check_branch
      %191 = sbr.rel (%p188) target = $region40
    $region39: #{decoder_forward.7} parent=5 // pred_region
      %s192 = ssub.s32 %s11, 1
      %p193 = scmp.lt.s32.totalorder %s16, 1
      %s194 = scalar_select %p193, %s16, 1
      %s195 = smul.addr %s194, 4
      %s196 = smul.addr %s195, 8
      %s197 = scalar_lea.vmem %s0, %s196
      %p198 = pneg %p37
      %p199 = pneg %p34
      %p200 = pneg %p58
      %p201 = pneg %p55
      %p202 = pneg %p79
      %p203 = pneg %p76
      %p204 = pneg %p100
      %p205 = pneg %p97
      %p206 = pneg %p121
      %p207 = pneg %p118
      %p208 = pneg %p147
      %p209 = pneg %p144
      %p210 = scmp.lt.s32.totalorder %s16, 1
      %s211 = scalar_select %p210, %s16, 1
      %s212 = smul.addr %s211, 4
      %s213 = smul.addr %s212, 8
      %s214 = scalar_lea.vmem %s5, %s213
      %p215 = scmp.lt.s32.totalorder %s16, 1
      %s216 = scalar_select %p215, %s16, 1
      %s217 = smul.addr %s216, 4
      %s218 = smul.addr %s217, 8
      %s219 = scalar_lea.vmem %s0, %s218
      %p220 = scmp.lt.s32.totalorder %s16, 1
      %s221 = scalar_select %p220, %s16, 1
      %s222 = smul.addr %s221, 4
      %s223 = smul.addr %s222, 8
      %s224 = scalar_lea.vmem %s5, %s223
      %v225 = vld [vmem:[%s219] sm:$0xff]
      %v226 = vld [vmem:[%s219 + $0x8] sm:$0xff]
      %v227 = vld [vmem:[%s219 + $0x10] sm:$0xff]
      %v228 = vld [vmem:[%s219 + $0x18] sm:$0xff]
      %v229 = vld [vmem:[%s2] sm:$0x1]
      %v231 = vperm.slane %v229, 0
      %v233 = vmul.f32 %v225, %v231
      %v234 = vmul.f32 %v226, %v231
      %v235 = vmul.f32 %v227, %v231
      %v236 = vmul.f32 %v228, %v231
      %v237 = vld [vmem:[%s3] sm:$0x1]
      %v239 = vperm.slane %v237, 0
      %v241 = vadd.f32 %v233, %v239
      %v242 = vadd.f32 %v234, %v239
      %v243 = vadd.f32 %v235, %v239
      %v244 = vadd.f32 %v236, %v239
      %245 = vst [vmem:[#allocation2] sm:$0x1] 0.0
      %246 = vst [vmem:[#allocation2 + $0x21] sm:$0x1] 0.0
      %247 = vst [vmem:[#allocation2 + $0x1] sm:$0xff] %v241
      %248 = vst [vmem:[#allocation2 + $0x9] sm:$0xff] %v242
      %249 = vst [vmem:[#allocation2 + $0x11] sm:$0xff] %v243
      %250 = vst [vmem:[#allocation2 + $0x19] sm:$0xff] %v244
      %s251 = scalar_lea.vmem %s1, 128
      %v252 = vld [vmem:[%s251] sm:$0xff]
      %v253 = vld [vmem:[%s251 + $0x8] sm:$0xff]
      %v254 = vld [vmem:[%s251 + $0x10] sm:$0xff]
      %v255 = vld [vmem:[%s251 + $0x18] sm:$0xff]
      %v256 = vld [vmem:[%s251 + $0x20] sm:$0xff]
      %v257 = vld [vmem:[%s251 + $0x28] sm:$0xff]
      %v258 = vld [vmem:[%s251 + $0x30] sm:$0xff]
      %v259 = vld [vmem:[%s251 + $0x38] sm:$0xff]
      %v260 = vld [vmem:[%s251 + $0x40] sm:$0xff]
      %v261 = vld [vmem:[%s251 + $0x48] sm:$0xff]
      %v262 = vld [vmem:[%s251 + $0x50] sm:$0xff]
      %v263 = vld [vmem:[%s251 + $0x58] sm:$0xff]
      %v264 = vld [vmem:[%s251 + $0x60] sm:$0xff]
      %v265 = vld [vmem:[%s251 + $0x68] sm:$0xff]
      %v266 = vld [vmem:[%s251 + $0x70] sm:$0xff]
      %v267 = vld [vmem:[%s251 + $0x78] sm:$0xff]
      %v268 = vld [vmem:[#allocation2] sm:$0xff]
      %v269 = vld [vmem:[#allocation2 + $0x8] sm:$0xff]
      %v270 = vld [vmem:[#allocation2 + $0x10] sm:$0xff]
      %v271 = vld [vmem:[#allocation2 + $0x18] sm:$0xff]
      %v272 = vld [vmem:[%s1] sm:$0xff]
      %v273 = vld [vmem:[%s1 + $0x8] sm:$0xff]
      %v274 = vld [vmem:[%s1 + $0x10] sm:$0xff]
      %v275 = vld [vmem:[%s1 + $0x18] sm:$0xff]
      %v276 = vld [vmem:[%s1 + $0x20] sm:$0xff]
      %v277 = vld [vmem:[%s1 + $0x28] sm:$0xff]
      %v278 = vld [vmem:[%s1 + $0x30] sm:$0xff]
      %v279 = vld [vmem:[%s1 + $0x38] sm:$0xff]
      %v280 = vld [vmem:[%s1 + $0x40] sm:$0xff]
      %v281 = vld [vmem:[%s1 + $0x48] sm:$0xff]
      %v282 = vld [vmem:[%s1 + $0x50] sm:$0xff]
      %v283 = vld [vmem:[%s1 + $0x58] sm:$0xff]
      %v284 = vld [vmem:[%s1 + $0x60] sm:$0xff]
      %v285 = vld [vmem:[%s1 + $0x68] sm:$0xff]
      %v286 = vld [vmem:[%s1 + $0x70] sm:$0xff]
      %v287 = vld [vmem:[%s1 + $0x78] sm:$0xff]
      %288 = vmatpush.msra.mxu0 %v287
      %289 = vmatpush.msra.mxu0 %v286
      %290 = vmatpush.msra.mxu0 %v285
      %291 = vmatpush.msra.mxu0 %v284
      %292 = vmatpush.msra.mxu0 %v283
      %293 = vmatpush.msra.mxu0 %v282
      %294 = vmatpush.msra.mxu0 %v281
      %295 = vmatpush.msra.mxu0 %v280
      %296 = vmatpush.msra.mxu0 %v279
      %297 = vmatpush.msra.mxu0 %v278
      %298 = vmatpush.msra.mxu0 %v277
      %299 = vmatpush.msra.mxu0 %v276
      %300 = vmatpush.msra.mxu0 %v275
      %301 = vmatpush.msra.mxu0 %v274
      %302 = vmatpush.msra.mxu0 %v273
      %303 = vmatpush.msra.mxu0 %v272
      %304 = vmatmul.f32.gmra.mxu0 %v268
      %v305 = vpop.f32.mrf.mxu0
      %v306 = vadd.f32 0.0, %v305
      %307 = vmatmul.f32.gmra.mxu0 %v269
      %v308 = vpop.f32.mrf.mxu0
      %v309 = vadd.f32 0.0, %v308
      %310 = vmatmul.f32.gmra.mxu0 %v270
      %v311 = vpop.f32.mrf.mxu0
      %v312 = vadd.f32 0.0, %v311
      %313 = vmatmul.f32.gmra.mxu0 %v271
      %v314 = vpop.f32.mrf.mxu0
      %v315 = vadd.f32 0.0, %v314
      %316 = vdwg.mxu0
      %317 = vmatpush.msra.mxu0 %v267
      %318 = vmatpush.msra.mxu0 %v266
      %319 = vmatpush.msra.mxu0 %v265
      %320 = vmatpush.msra.mxu0 %v264
      %321 = vmatpush.msra.mxu0 %v263
      %322 = vmatpush.msra.mxu0 %v262
      %323 = vmatpush.msra.mxu0 %v261
      %324 = vmatpush.msra.mxu0 %v260
      %325 = vmatpush.msra.mxu0 %v259
      %326 = vmatpush.msra.mxu0 %v258
      %327 = vmatpush.msra.mxu0 %v257
      %328 = vmatpush.msra.mxu0 %v256
      %329 = vmatpush.msra.mxu0 %v255
      %330 = vmatpush.msra.mxu0 %v254
      %331 = vmatpush.msra.mxu0 %v253
      %332 = vmatpush.msra.mxu0 %v252
      %333 = vmatmul.f32.gmra.mxu0 %v241
      %v334 = vpop.f32.mrf.mxu0
      %v335 = vadd.f32 %v306, %v334
      %336 = vmatmul.f32.gmra.mxu0 %v242
      %v337 = vpop.f32.mrf.mxu0
      %v338 = vadd.f32 %v309, %v337
      %339 = vmatmul.f32.gmra.mxu0 %v243
      %v340 = vpop.f32.mrf.mxu0
      %v341 = vadd.f32 %v312, %v340
      %342 = vmatmul.f32.gmra.mxu0 %v244
      %v343 = vpop.f32.mrf.mxu0
      %v344 = vadd.f32 %v315, %v343
      %345 = vdwg.mxu0
      %v346 = vld [vmem:[#allocation2 + $0x2] sm:$0xff]
      %v347 = vld [vmem:[#allocation2 + $0xa] sm:$0xff]
      %v348 = vld [vmem:[#allocation2 + $0x12] sm:$0xff]
      %v349 = vld [vmem:[#allocation2 + $0x1a] sm:$0xff]
      %s350 = scalar_lea.vmem %s1, 256
      %v351 = vld [vmem:[%s350] sm:$0xff]
      %v352 = vld [vmem:[%s350 + $0x8] sm:$0xff]
      %v353 = vld [vmem:[%s350 + $0x10] sm:$0xff]
      %v354 = vld [vmem:[%s350 + $0x18] sm:$0xff]
      %v355 = vld [vmem:[%s350 + $0x20] sm:$0xff]
      %v356 = vld [vmem:[%s350 + $0x28] sm:$0xff]
      %v357 = vld [vmem:[%s350 + $0x30] sm:$0xff]
      %v358 = vld [vmem:[%s350 + $0x38] sm:$0xff]
      %v359 = vld [vmem:[%s350 + $0x40] sm:$0xff]
      %v360 = vld [vmem:[%s350 + $0x48] sm:$0xff]
      %v361 = vld [vmem:[%s350 + $0x50] sm:$0xff]
      %v362 = vld [vmem:[%s350 + $0x58] sm:$0xff]
      %v363 = vld [vmem:[%s350 + $0x60] sm:$0xff]
      %v364 = vld [vmem:[%s350 + $0x68] sm:$0xff]
      %v365 = vld [vmem:[%s350 + $0x70] sm:$0xff]
      %v366 = vld [vmem:[%s350 + $0x78] sm:$0xff]
      %367 = vmatpush.msra.mxu0 %v366
      %368 = vmatpush.msra.mxu0 %v365
      %369 = vmatpush.msra.mxu0 %v364
      %370 = vmatpush.msra.mxu0 %v363
      %371 = vmatpush.msra.mxu0 %v362
      %372 = vmatpush.msra.mxu0 %v361
      %373 = vmatpush.msra.mxu0 %v360
      %374 = vmatpush.msra.mxu0 %v359
      %375 = vmatpush.msra.mxu0 %v358
      %376 = vmatpush.msra.mxu0 %v357
      %377 = vmatpush.msra.mxu0 %v356
      %378 = vmatpush.msra.mxu0 %v355
      %379 = vmatpush.msra.mxu0 %v354
      %380 = vmatpush.msra.mxu0 %v353
      %381 = vmatpush.msra.mxu0 %v352
      %382 = vmatpush.msra.mxu0 %v351
      %383 = vmatmul.f32.gmra.mxu0 %v346
      %v384 = vpop.f32.mrf.mxu0
      %v385 = vadd.f32 0.0, %v384
      %386 = vmatmul.f32.gmra.mxu0 %v347
      %v387 = vpop.f32.mrf.mxu0
      %v388 = vadd.f32 0.0, %v387
      %389 = vmatmul.f32.gmra.mxu0 %v348
      %v390 = vpop.f32.mrf.mxu0
      %v391 = vadd.f32 0.0, %v390
      %392 = vmatmul.f32.gmra.mxu0 %v349
      %v393 = vpop.f32.mrf.mxu0
      %v394 = vadd.f32 0.0, %v393
      %395 = vdwg.mxu0
      %v396 = vadd.f32 %v335, %v385
      %v397 = vadd.f32 %v338, %v388
      %v398 = vadd.f32 %v341, %v391
      %v399 = vadd.f32 %v344, %v394
      %v400 = vld [vmem:[%s4] sm:$0x1]
      %v402 = vperm.slane %v400, 0
      %v404 = vadd.f32 %v396, %v402
      %v405 = vadd.f32 %v397, %v402
      %v406 = vadd.f32 %v398, %v402
      %v407 = vadd.f32 %v399, %v402
      %v408 = vmax.f32 %v404, 0.0
      %v409 = vmax.f32 %v405, 0.0
      %v410 = vmax.f32 %v406, 0.0
      %v411 = vmax.f32 %v407, 0.0
      %412 = vst [vmem:[%s224] sm:$0xff] %v408
      %413 = vst [vmem:[%s224 + $0x8] sm:$0xff] %v409
      %414 = vst [vmem:[%s224 + $0x10] sm:$0xff] %v410
      %415 = vst [vmem:[%s224 + $0x18] sm:$0xff] %v411
      %p416 = scmp.lt.s32.totalorder %s16, 1
      %s417 = scalar_select %p416, %s16, 1
      %s418 = smul.addr %s417, 4
      %s419 = smul.addr %s418, 8
      %s420 = scalar_lea.vmem %s5, %s419
      // Predicated region
      $region41: #{decoder_forward.7} parent=39 // pred_check
        %p421 = pneg %p144
      $region42: #{decoder_forward.7} parent=39 // pred_check_branch
        %423 = sbr.rel (%p421) target = $region44
      $region43: #{decoder_forward.7} parent=39 // pred_region
        _
      $region44: #{decoder_forward.7} parent=39 // pred_fallthru
        _
    $region40: #{decoder_forward.7} parent=5 // pred_fallthru
      _
    %p424 = scmp.le.s32.totalorder 2, %s11
    // Predicated region
    $region45: #{decoder_forward.7} parent=5 // pred_check
      %p425 = pneg %p424
    $region46: #{decoder_forward.7} parent=5 // pred_check_branch
      %427 = sbr.rel (%p425) target = $region48
    $region47: #{decoder_forward.7} parent=5 // pred_region
      %s428 = ssub.s32 %s11, 2
      // Predicated region
      $region49: #{decoder_forward.7} parent=47 // pred_check
        %p429 = pneg %p150
      $region50: #{decoder_forward.7} parent=47 // pred_check_branch
        %431 = sbr.rel (%p429) target = $region52
      $region51: #{decoder_forward.7} parent=47 // pred_region
        %p432 = scmp.lt.s32.totalorder %s17, 1
        %s433 = scalar_select %p432, %s17, 1
        %s434 = smul.addr %s433, 4
        %s435 = smul.addr %s434, 8
        %s436 = scalar_lea.vmem %s5, %s435
      $region52: #{decoder_forward.7} parent=47 // pred_fallthru
        _
    $region48: #{decoder_forward.7} parent=5 // pred_fallthru
      _
  $region6: #{decoder_forward.7} parent=0 // loop_footer
    %s15 = sadd.s32 1, %s11
  $region7: #{decoder_forward.7} parent=0 // loop_footer_branch
    %10 = sbr.rel target = $region3
  $region8: #{decoder_forward.7} parent=0 // loop_exit
    _

</llo_original>
